<compile_context>
chip_gen: v5e
topology: v5e:2x2
jax: 0.10.0
libtpu: 0.0.40
codegen_flags: <defaults>
</compile_context>

<pallas_src>
import jax
import jax.numpy as jnp
from jax import lax
from jax.experimental import pallas as pl
from jax.experimental.pallas import tpu as pltpu

HIDDEN = 256
N_HEADS = 2
HEAD_DIM = HIDDEN // N_HEADS          # 128 (lane-aligned)
INTER = 512
SEQ = 8
PAST = 8
TOTAL = SEQ + PAST
EPS = 1e-6
ROPE_THETA = 10000.0


def _rmsnorm(x, g):
    var = jnp.mean(x * x, axis=-1, keepdims=True)
    return x * lax.rsqrt(var + EPS) * g


def llama_block_kernel(x_ref, mask_ref, cos_ref, sin_ref, pk_ref, pv_ref,
                       gin_ref, gpost_ref, gfin_ref,
                       wqkv_ref, wo_ref, wgu_hbm, wd_hbm,
                       out_ref, newk_ref, newv_ref,
                       wgu_vmem, wd_vmem, dma_sem):
    # ---- kick off MLP-weight DMA so HBM->VMEM overlaps the attention phase ----
    cp_gu = pltpu.make_async_copy(wgu_hbm, wgu_vmem, dma_sem.at[0])
    cp_d = pltpu.make_async_copy(wd_hbm, wd_vmem, dma_sem.at[1])
    cp_gu.start()
    cp_d.start()

    x = x_ref[...]                                   # (S, H) f32
    cos = cos_ref[...]                               # (S, d) f32
    sin = sin_ref[...]
    cos_q = cos[SEQ - 1:SEQ, :]                      # (1, d) — last query row
    sin_q = sin[SEQ - 1:SEQ, :]
    mask_q = mask_ref[...]                           # (1, T) additive mask
    scale = 1.0 / (HEAD_DIM ** 0.5)

    # rotate_half(x) == pltpu.roll(x, d/2, lanes) * sign  (XLU slot, no concat)
    lane = lax.broadcasted_iota(jnp.int32, (1, HEAD_DIM), 1)
    sign = jnp.where(lane < HEAD_DIM // 2, -1.0, 1.0).astype(jnp.float32)

    def rope(v, c, s):
        return v * c + pltpu.roll(v, HEAD_DIM // 2, 1) * sign * s

    # ---- input RMSNorm + fused QKV projection (bf16 MXU, f32 accumulation) ----
    h = _rmsnorm(x, gin_ref[...]).astype(jnp.bfloat16)
    qkv = jnp.dot(h, wqkv_ref[...], preferred_element_type=jnp.float32)  # (S, 3H)

    attn_cols = []
    for hd in range(N_HEADS):
        lo = hd * HEAD_DIM
        kh = qkv[:, HIDDEN + lo:HIDDEN + lo + HEAD_DIM]          # (S, d)
        vh = qkv[:, 2 * HIDDEN + lo:2 * HIDDEN + lo + HEAD_DIM]  # (S, d)
        kh = rope(kh, cos, sin)

        # present KV: copy past rows + append new rows directly (no concat copy)
        newk_ref[hd, pl.ds(0, PAST), :] = pk_ref[hd]
        newv_ref[hd, pl.ds(0, PAST), :] = pv_ref[hd]
        newk_ref[hd, pl.ds(PAST, SEQ), :] = kh
        newv_ref[hd, pl.ds(PAST, SEQ), :] = vh

        # only the last query row feeds the module output
        qh = rope(qkv[SEQ - 1:SEQ, lo:lo + HEAD_DIM], cos_q, sin_q)   # (1, d)

        k_all = newk_ref[hd]                                          # (T, d)
        v_all = newv_ref[hd]
        scores = lax.dot_general(qh.astype(jnp.bfloat16),
                                 k_all.astype(jnp.bfloat16),
                                 (((1,), (1,)), ((), ())),
                                 preferred_element_type=jnp.float32) * scale
        scores = scores + mask_q
        scores = scores - jnp.max(scores, axis=-1, keepdims=True)
        p = jnp.exp(scores)
        p = p * pl.reciprocal(jnp.sum(p, axis=-1, keepdims=True), approx=True)
        attn_cols.append(jnp.dot(p.astype(jnp.bfloat16),
                                 v_all.astype(jnp.bfloat16),
                                 preferred_element_type=jnp.float32))

    attn = jnp.concatenate(attn_cols, axis=-1)        # (1, H)

    # ---- output projection + residual (last row only) ----
    o = jnp.dot(attn.astype(jnp.bfloat16), wo_ref[...],
                preferred_element_type=jnp.float32)
    xl = x[SEQ - 1:SEQ, :] + o

    # ---- post-attention RMSNorm + SwiGLU MLP + residual ----
    cp_gu.wait()
    cp_d.wait()
    h2 = _rmsnorm(xl, gpost_ref[...]).astype(jnp.bfloat16)
    gu = jnp.dot(h2, wgu_vmem[...], preferred_element_type=jnp.float32)  # (1, 2*INTER)
    g = gu[:, :INTER]
    u = gu[:, INTER:]
    m_in = ((g * jax.nn.sigmoid(g)) * u).astype(jnp.bfloat16)
    m = jnp.dot(m_in, wd_vmem[...], preferred_element_type=jnp.float32)
    xl = xl + m

    # ---- final RMSNorm (the module's final_layernorm branch) ----
    out_ref[...] = _rmsnorm(xl, gfin_ref[...])


def llama2_block(hidden_states, attention_mask, position_ids, past_kv, params):
    """Mirrors LLAMA2Block.forward (final_layernorm is not None branch)."""
    x = hidden_states.reshape(-1, HIDDEN).astype(jnp.float32)
    s = x.shape[0]
    mask = attention_mask.reshape(s, -1).astype(jnp.float32)
    t = mask.shape[-1]
    mask_q = mask[-1:, :]                              # only last query row used

    # rotary tables from position_ids (glue, plain JAX)
    inv_freq = 1.0 / (ROPE_THETA ** (jnp.arange(0, HEAD_DIM, 2, dtype=jnp.float32)
                                     / HEAD_DIM))
    pos = position_ids.reshape(-1).astype(jnp.float32)        # (S,)
    freqs = pos[:, None] * inv_freq[None, :]                  # (S, d/2)
    emb = jnp.concatenate([freqs, freqs], axis=-1)            # (S, d)
    cos = jnp.cos(emb)
    sin = jnp.sin(emb)

    past_k = past_kv[0].reshape(N_HEADS, -1, HEAD_DIM).astype(jnp.float32)
    past_v = past_kv[1].reshape(N_HEADS, -1, HEAD_DIM).astype(jnp.float32)

    # pre-pack weights: fused QKV and fused gate/up, all bf16 (halves weight DMA)
    wqkv = jnp.concatenate([params["wq"], params["wk"], params["wv"]],
                           axis=1).astype(jnp.bfloat16)
    wo = params["wo"].astype(jnp.bfloat16)
    wgu = jnp.concatenate([params["wg"], params["wu"]], axis=1).astype(jnp.bfloat16)
    wd = params["wd"].astype(jnp.bfloat16)

    vmem = pl.BlockSpec(memory_space=pltpu.MemorySpace.VMEM)
    anyspace = pl.BlockSpec(memory_space=pl.ANY)      # MLP weights: manual DMA
    inputs = (x, mask_q, cos, sin, past_k, past_v,
              params["g_in"], params["g_post"], params["g_final"],
              wqkv, wo, wgu, wd)
    in_specs = [vmem] * 11 + [anyspace, anyspace]

    out, new_k, new_v = pl.pallas_call(
        llama_block_kernel,
        out_shape=(jax.ShapeDtypeStruct((1, HIDDEN), jnp.float32),
                   jax.ShapeDtypeStruct((N_HEADS, t, HEAD_DIM), jnp.float32),
                   jax.ShapeDtypeStruct((N_HEADS, t, HEAD_DIM), jnp.float32)),
        in_specs=in_specs,
        out_specs=(vmem, vmem, vmem),
        scratch_shapes=[pltpu.VMEM((HIDDEN, 2 * INTER), jnp.bfloat16),
                        pltpu.VMEM((INTER, HIDDEN), jnp.bfloat16),
                        pltpu.SemaphoreType.DMA((2,))],
        compiler_params=pltpu.CompilerParams(vmem_limit_bytes=64 << 20),
    )(*inputs)

    # final_layernorm branch: view(-1, H)[-1].view(1, 1, H)
    hidden_out = out.reshape(1, 1, HIDDEN)
    # presents tuple -> torch.stack(presents): (2, batch=1, n_heads, T, d)
    presents = jnp.stack([new_k[None], new_v[None]])
    return hidden_out, presents


# ---------------- pure-JAX reference (f32, for correctness check) ----------------
def _rotate_half(x):
    half = x.shape[-1] // 2
    return jnp.concatenate([-x[:, half:], x[:, :half]], axis=-1)


def _reference(hidden_states, attention_mask, position_ids, past_kv, params):
    x = hidden_states.reshape(-1, HIDDEN).astype(jnp.float32)
    mask = attention_mask.reshape(x.shape[0], -1).astype(jnp.float32)
    inv_freq = 1.0 / (ROPE_THETA ** (jnp.arange(0, HEAD_DIM, 2, dtype=jnp.float32)
                                     / HEAD_DIM))
    pos = position_ids.reshape(-1).astype(jnp.float32)
    freqs = pos[:, None] * inv_freq[None, :]
    emb = jnp.concatenate([freqs, freqs], axis=-1)
    cos, sin = jnp.cos(emb), jnp.sin(emb)
    past_k = past_kv[0].reshape(N_HEADS, -1, HEAD_DIM).astype(jnp.float32)
    past_v = past_kv[1].reshape(N_HEADS, -1, HEAD_DIM).astype(jnp.float32)

    res = x
    h = _rmsnorm(x, params["g_in"])
    q, k, v = h @ params["wq"], h @ params["wk"], h @ params["wv"]
    outs, nks, nvs = [], [], []
    for hd in range(N_HEADS):
        lo = hd * HEAD_DIM
        qh, kh, vh = (q[:, lo:lo + HEAD_DIM], k[:, lo:lo + HEAD_DIM],
                      v[:, lo:lo + HEAD_DIM])
        qh = qh * cos + _rotate_half(qh) * sin
        kh = kh * cos + _rotate_half(kh) * sin
        k_all = jnp.concatenate([past_k[hd], kh], axis=0)
        v_all = jnp.concatenate([past_v[hd], vh], axis=0)
        nks.append(k_all); nvs.append(v_all)
        sc = qh @ k_all.T / (HEAD_DIM ** 0.5) + mask
        p = jax.nn.softmax(sc, axis=-1)
        outs.append(p @ v_all)
    attn = jnp.concatenate(outs, axis=-1)
    x = res + attn @ params["wo"]
    res = x
    h2 = _rmsnorm(x, params["g_post"])
    g, u = h2 @ params["wg"], h2 @ params["wu"]
    x = res + ((g * jax.nn.sigmoid(g)) * u) @ params["wd"]
    out = _rmsnorm(x, params["g_final"])
    hidden_out = out[-1].reshape(1, 1, HIDDEN)
    presents = jnp.stack([jnp.stack(nks)[None], jnp.stack(nvs)[None]])
    return hidden_out, presents


if __name__ == "__main__":
    key = jax.random.PRNGKey(0)
    ks = jax.random.split(key, 12)

    def w(k, shape, scale=0.02):
        return (scale * jax.random.normal(k, shape)).astype(jnp.float32)

    params = {
        "g_in":    jnp.ones((1, HIDDEN), jnp.float32),
        "g_post":  jnp.ones((1, HIDDEN), jnp.float32),
        "g_final": jnp.ones((1, HIDDEN), jnp.float32),
        "wq": w(ks[0], (HIDDEN, HIDDEN)),
        "wk": w(ks[1], (HIDDEN, HIDDEN)),
        "wv": w(ks[2], (HIDDEN, HIDDEN)),
        "wo": w(ks[3], (HIDDEN, HIDDEN)),
        "wg": w(ks[4], (HIDDEN, INTER)),
        "wu": w(ks[5], (HIDDEN, INTER)),
        "wd": w(ks[6], (INTER, HIDDEN)),
    }

    hidden_states = w(ks[7], (1, SEQ, HIDDEN), scale=1.0)
    position_ids = jnp.arange(PAST, PAST + SEQ, dtype=jnp.int32).reshape(1, SEQ)
    # causal additive mask over [PAST + SEQ] kv positions
    q_pos = PAST + jnp.arange(SEQ)[:, None]
    k_pos = jnp.arange(TOTAL)[None, :]
    attention_mask = jnp.where(k_pos <= q_pos, 0.0, -1e9).astype(jnp.float32)
    attention_mask = attention_mask.reshape(1, 1, SEQ, TOTAL)
    past_kv = w(ks[8], (2, 1, N_HEADS, PAST, HEAD_DIM), scale=1.0)

    out_h, presents = llama2_block(hidden_states, attention_mask,
                                   position_ids, past_kv, params)
    jax.block_until_ready((out_h, presents))

    ref_h, ref_p = _reference(hidden_states, attention_mask,
                              position_ids, past_kv, params)
    assert out_h.shape == (1, 1, HIDDEN)
    assert presents.shape == (2, 1, N_HEADS, TOTAL, HEAD_DIM)
    # tolerance loosened to cover bf16 matmul operands + approx reciprocal
    assert jnp.allclose(out_h, ref_h, atol=2e-2, rtol=2e-2)
    assert jnp.allclose(presents, ref_p, atol=2e-2, rtol=2e-2)

    print("KERNEL_OK")
</pallas_src>

<mosaic_0001>
module attributes {stable_mosaic.version = 11 : i64} {
  func.func @llama_block_kernel(%arg0: memref<8x256xf32, #tpu.memory_space<vmem>>, %arg1: memref<1x16xf32, #tpu.memory_space<vmem>>, %arg2: memref<8x128xf32, #tpu.memory_space<vmem>>, %arg3: memref<8x128xf32, #tpu.memory_space<vmem>>, %arg4: memref<2x8x128xf32, #tpu.memory_space<vmem>>, %arg5: memref<2x8x128xf32, #tpu.memory_space<vmem>>, %arg6: memref<1x256xf32, #tpu.memory_space<vmem>>, %arg7: memref<1x256xf32, #tpu.memory_space<vmem>>, %arg8: memref<1x256xf32, #tpu.memory_space<vmem>>, %arg9: memref<256x768xbf16, #tpu.memory_space<vmem>>, %arg10: memref<256x256xbf16, #tpu.memory_space<vmem>>, %arg11: memref<256x1024xbf16, #tpu.memory_space<any>>, %arg12: memref<512x256xbf16, #tpu.memory_space<any>>, %arg13: memref<1x256xf32, #tpu.memory_space<vmem>>, %arg14: memref<2x16x128xf32, #tpu.memory_space<vmem>>, %arg15: memref<2x16x128xf32, #tpu.memory_space<vmem>>, %arg16: memref<256x1024xbf16, #tpu.memory_space<vmem>>, %arg17: memref<512x256xbf16, #tpu.memory_space<vmem>>, %arg18: memref<2x!tpu.dma_semaphore, #tpu.memory_space<semaphore_mem>>) attributes {dimension_semantics = [], scalar_prefetch = 0 : i64, scratch_operands = 3 : i64, tpu.core_type = #tpu.core_type<tc>} {
    %c0_i32 = arith.constant 0 : i32
    %0 = tpu.memref_slice %arg18[%c0_i32] : memref<2x!tpu.dma_semaphore, #tpu.memory_space<semaphore_mem>> -> memref<1x!tpu.dma_semaphore, #tpu.memory_space<semaphore_mem>>
    %1 = tpu.memref_squeeze %0 : memref<1x!tpu.dma_semaphore, #tpu.memory_space<semaphore_mem>> -> memref<!tpu.dma_semaphore, #tpu.memory_space<semaphore_mem>>
    tpu.enqueue_dma source(%arg11 : memref<256x1024xbf16, #tpu.memory_space<any>>) target(%arg16 : memref<256x1024xbf16, #tpu.memory_space<vmem>>) target_semaphore(%1 : memref<!tpu.dma_semaphore, #tpu.memory_space<semaphore_mem>>)
    %c1_i32 = arith.constant 1 : i32
    %2 = tpu.memref_slice %arg18[%c1_i32] : memref<2x!tpu.dma_semaphore, #tpu.memory_space<semaphore_mem>> -> memref<1x!tpu.dma_semaphore, #tpu.memory_space<semaphore_mem>>
    %3 = tpu.memref_squeeze %2 : memref<1x!tpu.dma_semaphore, #tpu.memory_space<semaphore_mem>> -> memref<!tpu.dma_semaphore, #tpu.memory_space<semaphore_mem>>
    tpu.enqueue_dma source(%arg12 : memref<512x256xbf16, #tpu.memory_space<any>>) target(%arg17 : memref<512x256xbf16, #tpu.memory_space<vmem>>) target_semaphore(%3 : memref<!tpu.dma_semaphore, #tpu.memory_space<semaphore_mem>>)
    %c0 = arith.constant 0 : index
    %c0_0 = arith.constant 0 : index
    %4 = vector.load %arg0[%c0, %c0_0] : memref<8x256xf32, #tpu.memory_space<vmem>>, vector<8x256xf32>
    %c0_1 = arith.constant 0 : index
    %c0_2 = arith.constant 0 : index
    %5 = vector.load %arg2[%c0_1, %c0_2] : memref<8x128xf32, #tpu.memory_space<vmem>>, vector<8x128xf32>
    %c0_3 = arith.constant 0 : index
    %c0_4 = arith.constant 0 : index
    %6 = vector.load %arg3[%c0_3, %c0_4] : memref<8x128xf32, #tpu.memory_space<vmem>>, vector<8x128xf32>
    %7 = vector.extract_strided_slice %5 {offsets = [7, 0], sizes = [1, 128], strides = [1, 1]} : vector<8x128xf32> to vector<1x128xf32>
    %8 = vector.extract_strided_slice %6 {offsets = [7, 0], sizes = [1, 128], strides = [1, 1]} : vector<8x128xf32> to vector<1x128xf32>
    %c0_5 = arith.constant 0 : index
    %c0_6 = arith.constant 0 : index
    %9 = vector.load %arg1[%c0_5, %c0_6] : memref<1x16xf32, #tpu.memory_space<vmem>>, vector<1x16xf32>
    %10 = tpu.iota {dimensions = array<i32: 1>} : vector<1x128xi32>
    %c64_i32 = arith.constant 64 : i32
    %11 = vector.broadcast %c64_i32 : i32 to vector<1x128xi32>
    %12 = arith.cmpi slt, %10, %11 : vector<1x128xi32>
    %cst = arith.constant -1.000000e+00 : f32
    %cst_7 = arith.constant 1.000000e+00 : f32
    %13 = vector.broadcast %cst : f32 to vector<1x128xf32>
    %14 = vector.broadcast %cst_7 : f32 to vector<1x128xf32>
    %15 = arith.select %12, %13, %14 : vector<1x128xi1>, vector<1x128xf32>
    %c0_8 = arith.constant 0 : index
    %c0_9 = arith.constant 0 : index
    %16 = vector.load %arg6[%c0_8, %c0_9] : memref<1x256xf32, #tpu.memory_space<vmem>>, vector<1x256xf32>
    %17 = arith.mulf %4, %4 : vector<8x256xf32>
    %cst_10 = arith.constant dense<0.000000e+00> : vector<8xf32>
    %18 = vector.multi_reduction <add>, %17, %cst_10 [1] : vector<8x256xf32> to vector<8xf32>
    %19 = vector.shape_cast %18 : vector<8xf32> to vector<8x1xf32>
    %cst_11 = arith.constant 2.560000e+02 : f32
    %20 = vector.broadcast %cst_11 : f32 to vector<8x1xf32>
    %21 = arith.divf %19, %20 : vector<8x1xf32>
    %cst_12 = arith.constant 9.99999997E-7 : f32
    %22 = vector.broadcast %cst_12 : f32 to vector<8x1xf32>
    %23 = arith.addf %21, %22 : vector<8x1xf32>
    %24 = math.rsqrt %23 : vector<8x1xf32>
    %25 = vector.broadcast %24 : vector<8x1xf32> to vector<8x256xf32>
    %26 = arith.mulf %4, %25 : vector<8x256xf32>
    %27 = vector.broadcast %16 : vector<1x256xf32> to vector<8x256xf32>
    %28 = arith.mulf %26, %27 : vector<8x256xf32>
    %29 = arith.truncf %28 : vector<8x256xf32> to vector<8x256xbf16>
    %c0_13 = arith.constant 0 : index
    %c0_14 = arith.constant 0 : index
    %30 = vector.load %arg9[%c0_13, %c0_14] : memref<256x768xbf16, #tpu.memory_space<vmem>>, vector<256x768xbf16>
    %cst_15 = arith.constant dense<0.000000e+00> : vector<8x768xf32>
    %31 = tpu.matmul %29, %30, %cst_15 {dimension_numbers = #tpu.dot_dimension_numbers<[1], [0], [0], [1], [0, 0, 1, 1], [], []>} : vector<8x256xbf16>, vector<256x768xbf16>, vector<8x768xf32> -> vector<8x768xf32>
    %32 = vector.extract_strided_slice %31 {offsets = [0, 256], sizes = [8, 128], strides = [1, 1]} : vector<8x768xf32> to vector<8x128xf32>
    %33 = vector.extract_strided_slice %31 {offsets = [0, 512], sizes = [8, 128], strides = [1, 1]} : vector<8x768xf32> to vector<8x128xf32>
    %34 = arith.mulf %32, %5 : vector<8x128xf32>
    %c64_i32_16 = arith.constant 64 : i32
    %35 = tpu.dynamic_rotate %32 by %c64_i32_16 dim 1 : vector<8x128xf32>, i32 -> vector<8x128xf32>
    %36 = vector.broadcast %15 : vector<1x128xf32> to vector<8x128xf32>
    %37 = arith.mulf %35, %36 : vector<8x128xf32>
    %38 = arith.mulf %37, %6 : vector<8x128xf32>
    %39 = arith.addf %34, %38 : vector<8x128xf32>
    %c0_17 = arith.constant 0 : index
    %c0_18 = arith.constant 0 : index
    %c0_19 = arith.constant 0 : index
    %40 = vector.load %arg4[%c0_17, %c0_18, %c0_19] : memref<2x8x128xf32, #tpu.memory_space<vmem>>, vector<1x8x128xf32>
    %41 = vector.shape_cast %40 : vector<1x8x128xf32> to vector<8x128xf32>
    %c0_20 = arith.constant 0 : index
    %c0_21 = arith.constant 0 : index
    %c0_22 = arith.constant 0 : index
    %42 = vector.load %arg14[%c0_20, %c0_21, %c0_22] : memref<2x16x128xf32, #tpu.memory_space<vmem>>, vector<1x8x128xf32>
    %43 = vector.shape_cast %42 : vector<1x8x128xf32> to vector<8x128xf32>
    %44 = vector.shape_cast %41 : vector<8x128xf32> to vector<1x8x128xf32>
    tpu.vector_store %arg14[%c0_20, %c0_21, %c0_22], %44 {strides = array<i32>} : memref<2x16x128xf32, #tpu.memory_space<vmem>>, vector<1x8x128xf32>,
    %c0_23 = arith.constant 0 : index
    %c0_24 = arith.constant 0 : index
    %c0_25 = arith.constant 0 : index
    %45 = vector.load %arg5[%c0_23, %c0_24, %c0_25] : memref<2x8x128xf32, #tpu.memory_space<vmem>>, vector<1x8x128xf32>
    %46 = vector.shape_cast %45 : vector<1x8x128xf32> to vector<8x128xf32>
    %c0_26 = arith.constant 0 : index
    %c0_27 = arith.constant 0 : index
    %c0_28 = arith.constant 0 : index
    %47 = vector.load %arg15[%c0_26, %c0_27, %c0_28] : memref<2x16x128xf32, #tpu.memory_space<vmem>>, vector<1x8x128xf32>
    %48 = vector.shape_cast %47 : vector<1x8x128xf32> to vector<8x128xf32>
    %49 = vector.shape_cast %46 : vector<8x128xf32> to vector<1x8x128xf32>
    tpu.vector_store %arg15[%c0_26, %c0_27, %c0_28], %49 {strides = array<i32>} : memref<2x16x128xf32, #tpu.memory_space<vmem>>, vector<1x8x128xf32>,
    %c0_29 = arith.constant 0 : index
    %c8 = arith.constant 8 : index
    %c0_30 = arith.constant 0 : index
    %50 = vector.load %arg14[%c0_29, %c8, %c0_30] : memref<2x16x128xf32, #tpu.memory_space<vmem>>, vector<1x8x128xf32>
    %51 = vector.shape_cast %50 : vector<1x8x128xf32> to vector<8x128xf32>
    %52 = vector.shape_cast %39 : vector<8x128xf32> to vector<1x8x128xf32>
    tpu.vector_store %arg14[%c0_29, %c8, %c0_30], %52 {strides = array<i32>} : memref<2x16x128xf32, #tpu.memory_space<vmem>>, vector<1x8x128xf32>,
    %c0_31 = arith.constant 0 : index
    %c8_32 = arith.constant 8 : index
    %c0_33 = arith.constant 0 : index
    %53 = vector.load %arg15[%c0_31, %c8_32, %c0_33] : memref<2x16x128xf32, #tpu.memory_space<vmem>>, vector<1x8x128xf32>
    %54 = vector.shape_cast %53 : vector<1x8x128xf32> to vector<8x128xf32>
    %55 = vector.shape_cast %33 : vector<8x128xf32> to vector<1x8x128xf32>
    tpu.vector_store %arg15[%c0_31, %c8_32, %c0_33], %55 {strides = array<i32>} : memref<2x16x128xf32, #tpu.memory_space<vmem>>, vector<1x8x128xf32>,
    %56 = vector.extract_strided_slice %31 {offsets = [7, 0], sizes = [1, 128], strides = [1, 1]} : vector<8x768xf32> to vector<1x128xf32>
    %57 = arith.mulf %56, %7 : vector<1x128xf32>
    %c64_i32_34 = arith.constant 64 : i32
    %58 = tpu.dynamic_rotate %56 by %c64_i32_34 dim 1 : vector<1x128xf32>, i32 -> vector<1x128xf32>
    %59 = arith.mulf %58, %15 : vector<1x128xf32>
    %60 = arith.mulf %59, %8 : vector<1x128xf32>
    %61 = arith.addf %57, %60 : vector<1x128xf32>
    %c0_35 = arith.constant 0 : index
    %c0_36 = arith.constant 0 : index
    %c0_37 = arith.constant 0 : index
    %62 = vector.load %arg14[%c0_35, %c0_36, %c0_37] : memref<2x16x128xf32, #tpu.memory_space<vmem>>, vector<1x16x128xf32>
    %63 = vector.shape_cast %62 : vector<1x16x128xf32> to vector<16x128xf32>
    %c0_38 = arith.constant 0 : index
    %c0_39 = arith.constant 0 : index
    %c0_40 = arith.constant 0 : index
    %64 = vector.load %arg15[%c0_38, %c0_39, %c0_40] : memref<2x16x128xf32, #tpu.memory_space<vmem>>, vector<1x16x128xf32>
    %65 = vector.shape_cast %64 : vector<1x16x128xf32> to vector<16x128xf32>
    %66 = arith.truncf %61 : vector<1x128xf32> to vector<1x128xbf16>
    %67 = arith.truncf %63 : vector<16x128xf32> to vector<16x128xbf16>
    %cst_41 = arith.constant dense<0.000000e+00> : vector<1x16xf32>
    %68 = tpu.matmul %66, %67, %cst_41 {dimension_numbers = #tpu.dot_dimension_numbers<[1], [1], [0], [0], [0, 0, 1, 0], [], []>} : vector<1x128xbf16>, vector<16x128xbf16>, vector<1x16xf32> -> vector<1x16xf32>
    %cst_42 = arith.constant 0.0883883461 : f32
    %69 = vector.broadcast %cst_42 : f32 to vector<1x16xf32>
    %70 = arith.mulf %68, %69 : vector<1x16xf32>
    %71 = arith.addf %70, %9 : vector<1x16xf32>
    %cst_43 = arith.constant dense<0xFF800000> : vector<1xf32>
    %72 = vector.multi_reduction <maximumf>, %71, %cst_43 [1] : vector<1x16xf32> to vector<1xf32>
    %73 = vector.shape_cast %72 : vector<1xf32> to vector<1x1xf32>
    %74 = vector.broadcast %73 : vector<1x1xf32> to vector<1x16xf32>
    %75 = arith.subf %71, %74 : vector<1x16xf32>
    %76 = math.exp %75 : vector<1x16xf32>
    %cst_44 = arith.constant dense<0.000000e+00> : vector<1xf32>
    %77 = vector.multi_reduction <add>, %76, %cst_44 [1] : vector<1x16xf32> to vector<1xf32>
    %78 = vector.shape_cast %77 : vector<1xf32> to vector<1x1xf32>
    %79 = tpu.reciprocal %78 {approx = true} : vector<1x1xf32> -> vector<1x1xf32>
    %80 = vector.broadcast %79 : vector<1x1xf32> to vector<1x16xf32>
    %81 = arith.mulf %76, %80 : vector<1x16xf32>
    %82 = arith.truncf %81 : vector<1x16xf32> to vector<1x16xbf16>
    %83 = arith.truncf %65 : vector<16x128xf32> to vector<16x128xbf16>
    %cst_45 = arith.constant dense<0.000000e+00> : vector<1x128xf32>
    %84 = tpu.matmul %82, %83, %cst_45 {dimension_numbers = #tpu.dot_dimension_numbers<[1], [0], [0], [1], [0, 0, 1, 1], [], []>} : vector<1x16xbf16>, vector<16x128xbf16>, vector<1x128xf32> -> vector<1x128xf32>
    %85 = vector.extract_strided_slice %31 {offsets = [0, 384], sizes = [8, 128], strides = [1, 1]} : vector<8x768xf32> to vector<8x128xf32>
    %86 = vector.extract_strided_slice %31 {offsets = [0, 640], sizes = [8, 128], strides = [1, 1]} : vector<8x768xf32> to vector<8x128xf32>
    %87 = arith.mulf %85, %5 : vector<8x128xf32>
    %c64_i32_46 = arith.constant 64 : i32
    %88 = tpu.dynamic_rotate %85 by %c64_i32_46 dim 1 : vector<8x128xf32>, i32 -> vector<8x128xf32>
    %89 = vector.broadcast %15 : vector<1x128xf32> to vector<8x128xf32>
    %90 = arith.mulf %88, %89 : vector<8x128xf32>
    %91 = arith.mulf %90, %6 : vector<8x128xf32>
    %92 = arith.addf %87, %91 : vector<8x128xf32>
    %c1 = arith.constant 1 : index
    %c0_47 = arith.constant 0 : index
    %c0_48 = arith.constant 0 : index
    %93 = vector.load %arg4[%c1, %c0_47, %c0_48] : memref<2x8x128xf32, #tpu.memory_space<vmem>>, vector<1x8x128xf32>
    %94 = vector.shape_cast %93 : vector<1x8x128xf32> to vector<8x128xf32>
    %c1_49 = arith.constant 1 : index
    %c0_50 = arith.constant 0 : index
    %c0_51 = arith.constant 0 : index
    %95 = vector.load %arg14[%c1_49, %c0_50, %c0_51] : memref<2x16x128xf32, #tpu.memory_space<vmem>>, vector<1x8x128xf32>
    %96 = vector.shape_cast %95 : vector<1x8x128xf32> to vector<8x128xf32>
    %97 = vector.shape_cast %94 : vector<8x128xf32> to vector<1x8x128xf32>
    tpu.vector_store %arg14[%c1_49, %c0_50, %c0_51], %97 {strides = array<i32>} : memref<2x16x128xf32, #tpu.memory_space<vmem>>, vector<1x8x128xf32>,
    %c1_52 = arith.constant 1 : index
    %c0_53 = arith.constant 0 : index
    %c0_54 = arith.constant 0 : index
    %98 = vector.load %arg5[%c1_52, %c0_53, %c0_54] : memref<2x8x128xf32, #tpu.memory_space<vmem>>, vector<1x8x128xf32>
    %99 = vector.shape_cast %98 : vector<1x8x128xf32> to vector<8x128xf32>
    %c1_55 = arith.constant 1 : index
    %c0_56 = arith.constant 0 : index
    %c0_57 = arith.constant 0 : index
    %100 = vector.load %arg15[%c1_55, %c0_56, %c0_57] : memref<2x16x128xf32, #tpu.memory_space<vmem>>, vector<1x8x128xf32>
    %101 = vector.shape_cast %100 : vector<1x8x128xf32> to vector<8x128xf32>
    %102 = vector.shape_cast %99 : vector<8x128xf32> to vector<1x8x128xf32>
    tpu.vector_store %arg15[%c1_55, %c0_56, %c0_57], %102 {strides = array<i32>} : memref<2x16x128xf32, #tpu.memory_space<vmem>>, vector<1x8x128xf32>,
    %c1_58 = arith.constant 1 : index
    %c8_59 = arith.constant 8 : index
    %c0_60 = arith.constant 0 : index
    %103 = vector.load %arg14[%c1_58, %c8_59, %c0_60] : memref<2x16x128xf32, #tpu.memory_space<vmem>>, vector<1x8x128xf32>
    %104 = vector.shape_cast %103 : vector<1x8x128xf32> to vector<8x128xf32>
    %105 = vector.shape_cast %92 : vector<8x128xf32> to vector<1x8x128xf32>
    tpu.vector_store %arg14[%c1_58, %c8_59, %c0_60], %105 {strides = array<i32>} : memref<2x16x128xf32, #tpu.memory_space<vmem>>, vector<1x8x128xf32>,
    %c1_61 = arith.constant 1 : index
    %c8_62 = arith.constant 8 : index
    %c0_63 = arith.constant 0 : index
    %106 = vector.load %arg15[%c1_61, %c8_62, %c0_63] : memref<2x16x128xf32, #tpu.memory_space<vmem>>, vector<1x8x128xf32>
    %107 = vector.shape_cast %106 : vector<1x8x128xf32> to vector<8x128xf32>
    %108 = vector.shape_cast %86 : vector<8x128xf32> to vector<1x8x128xf32>
    tpu.vector_store %arg15[%c1_61, %c8_62, %c0_63], %108 {strides = array<i32>} : memref<2x16x128xf32, #tpu.memory_space<vmem>>, vector<1x8x128xf32>,
    %109 = vector.extract_strided_slice %31 {offsets = [7, 128], sizes = [1, 128], strides = [1, 1]} : vector<8x768xf32> to vector<1x128xf32>
    %110 = arith.mulf %109, %7 : vector<1x128xf32>
    %c64_i32_64 = arith.constant 64 : i32
    %111 = tpu.dynamic_rotate %109 by %c64_i32_64 dim 1 : vector<1x128xf32>, i32 -> vector<1x128xf32>
    %112 = arith.mulf %111, %15 : vector<1x128xf32>
    %113 = arith.mulf %112, %8 : vector<1x128xf32>
    %114 = arith.addf %110, %113 : vector<1x128xf32>
    %c1_65 = arith.constant 1 : index
    %c0_66 = arith.constant 0 : index
    %c0_67 = arith.constant 0 : index
    %115 = vector.load %arg14[%c1_65, %c0_66, %c0_67] : memref<2x16x128xf32, #tpu.memory_space<vmem>>, vector<1x16x128xf32>
    %116 = vector.shape_cast %115 : vector<1x16x128xf32> to vector<16x128xf32>
    %c1_68 = arith.constant 1 : index
    %c0_69 = arith.constant 0 : index
    %c0_70 = arith.constant 0 : index
    %117 = vector.load %arg15[%c1_68, %c0_69, %c0_70] : memref<2x16x128xf32, #tpu.memory_space<vmem>>, vector<1x16x128xf32>
    %118 = vector.shape_cast %117 : vector<1x16x128xf32> to vector<16x128xf32>
    %119 = arith.truncf %114 : vector<1x128xf32> to vector<1x128xbf16>
    %120 = arith.truncf %116 : vector<16x128xf32> to vector<16x128xbf16>
    %cst_71 = arith.constant dense<0.000000e+00> : vector<1x16xf32>
    %121 = tpu.matmul %119, %120, %cst_71 {dimension_numbers = #tpu.dot_dimension_numbers<[1], [1], [0], [0], [0, 0, 1, 0], [], []>} : vector<1x128xbf16>, vector<16x128xbf16>, vector<1x16xf32> -> vector<1x16xf32>
    %cst_72 = arith.constant 0.0883883461 : f32
    %122 = vector.broadcast %cst_72 : f32 to vector<1x16xf32>
    %123 = arith.mulf %121, %122 : vector<1x16xf32>
    %124 = arith.addf %123, %9 : vector<1x16xf32>
    %cst_73 = arith.constant dense<0xFF800000> : vector<1xf32>
    %125 = vector.multi_reduction <maximumf>, %124, %cst_73 [1] : vector<1x16xf32> to vector<1xf32>
    %126 = vector.shape_cast %125 : vector<1xf32> to vector<1x1xf32>
    %127 = vector.broadcast %126 : vector<1x1xf32> to vector<1x16xf32>
    %128 = arith.subf %124, %127 : vector<1x16xf32>
    %129 = math.exp %128 : vector<1x16xf32>
    %cst_74 = arith.constant dense<0.000000e+00> : vector<1xf32>
    %130 = vector.multi_reduction <add>, %129, %cst_74 [1] : vector<1x16xf32> to vector<1xf32>
    %131 = vector.shape_cast %130 : vector<1xf32> to vector<1x1xf32>
    %132 = tpu.reciprocal %131 {approx = true} : vector<1x1xf32> -> vector<1x1xf32>
    %133 = vector.broadcast %132 : vector<1x1xf32> to vector<1x16xf32>
    %134 = arith.mulf %129, %133 : vector<1x16xf32>
    %135 = arith.truncf %134 : vector<1x16xf32> to vector<1x16xbf16>
    %136 = arith.truncf %118 : vector<16x128xf32> to vector<16x128xbf16>
    %cst_75 = arith.constant dense<0.000000e+00> : vector<1x128xf32>
    %137 = tpu.matmul %135, %136, %cst_75 {dimension_numbers = #tpu.dot_dimension_numbers<[1], [0], [0], [1], [0, 0, 1, 1], [], []>} : vector<1x16xbf16>, vector<16x128xbf16>, vector<1x128xf32> -> vector<1x128xf32>
    %138 = tpu.concatenate %84, %137 in 1 : vector<1x128xf32>, vector<1x128xf32> -> vector<1x256xf32>
    %139 = arith.truncf %138 : vector<1x256xf32> to vector<1x256xbf16>
    %c0_76 = arith.constant 0 : index
    %c0_77 = arith.constant 0 : index
    %140 = vector.load %arg10[%c0_76, %c0_77] : memref<256x256xbf16, #tpu.memory_space<vmem>>, vector<256x256xbf16>
    %cst_78 = arith.constant dense<0.000000e+00> : vector<1x256xf32>
    %141 = tpu.matmul %139, %140, %cst_78 {dimension_numbers = #tpu.dot_dimension_numbers<[1], [0], [0], [1], [0, 0, 1, 1], [], []>} : vector<1x256xbf16>, vector<256x256xbf16>, vector<1x256xf32> -> vector<1x256xf32>
    %142 = vector.extract_strided_slice %4 {offsets = [7, 0], sizes = [1, 256], strides = [1, 1]} : vector<8x256xf32> to vector<1x256xf32>
    %143 = arith.addf %142, %141 : vector<1x256xf32>
    %c0_i32_79 = arith.constant 0 : i32
    %144 = tpu.memref_slice %arg18[%c0_i32_79] : memref<2x!tpu.dma_semaphore, #tpu.memory_space<semaphore_mem>> -> memref<1x!tpu.dma_semaphore, #tpu.memory_space<semaphore_mem>>
    %145 = tpu.memref_squeeze %144 : memref<1x!tpu.dma_semaphore, #tpu.memory_space<semaphore_mem>> -> memref<!tpu.dma_semaphore, #tpu.memory_space<semaphore_mem>>
    tpu.wait_dma2 semaphore(%145 : memref<!tpu.dma_semaphore, #tpu.memory_space<semaphore_mem>>) src(%arg11 : memref<256x1024xbf16, #tpu.memory_space<any>>) dst(%arg16 : memref<256x1024xbf16, #tpu.memory_space<vmem>>)
    %c1_i32_80 = arith.constant 1 : i32
    %146 = tpu.memref_slice %arg18[%c1_i32_80] : memref<2x!tpu.dma_semaphore, #tpu.memory_space<semaphore_mem>> -> memref<1x!tpu.dma_semaphore, #tpu.memory_space<semaphore_mem>>
    %147 = tpu.memref_squeeze %146 : memref<1x!tpu.dma_semaphore, #tpu.memory_space<semaphore_mem>> -> memref<!tpu.dma_semaphore, #tpu.memory_space<semaphore_mem>>
    tpu.wait_dma2 semaphore(%147 : memref<!tpu.dma_semaphore, #tpu.memory_space<semaphore_mem>>) src(%arg12 : memref<512x256xbf16, #tpu.memory_space<any>>) dst(%arg17 : memref<512x256xbf16, #tpu.memory_space<vmem>>)
    %c0_81 = arith.constant 0 : index
    %c0_82 = arith.constant 0 : index
    %148 = vector.load %arg7[%c0_81, %c0_82] : memref<1x256xf32, #tpu.memory_space<vmem>>, vector<1x256xf32>
    %149 = arith.mulf %143, %143 : vector<1x256xf32>
    %cst_83 = arith.constant dense<0.000000e+00> : vector<1xf32>
    %150 = vector.multi_reduction <add>, %149, %cst_83 [1] : vector<1x256xf32> to vector<1xf32>
    %151 = vector.shape_cast %150 : vector<1xf32> to vector<1x1xf32>
    %cst_84 = arith.constant 2.560000e+02 : f32
    %152 = vector.broadcast %cst_84 : f32 to vector<1x1xf32>
    %153 = arith.divf %151, %152 : vector<1x1xf32>
    %cst_85 = arith.constant 9.99999997E-7 : f32
    %154 = vector.broadcast %cst_85 : f32 to vector<1x1xf32>
    %155 = arith.addf %153, %154 : vector<1x1xf32>
    %156 = math.rsqrt %155 : vector<1x1xf32>
    %157 = vector.broadcast %156 : vector<1x1xf32> to vector<1x256xf32>
    %158 = arith.mulf %143, %157 : vector<1x256xf32>
    %159 = arith.mulf %158, %148 : vector<1x256xf32>
    %160 = arith.truncf %159 : vector<1x256xf32> to vector<1x256xbf16>
    %c0_86 = arith.constant 0 : index
    %c0_87 = arith.constant 0 : index
    %161 = vector.load %arg16[%c0_86, %c0_87] : memref<256x1024xbf16, #tpu.memory_space<vmem>>, vector<256x1024xbf16>
    %cst_88 = arith.constant dense<0.000000e+00> : vector<1x1024xf32>
    %162 = tpu.matmul %160, %161, %cst_88 {dimension_numbers = #tpu.dot_dimension_numbers<[1], [0], [0], [1], [0, 0, 1, 1], [], []>} : vector<1x256xbf16>, vector<256x1024xbf16>, vector<1x1024xf32> -> vector<1x1024xf32>
    %163 = vector.extract_strided_slice %162 {offsets = [0, 0], sizes = [1, 512], strides = [1, 1]} : vector<1x1024xf32> to vector<1x512xf32>
    %164 = vector.extract_strided_slice %162 {offsets = [0, 512], sizes = [1, 512], strides = [1, 1]} : vector<1x1024xf32> to vector<1x512xf32>
    %165 = arith.negf %163 : vector<1x512xf32>
    %166 = math.exp %165 : vector<1x512xf32>
    %cst_89 = arith.constant 1.000000e+00 : f32
    %167 = vector.broadcast %cst_89 : f32 to vector<1x512xf32>
    %168 = arith.addf %167, %166 : vector<1x512xf32>
    %169 = arith.divf %167, %168 : vector<1x512xf32>
    %170 = arith.mulf %163, %169 : vector<1x512xf32>
    %171 = arith.mulf %170, %164 : vector<1x512xf32>
    %172 = arith.truncf %171 : vector<1x512xf32> to vector<1x512xbf16>
    %c0_90 = arith.constant 0 : index
    %c0_91 = arith.constant 0 : index
    %173 = vector.load %arg17[%c0_90, %c0_91] : memref<512x256xbf16, #tpu.memory_space<vmem>>, vector<512x256xbf16>
    %cst_92 = arith.constant dense<0.000000e+00> : vector<1x256xf32>
    %174 = tpu.matmul %172, %173, %cst_92 {dimension_numbers = #tpu.dot_dimension_numbers<[1], [0], [0], [1], [0, 0, 1, 1], [], []>} : vector<1x512xbf16>, vector<512x256xbf16>, vector<1x256xf32> -> vector<1x256xf32>
    %175 = arith.addf %143, %174 : vector<1x256xf32>
    %c0_93 = arith.constant 0 : index
    %c0_94 = arith.constant 0 : index
    %176 = vector.load %arg8[%c0_93, %c0_94] : memref<1x256xf32, #tpu.memory_space<vmem>>, vector<1x256xf32>
    %177 = arith.mulf %175, %175 : vector<1x256xf32>
    %cst_95 = arith.constant dense<0.000000e+00> : vector<1xf32>
    %178 = vector.multi_reduction <add>, %177, %cst_95 [1] : vector<1x256xf32> to vector<1xf32>
    %179 = vector.shape_cast %178 : vector<1xf32> to vector<1x1xf32>
    %cst_96 = arith.constant 2.560000e+02 : f32
    %180 = vector.broadcast %cst_96 : f32 to vector<1x1xf32>
    %181 = arith.divf %179, %180 : vector<1x1xf32>
    %cst_97 = arith.constant 9.99999997E-7 : f32
    %182 = vector.broadcast %cst_97 : f32 to vector<1x1xf32>
    %183 = arith.addf %181, %182 : vector<1x1xf32>
    %184 = math.rsqrt %183 : vector<1x1xf32>
    %185 = vector.broadcast %184 : vector<1x1xf32> to vector<1x256xf32>
    %186 = arith.mulf %175, %185 : vector<1x256xf32>
    %187 = arith.mulf %186, %176 : vector<1x256xf32>
    %c0_98 = arith.constant 0 : index
    %c0_99 = arith.constant 0 : index
    %188 = vector.load %arg13[%c0_98, %c0_99] : memref<1x256xf32, #tpu.memory_space<vmem>>, vector<1x256xf32>
    tpu.vector_store %arg13[%c0_98, %c0_99], %187 {strides = array<i32>} : memref<1x256xf32, #tpu.memory_space<vmem>>, vector<1x256xf32>,
    return
  }
}

</mosaic_0001>

<llo_original>
// kernel: tpu_custom_call.1
$region0: #{tpu_custom_call.1}
  #allocation0 [shape = 'u32[]', space=smem, size = 0x4, offset = 0x4, fixed_abs, tag = 'smem constant byte address 0x4 - core index']
  #allocation1 [shape = 'u32[72,128]{1,0:T(1,128)}', space=vmem, size = 0x9000, scoped, tag = 'internal scratch']
  #allocation2 [shape = 'bf16[256,1024]{1,0:T(8,128)(2,1)}', space=vmem, size = 0x80000, scoped, tag = 'scratch operand']
  #allocation3 [shape = 'bf16[512,256]{1,0:T(8,128)(2,1)}', space=vmem, size = 0x40000, scoped, tag = 'scratch operand']
  #allocation4 [shape = 's32[2]{0}', space=sflag, size = 0x8, scoped, tag = 'scratch operand']
  #allocation23 [shape = 's32[]', space=sflag, size = 0x4, offset = 0, fixed_abs, tag = 'sflag constant byte address 0x0 - dummy sync flag']
  #allocation24 [shape = 's32[]', space=sflag, size = 0x4, offset = 0, fixed_abs, tag = 'sflag constant byte address 0x0 - dummy sync flag']
  #allocation25 [shape = 'u32[]', space=smem, size = 0x4, offset = 0x44, fixed_abs, tag = 'smem constant byte address 0x44 - assertion arg 0']
  #allocation26 [shape = 'u32[]', space=smem, size = 0x4, offset = 0x48, fixed_abs, tag = 'smem constant byte address 0x48 - assertion arg 1']
  #allocation27 [shape = 's32[]', space=sflag, size = 0x4, offset = 0, fixed_abs, tag = 'sflag constant byte address 0x0 - dummy sync flag']
  #allocation28 [shape = 's32[]', space=sflag, size = 0x4, offset = 0, fixed_abs, tag = 'sflag constant byte address 0x0 - dummy sync flag']
  %s0 = inlined_call_operand.hbm [shape: f32[8,256], index: 0, kind: input, shape index: {}]
  %s1 = inlined_call_operand.hbm [shape: f32[1,16], index: 1, kind: input, shape index: {}]
  %s2 = inlined_call_operand.hbm [shape: f32[8,128], index: 2, kind: input, shape index: {}]
  %s3 = inlined_call_operand.hbm [shape: f32[8,128], index: 3, kind: input, shape index: {}]
  %s4 = inlined_call_operand.hbm [shape: f32[2,8,128], index: 4, kind: input, shape index: {}]
  %s5 = inlined_call_operand.hbm [shape: f32[2,8,128], index: 5, kind: input, shape index: {}]
  %s6 = inlined_call_operand.vmem [shape: f32[1,256], index: 6, kind: input, shape index: {}]
  %s7 = inlined_call_operand.vmem [shape: f32[1,256], index: 7, kind: input, shape index: {}]
  %s8 = inlined_call_operand.vmem [shape: f32[1,256], index: 8, kind: input, shape index: {}]
  %s9 = inlined_call_operand.hbm [shape: bf16[256,768], index: 9, kind: input, shape index: {}]
  %s10 = inlined_call_operand.hbm [shape: bf16[256,256], index: 10, kind: input, shape index: {}]
  %s11 = inlined_call_operand.hbm [shape: bf16[256,1024], index: 11, kind: input, shape index: {}]
  %s12 = inlined_call_operand.hbm [shape: bf16[512,256], index: 12, kind: input, shape index: {}]
  %s13 = inlined_call_operand.hbm [shape: f32[1,256], index: 13, kind: output, shape index: {0}]
  %s14 = inlined_call_operand.hbm [shape: f32[2,16,128], index: 14, kind: output, shape index: {1}]
  %s15 = inlined_call_operand.hbm [shape: f32[2,16,128], index: 15, kind: output, shape index: {2}]
  %16 = xla_tuple %s13, %s14, %s15
  %s17 = sld [smem:[#allocation0]]
  $region110: #{tpu_custom_call.1} parent=0
    _
  %s19 = ssub.s32 1, %s17
  %s20 = scalar_select 0, %s19, %s17
  $region1: #{tpu_custom_call.1} parent=0
    #allocation5 [shape = 'u8[8192]{0}', space=vmem, size = 0x2000, scoped, tag = 'input window, operand 0, single buffered']
    #allocation6 [shape = 's32[1]{0}', space=sflag, size = 0x4, scoped, tag = 'scoped memory for tpu_custom_call.1']
    #allocation7 [shape = 's32[1]{0}', space=sflag, size = 0x4, scoped, tag = 'scoped memory for tpu_custom_call.1']
    #allocation8 [shape = 'u8[512]{0}', space=vmem, size = 0x400, scoped, tag = 'input window, operand 1, single buffered']
    #allocation9 [shape = 's32[1]{0}', space=sflag, size = 0x4, scoped, tag = 'scoped memory for tpu_custom_call.1']
    #allocation10 [shape = 'u8[4096]{0}', space=vmem, size = 0x1000, scoped, tag = 'input window, operand 2, single buffered']
    #allocation11 [shape = 'u8[4096]{0}', space=vmem, size = 0x1000, scoped, tag = 'input window, operand 3, single buffered']
    #allocation12 [shape = 's32[1]{0}', space=sflag, size = 0x4, scoped, tag = 'scoped memory for tpu_custom_call.1']
    #allocation13 [shape = 'u8[8192]{0}', space=vmem, size = 0x2000, scoped, tag = 'input window, operand 4, single buffered']
    #allocation14 [shape = 'u8[8192]{0}', space=vmem, size = 0x2000, scoped, tag = 'input window, operand 5, single buffered']
    #allocation15 [shape = 's32[1]{0}', space=sflag, size = 0x4, scoped, tag = 'scoped memory for tpu_custom_call.1']
    #allocation16 [shape = 'u8[393216]{0}', space=vmem, size = 0x60000, scoped, tag = 'input window, operand 9, single buffered']
    #allocation17 [shape = 'u8[131072]{0}', space=vmem, size = 0x20000, scoped, tag = 'input window, operand 10, single buffered']
    #allocation18 [shape = 's32[1]{0}', space=sflag, size = 0x4, scoped, tag = 'scoped memory for tpu_custom_call.1']
    #allocation19 [shape = 'u8[1024]{0}', space=vmem, size = 0x400, scoped, tag = 'output window, operand 0, single buffered']
    #allocation20 [shape = 'u8[16384]{0}', space=vmem, size = 0x4000, scoped, tag = 'output window, operand 1, single buffered']
    #allocation21 [shape = 's32[1]{0}', space=sflag, size = 0x4, scoped, tag = 'scoped memory for tpu_custom_call.1']
    #allocation22 [shape = 'u8[16384]{0}', space=vmem, size = 0x4000, scoped, tag = 'output window, operand 2, single buffered']
    %21 = vsyncpa [#allocation6], 0
    %22 = vsyncpa [#allocation9], 0
    %23 = vsyncpa [#allocation12], 0
    %24 = vsyncpa [#allocation15], 0
    %25 = vsyncpa [#allocation18], 0
    %26 = vsyncpa [#allocation7], 0
    %27 = vsyncpa [#allocation21], 0
    // Predicated region
    $region2: #{tpu_custom_call.1} parent=1 // pred_check
      _
    $region3: #{tpu_custom_call.1} parent=1 // pred_check_branch
      %29 = sbr.rel (0) target = $region5
    $region4: #{tpu_custom_call.1} parent=1 // pred_region
      %31 = vsyncadd [#allocation6], 0
      %s33 = sshll.u32 %s0, 4
      %s34 = int_to_ptr.hbm [resolvable:$true] %s33
      %s35 = sshll.u32 [#allocation5], 4
      %s36 = int_to_ptr.vmem [resolvable:$true] %s35
      %38 = dma.hbm_to_vmem [thread:$0]  %s34, 256, %s36, [#allocation6]
    $region5: #{tpu_custom_call.1} parent=1 // pred_fallthru
      _
    // Predicated region
    $region6: #{tpu_custom_call.1} parent=1 // pred_check
      _
    $region7: #{tpu_custom_call.1} parent=1 // pred_check_branch
      %40 = sbr.rel (0) target = $region9
    $region8: #{tpu_custom_call.1} parent=1 // pred_region
      %42 = vsyncadd [#allocation9], 0
      %s44 = sshll.u32 %s1, 4
      %s45 = int_to_ptr.hbm [resolvable:$true] %s44
      %s46 = sshll.u32 [#allocation8], 4
      %s47 = int_to_ptr.vmem [resolvable:$true] %s46
      %49 = dma.hbm_to_vmem [thread:$0]  %s45, 16, %s47, [#allocation9]
    $region9: #{tpu_custom_call.1} parent=1 // pred_fallthru
      _
    // Predicated region
    $region10: #{tpu_custom_call.1} parent=1 // pred_check
      _
    $region11: #{tpu_custom_call.1} parent=1 // pred_check_branch
      %51 = sbr.rel (0) target = $region13
    $region12: #{tpu_custom_call.1} parent=1 // pred_region
      %53 = vsyncadd [#allocation9], 0
      %s55 = sshll.u32 %s2, 4
      %s56 = int_to_ptr.hbm [resolvable:$true] %s55
      %s57 = sshll.u32 [#allocation10], 4
      %s58 = int_to_ptr.vmem [resolvable:$true] %s57
      %60 = dma.hbm_to_vmem [thread:$0]  %s56, 128, %s58, [#allocation9]
    $region13: #{tpu_custom_call.1} parent=1 // pred_fallthru
      _
    // Predicated region
    $region14: #{tpu_custom_call.1} parent=1 // pred_check
      _
    $region15: #{tpu_custom_call.1} parent=1 // pred_check_branch
      %62 = sbr.rel (0) target = $region17
    $region16: #{tpu_custom_call.1} parent=1 // pred_region
      %64 = vsyncadd [#allocation12], 0
      %s66 = sshll.u32 %s3, 4
      %s67 = int_to_ptr.hbm [resolvable:$true] %s66
      %s68 = sshll.u32 [#allocation11], 4
      %s69 = int_to_ptr.vmem [resolvable:$true] %s68
      %71 = dma.hbm_to_vmem [thread:$0]  %s67, 128, %s69, [#allocation12]
    $region17: #{tpu_custom_call.1} parent=1 // pred_fallthru
      _
    // Predicated region
    $region18: #{tpu_custom_call.1} parent=1 // pred_check
      _
    $region19: #{tpu_custom_call.1} parent=1 // pred_check_branch
      %73 = sbr.rel (0) target = $region21
    $region20: #{tpu_custom_call.1} parent=1 // pred_region
      %75 = vsyncadd [#allocation12], 0
      %s76 = sshll.u32 %s4, 4
      %s77 = int_to_ptr.hbm [resolvable:$true] %s76
      %s78 = sshll.u32 [#allocation13], 4
      %s79 = int_to_ptr.vmem [resolvable:$true] %s78
      %84 = dma.hbm_to_vmem [thread:$0]  %s77, 256, %s79, [#allocation12], 128, 128, 8
    $region21: #{tpu_custom_call.1} parent=1 // pred_fallthru
      _
    // Predicated region
    $region22: #{tpu_custom_call.1} parent=1 // pred_check
      _
    $region23: #{tpu_custom_call.1} parent=1 // pred_check_branch
      %86 = sbr.rel (0) target = $region25
    $region24: #{tpu_custom_call.1} parent=1 // pred_region
      %88 = vsyncadd [#allocation15], 0
      %s89 = sshll.u32 %s5, 4
      %s90 = int_to_ptr.hbm [resolvable:$true] %s89
      %s91 = sshll.u32 [#allocation14], 4
      %s92 = int_to_ptr.vmem [resolvable:$true] %s91
      %97 = dma.hbm_to_vmem [thread:$0]  %s90, 256, %s92, [#allocation15], 128, 128, 8
    $region25: #{tpu_custom_call.1} parent=1 // pred_fallthru
      _
    // Predicated region
    $region26: #{tpu_custom_call.1} parent=1 // pred_check
      _
    $region27: #{tpu_custom_call.1} parent=1 // pred_check_branch
      %99 = sbr.rel (0) target = $region29
    $region28: #{tpu_custom_call.1} parent=1 // pred_region
      _
    $region29: #{tpu_custom_call.1} parent=1 // pred_fallthru
      _
    // Predicated region
    $region30: #{tpu_custom_call.1} parent=1 // pred_check
      _
    $region31: #{tpu_custom_call.1} parent=1 // pred_check_branch
      %101 = sbr.rel (0) target = $region33
    $region32: #{tpu_custom_call.1} parent=1 // pred_region
      _
    $region33: #{tpu_custom_call.1} parent=1 // pred_fallthru
      _
    // Predicated region
    $region34: #{tpu_custom_call.1} parent=1 // pred_check
      _
    $region35: #{tpu_custom_call.1} parent=1 // pred_check_branch
      %103 = sbr.rel (0) target = $region37
    $region36: #{tpu_custom_call.1} parent=1 // pred_region
      _
    $region37: #{tpu_custom_call.1} parent=1 // pred_fallthru
      _
    // Predicated region
    $region38: #{tpu_custom_call.1} parent=1 // pred_check
      _
    $region39: #{tpu_custom_call.1} parent=1 // pred_check_branch
      %105 = sbr.rel (0) target = $region41
    $region40: #{tpu_custom_call.1} parent=1 // pred_region
      %107 = vsyncadd [#allocation15], 0
      %s108 = sshll.u32 %s9, 4
      %s109 = int_to_ptr.hbm [resolvable:$true] %s108
      %s110 = sshll.u32 [#allocation16], 4
      %s111 = int_to_ptr.vmem [resolvable:$true] %s110
      %116 = dma.hbm_to_vmem [thread:$0]  %s109, 12288, %s111, [#allocation15], 384, 384, 24
    $region41: #{tpu_custom_call.1} parent=1 // pred_fallthru
      _
    // Predicated region
    $region42: #{tpu_custom_call.1} parent=1 // pred_check
      _
    $region43: #{tpu_custom_call.1} parent=1 // pred_check_branch
      %118 = sbr.rel (0) target = $region45
    $region44: #{tpu_custom_call.1} parent=1 // pred_region
      %120 = vsyncadd [#allocation18], 0
      %s121 = sshll.u32 %s10, 4
      %s122 = int_to_ptr.hbm [resolvable:$true] %s121
      %s123 = sshll.u32 [#allocation17], 4
      %s124 = int_to_ptr.vmem [resolvable:$true] %s123
      %129 = dma.hbm_to_vmem [thread:$0]  %s122, 4096, %s124, [#allocation18], 128, 128, 8
    $region45: #{tpu_custom_call.1} parent=1 // pred_fallthru
      _
    // Predicated region
    $region46: #{tpu_custom_call.1} parent=1 // pred_check
      _
    $region47: #{tpu_custom_call.1} parent=1 // pred_check_branch
      %131 = sbr.rel (0) target = $region49
    $region48: #{tpu_custom_call.1} parent=1 // pred_region
      %133 = dma.done [#allocation6], 256
    $region49: #{tpu_custom_call.1} parent=1 // pred_fallthru
      _
    // Predicated region
    $region50: #{tpu_custom_call.1} parent=1 // pred_check
      _
    $region51: #{tpu_custom_call.1} parent=1 // pred_check_branch
      %135 = sbr.rel (0) target = $region53
    $region52: #{tpu_custom_call.1} parent=1 // pred_region
      %137 = dma.done [#allocation9], 16
    $region53: #{tpu_custom_call.1} parent=1 // pred_fallthru
      _
    // Predicated region
    $region54: #{tpu_custom_call.1} parent=1 // pred_check
      _
    $region55: #{tpu_custom_call.1} parent=1 // pred_check_branch
      %139 = sbr.rel (0) target = $region57
    $region56: #{tpu_custom_call.1} parent=1 // pred_region
      %141 = dma.done [#allocation9], 128
    $region57: #{tpu_custom_call.1} parent=1 // pred_fallthru
      _
    // Predicated region
    $region58: #{tpu_custom_call.1} parent=1 // pred_check
      _
    $region59: #{tpu_custom_call.1} parent=1 // pred_check_branch
      %143 = sbr.rel (0) target = $region61
    $region60: #{tpu_custom_call.1} parent=1 // pred_region
      %145 = dma.done [#allocation12], 128
    $region61: #{tpu_custom_call.1} parent=1 // pred_fallthru
      _
    // Predicated region
    $region62: #{tpu_custom_call.1} parent=1 // pred_check
      _
    $region63: #{tpu_custom_call.1} parent=1 // pred_check_branch
      %147 = sbr.rel (0) target = $region65
    $region64: #{tpu_custom_call.1} parent=1 // pred_region
      %149 = dma.done [#allocation12], 256
    $region65: #{tpu_custom_call.1} parent=1 // pred_fallthru
      _
    // Predicated region
    $region66: #{tpu_custom_call.1} parent=1 // pred_check
      _
    $region67: #{tpu_custom_call.1} parent=1 // pred_check_branch
      %151 = sbr.rel (0) target = $region69
    $region68: #{tpu_custom_call.1} parent=1 // pred_region
      %153 = dma.done [#allocation15], 256
    $region69: #{tpu_custom_call.1} parent=1 // pred_fallthru
      _
    // Predicated region
    $region70: #{tpu_custom_call.1} parent=1 // pred_check
      _
    $region71: #{tpu_custom_call.1} parent=1 // pred_check_branch
      %155 = sbr.rel (0) target = $region73
    $region72: #{tpu_custom_call.1} parent=1 // pred_region
      %157 = dma.done [#allocation15], 12288
    $region73: #{tpu_custom_call.1} parent=1 // pred_fallthru
      _
    // Predicated region
    $region74: #{tpu_custom_call.1} parent=1 // pred_check
      _
    $region75: #{tpu_custom_call.1} parent=1 // pred_check_branch
      %159 = sbr.rel (0) target = $region77
    $region76: #{tpu_custom_call.1} parent=1 // pred_region
      %161 = dma.done [#allocation18], 4096
    $region77: #{tpu_custom_call.1} parent=1 // pred_fallthru
      _
    // Predicated region
    $region78: #{tpu_custom_call.1} parent=1 // pred_check
      _
    $region79: #{tpu_custom_call.1} parent=1 // pred_check_branch
      %164 = sbr.rel target = $region81
    $region80: #{tpu_custom_call.1} parent=1 // pred_region
      %165 = sst [smem:[#allocation25]] [#allocation24]
      %166 = sst [smem:[#allocation26]] [#allocation23]
    $region81: #{tpu_custom_call.1} parent=1 // pred_fallthru
      _
    %168 = shalt.err (0)
    %s170 = sshll.u32 %s11, 4
    %s171 = int_to_ptr.hbm [resolvable:$true] %s170
    %s172 = sshll.u32 [#allocation2], 4
    %s173 = int_to_ptr.vmem [resolvable:$true] %s172
    %175 = dma.hbm_to_vmem [thread:$0]  %s171, 16384, %s173, [#allocation4]
    %s176 = scalar_lea.sflag [#allocation4], 1
    // Predicated region
    $region82: #{tpu_custom_call.1} parent=1 // pred_check
      _
    $region83: #{tpu_custom_call.1} parent=1 // pred_check_branch
      %178 = sbr.rel target = $region85
    $region84: #{tpu_custom_call.1} parent=1 // pred_region
      %179 = sst [smem:[#allocation25]] [#allocation28]
      %180 = sst [smem:[#allocation26]] [#allocation27]
    $region85: #{tpu_custom_call.1} parent=1 // pred_fallthru
      _
    %182 = shalt.err (0)
    %s184 = sshll.u32 %s12, 4
    %s185 = int_to_ptr.hbm [resolvable:$true] %s184
    %s186 = sshll.u32 [#allocation3], 4
    %s187 = int_to_ptr.vmem [resolvable:$true] %s186
    %189 = dma.hbm_to_vmem [thread:$0]  %s185, 8192, %s187, %s176
    %v190 = vld [vmem:[#allocation5] sm:$0xff]
    %v191 = vld [vmem:[#allocation5 + $0x8] sm:$0xff]
    %v192 = vld [vmem:[#allocation10] sm:$0xff]
    %v193 = vld [vmem:[#allocation11] sm:$0xff]
    %v194 = vld [vmem:[#allocation8] sm:$0x1]
    %v195 = vlaneseq
    %v196 = vand.u32 %v195, 127
    %vm197 = vcmp.lt.s32.totalorder %v196, 64
    %v198 = vsel %vm197, -1.0, 1.0
    %v199 = vld [vmem:[%s6] sm:$0x3]
    %v200 = vmul.f32 %v190, %v190
    %v201 = vmul.f32 %v191, %v191
    %v202 = vadd.f32 %v200, %v201
    %203 = vadd.xlane.f32.xlu0 %v202
    %v204 = vpop.xlane.xlu0 %203
    %v205 = vrcp.pop 256.0
    %v206 = vmul.f32 256.0, %v205
    %v207 = vsub.f32 1.0, %v206
    %v208 = vmul.f32 %v205, %v207
    %v209 = vadd.f32 %v205, %v208
    %vm210 = vweird.f32 %v205
    %v211 = vsel %vm210, %v205, %v209
    %v212 = vmul.f32 %v204, %v211
    %v213 = vadd.f32 %v212, 1e-06
    %v214 = vrsqrt.pop %v213
    %v215 = vmul.f32 %v214, %v213
    %v216 = vmul.f32 %v215, %v214
    %v217 = vmul.f32 0.5, %v216
    %v218 = vsub.f32 1.5, %v217
    %v219 = vmul.f32 %v214, %v218
    %vm220 = vweird.f32 %v213
    %vm221 = vweird.f32 %v214
    %vm222 = vmor %vm220, %vm221
    %v223 = vsel %vm222, %v214, %v219
    %v224 = vmul.f32 %v190, %v223
    %v225 = vmul.f32 %v191, %v223
    %v227 = vperm.slane %v199, 0
    %v228 = vperm.slane %v199, 1
    %v231 = vmul.f32 %v224, %v227
    %v232 = vmul.f32 %v225, %v228
    %v233 = vpack.c.bf16 %v231, %v231
    %v234 = vpack.c.bf16 %v232, %v232
    %v235 = vld [vmem:[#allocation16] sm:$0xff]
    %v236 = vld [vmem:[#allocation16 + $0x8] sm:$0xff]
    %v237 = vld [vmem:[#allocation16 + $0x10] sm:$0xff]
    %v238 = vld [vmem:[#allocation16 + $0x18] sm:$0xff]
    %v239 = vld [vmem:[#allocation16 + $0x20] sm:$0xff]
    %v240 = vld [vmem:[#allocation16 + $0x28] sm:$0xff]
    %v241 = vld [vmem:[#allocation16 + $0x30] sm:$0xff]
    %v242 = vld [vmem:[#allocation16 + $0x38] sm:$0xff]
    %v243 = vld [vmem:[#allocation16 + $0x40] sm:$0xff]
    %v244 = vld [vmem:[#allocation16 + $0x48] sm:$0xff]
    %v245 = vld [vmem:[#allocation16 + $0x50] sm:$0xff]
    %v246 = vld [vmem:[#allocation16 + $0x58] sm:$0xff]
    %v247 = vld [vmem:[#allocation16 + $0x60] sm:$0xff]
    %v248 = vld [vmem:[#allocation16 + $0x68] sm:$0xff]
    %v249 = vld [vmem:[#allocation16 + $0x70] sm:$0xff]
    %v250 = vld [vmem:[#allocation16 + $0x78] sm:$0xff]
    %v251 = vld [vmem:[#allocation16 + $0x80] sm:$0xff]
    %v252 = vld [vmem:[#allocation16 + $0x88] sm:$0xff]
    %v253 = vld [vmem:[#allocation16 + $0x90] sm:$0xff]
    %v254 = vld [vmem:[#allocation16 + $0x98] sm:$0xff]
    %v255 = vld [vmem:[#allocation16 + $0xa0] sm:$0xff]
    %v256 = vld [vmem:[#allocation16 + $0xa8] sm:$0xff]
    %v257 = vld [vmem:[#allocation16 + $0xb0] sm:$0xff]
    %v258 = vld [vmem:[#allocation16 + $0xb8] sm:$0xff]
    %v259 = vld [vmem:[#allocation16 + $0xc0] sm:$0xff]
    %v260 = vld [vmem:[#allocation16 + $0xc8] sm:$0xff]
    %v261 = vld [vmem:[#allocation16 + $0xd0] sm:$0xff]
    %v262 = vld [vmem:[#allocation16 + $0xd8] sm:$0xff]
    %v263 = vld [vmem:[#allocation16 + $0xe0] sm:$0xff]
    %v264 = vld [vmem:[#allocation16 + $0xe8] sm:$0xff]
    %v265 = vld [vmem:[#allocation16 + $0xf0] sm:$0xff]
    %v266 = vld [vmem:[#allocation16 + $0xf8] sm:$0xff]
    %v267 = vld [vmem:[#allocation16 + $0x100] sm:$0xff]
    %v268 = vld [vmem:[#allocation16 + $0x108] sm:$0xff]
    %v269 = vld [vmem:[#allocation16 + $0x110] sm:$0xff]
    %v270 = vld [vmem:[#allocation16 + $0x118] sm:$0xff]
    %v271 = vld [vmem:[#allocation16 + $0x120] sm:$0xff]
    %v272 = vld [vmem:[#allocation16 + $0x128] sm:$0xff]
    %v273 = vld [vmem:[#allocation16 + $0x130] sm:$0xff]
    %v274 = vld [vmem:[#allocation16 + $0x138] sm:$0xff]
    %v275 = vld [vmem:[#allocation16 + $0x140] sm:$0xff]
    %v276 = vld [vmem:[#allocation16 + $0x148] sm:$0xff]
    %v277 = vld [vmem:[#allocation16 + $0x150] sm:$0xff]
    %v278 = vld [vmem:[#allocation16 + $0x158] sm:$0xff]
    %v279 = vld [vmem:[#allocation16 + $0x160] sm:$0xff]
    %v280 = vld [vmem:[#allocation16 + $0x168] sm:$0xff]
    %v281 = vld [vmem:[#allocation16 + $0x170] sm:$0xff]
    %v282 = vld [vmem:[#allocation16 + $0x178] sm:$0xff]
    %v283 = vld [vmem:[#allocation16 + $0x180] sm:$0xff]
    %v284 = vld [vmem:[#allocation16 + $0x188] sm:$0xff]
    %v285 = vld [vmem:[#allocation16 + $0x190] sm:$0xff]
    %v286 = vld [vmem:[#allocation16 + $0x198] sm:$0xff]
    %v287 = vld [vmem:[#allocation16 + $0x1a0] sm:$0xff]
    %v288 = vld [vmem:[#allocation16 + $0x1a8] sm:$0xff]
    %v289 = vld [vmem:[#allocation16 + $0x1b0] sm:$0xff]
    %v290 = vld [vmem:[#allocation16 + $0x1b8] sm:$0xff]
    %v291 = vld [vmem:[#allocation16 + $0x1c0] sm:$0xff]
    %v292 = vld [vmem:[#allocation16 + $0x1c8] sm:$0xff]
    %v293 = vld [vmem:[#allocation16 + $0x1d0] sm:$0xff]
    %v294 = vld [vmem:[#allocation16 + $0x1d8] sm:$0xff]
    %v295 = vld [vmem:[#allocation16 + $0x1e0] sm:$0xff]
    %v296 = vld [vmem:[#allocation16 + $0x1e8] sm:$0xff]
    %v297 = vld [vmem:[#allocation16 + $0x1f0] sm:$0xff]
    %v298 = vld [vmem:[#allocation16 + $0x1f8] sm:$0xff]
    %v299 = vld [vmem:[#allocation16 + $0x200] sm:$0xff]
    %v300 = vld [vmem:[#allocation16 + $0x208] sm:$0xff]
    %v301 = vld [vmem:[#allocation16 + $0x210] sm:$0xff]
    %v302 = vld [vmem:[#allocation16 + $0x218] sm:$0xff]
    %v303 = vld [vmem:[#allocation16 + $0x220] sm:$0xff]
    %v304 = vld [vmem:[#allocation16 + $0x228] sm:$0xff]
    %v305 = vld [vmem:[#allocation16 + $0x230] sm:$0xff]
    %v306 = vld [vmem:[#allocation16 + $0x238] sm:$0xff]
    %v307 = vld [vmem:[#allocation16 + $0x240] sm:$0xff]
    %v308 = vld [vmem:[#allocation16 + $0x248] sm:$0xff]
    %v309 = vld [vmem:[#allocation16 + $0x250] sm:$0xff]
    %v310 = vld [vmem:[#allocation16 + $0x258] sm:$0xff]
    %v311 = vld [vmem:[#allocation16 + $0x260] sm:$0xff]
    %v312 = vld [vmem:[#allocation16 + $0x268] sm:$0xff]
    %v313 = vld [vmem:[#allocation16 + $0x270] sm:$0xff]
    %v314 = vld [vmem:[#allocation16 + $0x278] sm:$0xff]
    %v315 = vld [vmem:[#allocation16 + $0x280] sm:$0xff]
    %v316 = vld [vmem:[#allocation16 + $0x288] sm:$0xff]
    %v317 = vld [vmem:[#allocation16 + $0x290] sm:$0xff]
    %v318 = vld [vmem:[#allocation16 + $0x298] sm:$0xff]
    %v319 = vld [vmem:[#allocation16 + $0x2a0] sm:$0xff]
    %v320 = vld [vmem:[#allocation16 + $0x2a8] sm:$0xff]
    %v321 = vld [vmem:[#allocation16 + $0x2b0] sm:$0xff]
    %v322 = vld [vmem:[#allocation16 + $0x2b8] sm:$0xff]
    %v323 = vld [vmem:[#allocation16 + $0x2c0] sm:$0xff]
    %v324 = vld [vmem:[#allocation16 + $0x2c8] sm:$0xff]
    %v325 = vld [vmem:[#allocation16 + $0x2d0] sm:$0xff]
    %v326 = vld [vmem:[#allocation16 + $0x2d8] sm:$0xff]
    %v327 = vld [vmem:[#allocation16 + $0x2e0] sm:$0xff]
    %v328 = vld [vmem:[#allocation16 + $0x2e8] sm:$0xff]
    %v329 = vld [vmem:[#allocation16 + $0x2f0] sm:$0xff]
    %v330 = vld [vmem:[#allocation16 + $0x2f8] sm:$0xff]
    %v427 = vunpack.c.l.b16 %v235
    %v428 = vunpack.c.h.b16 %v235
    %v429 = vunpack.c.l.b16 %v236
    %v430 = vunpack.c.h.b16 %v236
    %v431 = vunpack.c.l.b16 %v237
    %v432 = vunpack.c.h.b16 %v237
    %v433 = vunpack.c.l.b16 %v238
    %v434 = vunpack.c.h.b16 %v238
    %v435 = vunpack.c.l.b16 %v239
    %v436 = vunpack.c.h.b16 %v239
    %v437 = vunpack.c.l.b16 %v240
    %v438 = vunpack.c.h.b16 %v240
    %v439 = vunpack.c.l.b16 %v241
    %v440 = vunpack.c.h.b16 %v241
    %v441 = vunpack.c.l.b16 %v242
    %v442 = vunpack.c.h.b16 %v242
    %v443 = vunpack.c.l.b16 %v243
    %v444 = vunpack.c.h.b16 %v243
    %v445 = vunpack.c.l.b16 %v244
    %v446 = vunpack.c.h.b16 %v244
    %v447 = vunpack.c.l.b16 %v245
    %v448 = vunpack.c.h.b16 %v245
    %v449 = vunpack.c.l.b16 %v246
    %v450 = vunpack.c.h.b16 %v246
    %v451 = vunpack.c.l.b16 %v247
    %v452 = vunpack.c.h.b16 %v247
    %v453 = vunpack.c.l.b16 %v248
    %v454 = vunpack.c.h.b16 %v248
    %v455 = vunpack.c.l.b16 %v249
    %v456 = vunpack.c.h.b16 %v249
    %v457 = vunpack.c.l.b16 %v250
    %v458 = vunpack.c.h.b16 %v250
    %v459 = vunpack.c.l.b16 %v251
    %v460 = vunpack.c.h.b16 %v251
    %v461 = vunpack.c.l.b16 %v252
    %v462 = vunpack.c.h.b16 %v252
    %v463 = vunpack.c.l.b16 %v253
    %v464 = vunpack.c.h.b16 %v253
    %v465 = vunpack.c.l.b16 %v254
    %v466 = vunpack.c.h.b16 %v254
    %v467 = vunpack.c.l.b16 %v255
    %v468 = vunpack.c.h.b16 %v255
    %v469 = vunpack.c.l.b16 %v256
    %v470 = vunpack.c.h.b16 %v256
    %v471 = vunpack.c.l.b16 %v257
    %v472 = vunpack.c.h.b16 %v257
    %v473 = vunpack.c.l.b16 %v258
    %v474 = vunpack.c.h.b16 %v258
    %v475 = vunpack.c.l.b16 %v259
    %v476 = vunpack.c.h.b16 %v259
    %v477 = vunpack.c.l.b16 %v260
    %v478 = vunpack.c.h.b16 %v260
    %v479 = vunpack.c.l.b16 %v261
    %v480 = vunpack.c.h.b16 %v261
    %v481 = vunpack.c.l.b16 %v262
    %v482 = vunpack.c.h.b16 %v262
    %v483 = vunpack.c.l.b16 %v263
    %v484 = vunpack.c.h.b16 %v263
    %v485 = vunpack.c.l.b16 %v264
    %v486 = vunpack.c.h.b16 %v264
    %v487 = vunpack.c.l.b16 %v265
    %v488 = vunpack.c.h.b16 %v265
    %v489 = vunpack.c.l.b16 %v266
    %v490 = vunpack.c.h.b16 %v266
    %v491 = vunpack.c.l.b16 %v267
    %v492 = vunpack.c.h.b16 %v267
    %v493 = vunpack.c.l.b16 %v268
    %v494 = vunpack.c.h.b16 %v268
    %v495 = vunpack.c.l.b16 %v269
    %v496 = vunpack.c.h.b16 %v269
    %v497 = vunpack.c.l.b16 %v270
    %v498 = vunpack.c.h.b16 %v270
    %v499 = vunpack.c.l.b16 %v271
    %v500 = vunpack.c.h.b16 %v271
    %v501 = vunpack.c.l.b16 %v272
    %v502 = vunpack.c.h.b16 %v272
    %v503 = vunpack.c.l.b16 %v273
    %v504 = vunpack.c.h.b16 %v273
    %v505 = vunpack.c.l.b16 %v274
    %v506 = vunpack.c.h.b16 %v274
    %v507 = vunpack.c.l.b16 %v275
    %v508 = vunpack.c.h.b16 %v275
    %v509 = vunpack.c.l.b16 %v276
    %v510 = vunpack.c.h.b16 %v276
    %v511 = vunpack.c.l.b16 %v277
    %v512 = vunpack.c.h.b16 %v277
    %v513 = vunpack.c.l.b16 %v278
    %v514 = vunpack.c.h.b16 %v278
    %v515 = vunpack.c.l.b16 %v279
    %v516 = vunpack.c.h.b16 %v279
    %v517 = vunpack.c.l.b16 %v280
    %v518 = vunpack.c.h.b16 %v280
    %v519 = vunpack.c.l.b16 %v281
    %v520 = vunpack.c.h.b16 %v281
    %v521 = vunpack.c.l.b16 %v282
    %v522 = vunpack.c.h.b16 %v282
    %v523 = vunpack.c.l.b16 %v283
    %v524 = vunpack.c.h.b16 %v283
    %v525 = vunpack.c.l.b16 %v284
    %v526 = vunpack.c.h.b16 %v284
    %v527 = vunpack.c.l.b16 %v285
    %v528 = vunpack.c.h.b16 %v285
    %v529 = vunpack.c.l.b16 %v286
    %v530 = vunpack.c.h.b16 %v286
    %v531 = vunpack.c.l.b16 %v287
    %v532 = vunpack.c.h.b16 %v287
    %v533 = vunpack.c.l.b16 %v288
    %v534 = vunpack.c.h.b16 %v288
    %v535 = vunpack.c.l.b16 %v289
    %v536 = vunpack.c.h.b16 %v289
    %v537 = vunpack.c.l.b16 %v290
    %v538 = vunpack.c.h.b16 %v290
    %v539 = vunpack.c.l.b16 %v291
    %v540 = vunpack.c.h.b16 %v291
    %v541 = vunpack.c.l.b16 %v292
    %v542 = vunpack.c.h.b16 %v292
    %v543 = vunpack.c.l.b16 %v293
    %v544 = vunpack.c.h.b16 %v293
    %v545 = vunpack.c.l.b16 %v294
    %v546 = vunpack.c.h.b16 %v294
    %v547 = vunpack.c.l.b16 %v295
    %v548 = vunpack.c.h.b16 %v295
    %v549 = vunpack.c.l.b16 %v296
    %v550 = vunpack.c.h.b16 %v296
    %v551 = vunpack.c.l.b16 %v297
    %v552 = vunpack.c.h.b16 %v297
    %v553 = vunpack.c.l.b16 %v298
    %v554 = vunpack.c.h.b16 %v298
    %v555 = vunpack.c.l.b16 %v299
    %v556 = vunpack.c.h.b16 %v299
    %v557 = vunpack.c.l.b16 %v300
    %v558 = vunpack.c.h.b16 %v300
    %v559 = vunpack.c.l.b16 %v301
    %v560 = vunpack.c.h.b16 %v301
    %v561 = vunpack.c.l.b16 %v302
    %v562 = vunpack.c.h.b16 %v302
    %v563 = vunpack.c.l.b16 %v303
    %v564 = vunpack.c.h.b16 %v303
    %v565 = vunpack.c.l.b16 %v304
    %v566 = vunpack.c.h.b16 %v304
    %v567 = vunpack.c.l.b16 %v305
    %v568 = vunpack.c.h.b16 %v305
    %v569 = vunpack.c.l.b16 %v306
    %v570 = vunpack.c.h.b16 %v306
    %v571 = vunpack.c.l.b16 %v307
    %v572 = vunpack.c.h.b16 %v307
    %v573 = vunpack.c.l.b16 %v308
    %v574 = vunpack.c.h.b16 %v308
    %v575 = vunpack.c.l.b16 %v309
    %v576 = vunpack.c.h.b16 %v309
    %v577 = vunpack.c.l.b16 %v310
    %v578 = vunpack.c.h.b16 %v310
    %v579 = vunpack.c.l.b16 %v311
    %v580 = vunpack.c.h.b16 %v311
    %v581 = vunpack.c.l.b16 %v312
    %v582 = vunpack.c.h.b16 %v312
    %v583 = vunpack.c.l.b16 %v313
    %v584 = vunpack.c.h.b16 %v313
    %v585 = vunpack.c.l.b16 %v314
    %v586 = vunpack.c.h.b16 %v314
    %v587 = vunpack.c.l.b16 %v315
    %v588 = vunpack.c.h.b16 %v315
    %v589 = vunpack.c.l.b16 %v316
    %v590 = vunpack.c.h.b16 %v316
    %v591 = vunpack.c.l.b16 %v317
    %v592 = vunpack.c.h.b16 %v317
    %v593 = vunpack.c.l.b16 %v318
    %v594 = vunpack.c.h.b16 %v318
    %v595 = vunpack.c.l.b16 %v319
    %v596 = vunpack.c.h.b16 %v319
    %v597 = vunpack.c.l.b16 %v320
    %v598 = vunpack.c.h.b16 %v320
    %v599 = vunpack.c.l.b16 %v321
    %v600 = vunpack.c.h.b16 %v321
    %v601 = vunpack.c.l.b16 %v322
    %v602 = vunpack.c.h.b16 %v322
    %v603 = vunpack.c.l.b16 %v323
    %v604 = vunpack.c.h.b16 %v323
    %v605 = vunpack.c.l.b16 %v324
    %v606 = vunpack.c.h.b16 %v324
    %v607 = vunpack.c.l.b16 %v325
    %v608 = vunpack.c.h.b16 %v325
    %v609 = vunpack.c.l.b16 %v326
    %v610 = vunpack.c.h.b16 %v326
    %v611 = vunpack.c.l.b16 %v327
    %v612 = vunpack.c.h.b16 %v327
    %v613 = vunpack.c.l.b16 %v328
    %v614 = vunpack.c.h.b16 %v328
    %v615 = vunpack.c.l.b16 %v329
    %v616 = vunpack.c.h.b16 %v329
    %v617 = vunpack.c.l.b16 %v330
    %v618 = vunpack.c.h.b16 %v330
    %v619 = vpack.c.b16 %v433, %v427
    %v620 = vpack.c.b16 %v434, %v428
    %v621 = vpack.c.b16 %v435, %v429
    %v622 = vpack.c.b16 %v436, %v430
    %v623 = vpack.c.b16 %v437, %v431
    %v624 = vpack.c.b16 %v438, %v432
    %v625 = vpack.c.b16 %v445, %v439
    %v626 = vpack.c.b16 %v446, %v440
    %v627 = vpack.c.b16 %v447, %v441
    %v628 = vpack.c.b16 %v448, %v442
    %v629 = vpack.c.b16 %v449, %v443
    %v630 = vpack.c.b16 %v450, %v444
    %v631 = vpack.c.b16 %v457, %v451
    %v632 = vpack.c.b16 %v458, %v452
    %v633 = vpack.c.b16 %v459, %v453
    %v634 = vpack.c.b16 %v460, %v454
    %v635 = vpack.c.b16 %v461, %v455
    %v636 = vpack.c.b16 %v462, %v456
    %v637 = vpack.c.b16 %v469, %v463
    %v638 = vpack.c.b16 %v470, %v464
    %v639 = vpack.c.b16 %v471, %v465
    %v640 = vpack.c.b16 %v472, %v466
    %v641 = vpack.c.b16 %v473, %v467
    %v642 = vpack.c.b16 %v474, %v468
    %v643 = vpack.c.b16 %v481, %v475
    %v644 = vpack.c.b16 %v482, %v476
    %v645 = vpack.c.b16 %v483, %v477
    %v646 = vpack.c.b16 %v484, %v478
    %v647 = vpack.c.b16 %v485, %v479
    %v648 = vpack.c.b16 %v486, %v480
    %v649 = vpack.c.b16 %v493, %v487
    %v650 = vpack.c.b16 %v494, %v488
    %v651 = vpack.c.b16 %v495, %v489
    %v652 = vpack.c.b16 %v496, %v490
    %v653 = vpack.c.b16 %v497, %v491
    %v654 = vpack.c.b16 %v498, %v492
    %v655 = vpack.c.b16 %v505, %v499
    %v656 = vpack.c.b16 %v506, %v500
    %v657 = vpack.c.b16 %v507, %v501
    %v658 = vpack.c.b16 %v508, %v502
    %v659 = vpack.c.b16 %v509, %v503
    %v660 = vpack.c.b16 %v510, %v504
    %v661 = vpack.c.b16 %v517, %v511
    %v662 = vpack.c.b16 %v518, %v512
    %v663 = vpack.c.b16 %v519, %v513
    %v664 = vpack.c.b16 %v520, %v514
    %v665 = vpack.c.b16 %v521, %v515
    %v666 = vpack.c.b16 %v522, %v516
    %v667 = vpack.c.b16 %v529, %v523
    %v668 = vpack.c.b16 %v530, %v524
    %v669 = vpack.c.b16 %v531, %v525
    %v670 = vpack.c.b16 %v532, %v526
    %v671 = vpack.c.b16 %v533, %v527
    %v672 = vpack.c.b16 %v534, %v528
    %v673 = vpack.c.b16 %v541, %v535
    %v674 = vpack.c.b16 %v542, %v536
    %v675 = vpack.c.b16 %v543, %v537
    %v676 = vpack.c.b16 %v544, %v538
    %v677 = vpack.c.b16 %v545, %v539
    %v678 = vpack.c.b16 %v546, %v540
    %v679 = vpack.c.b16 %v553, %v547
    %v680 = vpack.c.b16 %v554, %v548
    %v681 = vpack.c.b16 %v555, %v549
    %v682 = vpack.c.b16 %v556, %v550
    %v683 = vpack.c.b16 %v557, %v551
    %v684 = vpack.c.b16 %v558, %v552
    %v685 = vpack.c.b16 %v565, %v559
    %v686 = vpack.c.b16 %v566, %v560
    %v687 = vpack.c.b16 %v567, %v561
    %v688 = vpack.c.b16 %v568, %v562
    %v689 = vpack.c.b16 %v569, %v563
    %v690 = vpack.c.b16 %v570, %v564
    %v691 = vpack.c.b16 %v577, %v571
    %v692 = vpack.c.b16 %v578, %v572
    %v693 = vpack.c.b16 %v579, %v573
    %v694 = vpack.c.b16 %v580, %v574
    %v695 = vpack.c.b16 %v581, %v575
    %v696 = vpack.c.b16 %v582, %v576
    %v697 = vpack.c.b16 %v589, %v583
    %v698 = vpack.c.b16 %v590, %v584
    %v699 = vpack.c.b16 %v591, %v585
    %v700 = vpack.c.b16 %v592, %v586
    %v701 = vpack.c.b16 %v593, %v587
    %v702 = vpack.c.b16 %v594, %v588
    %v703 = vpack.c.b16 %v601, %v595
    %v704 = vpack.c.b16 %v602, %v596
    %v705 = vpack.c.b16 %v603, %v597
    %v706 = vpack.c.b16 %v604, %v598
    %v707 = vpack.c.b16 %v605, %v599
    %v708 = vpack.c.b16 %v606, %v600
    %v709 = vpack.c.b16 %v613, %v607
    %v710 = vpack.c.b16 %v614, %v608
    %v711 = vpack.c.b16 %v615, %v609
    %v712 = vpack.c.b16 %v616, %v610
    %v713 = vpack.c.b16 %v617, %v611
    %v714 = vpack.c.b16 %v618, %v612
    %811 = vmatpush.bf16.msra.mxu0 %v661
    %812 = vmatpush.bf16.msra.mxu0 %v655
    %813 = vmatpush.bf16.msra.mxu0 %v649
    %814 = vmatpush.bf16.msra.mxu0 %v643
    %815 = vmatpush.bf16.msra.mxu0 %v637
    %816 = vmatpush.bf16.msra.mxu0 %v631
    %817 = vmatpush.bf16.msra.mxu0 %v625
    %818 = vmatpush.bf16.msra.mxu0 %v619
    %819 = vmatmul.bf16.gmra.mxu0 %v233
    %v820 = vpop.f32.mrf.mxu0
    %v821 = vadd.f32 0.0, %v820
    %v822 = vpop.f32.mrf.mxu0
    %823 = vdwg.mxu0
    %824 = vmatpush.bf16.msra.mxu0 %v709
    %825 = vmatpush.bf16.msra.mxu0 %v703
    %826 = vmatpush.bf16.msra.mxu0 %v697
    %827 = vmatpush.bf16.msra.mxu0 %v691
    %828 = vmatpush.bf16.msra.mxu0 %v685
    %829 = vmatpush.bf16.msra.mxu0 %v679
    %830 = vmatpush.bf16.msra.mxu0 %v673
    %831 = vmatpush.bf16.msra.mxu0 %v667
    %832 = vmatmul.bf16.gmra.mxu0 %v234
    %v833 = vpop.f32.mrf.mxu0
    %v834 = vadd.f32 %v821, %v833
    %v835 = vpop.f32.mrf.mxu0
    %836 = vdwg.mxu0
    %837 = vmatpush.bf16.msra.mxu0 %v662
    %838 = vmatpush.bf16.msra.mxu0 %v656
    %839 = vmatpush.bf16.msra.mxu0 %v650
    %840 = vmatpush.bf16.msra.mxu0 %v644
    %841 = vmatpush.bf16.msra.mxu0 %v638
    %842 = vmatpush.bf16.msra.mxu0 %v632
    %843 = vmatpush.bf16.msra.mxu0 %v626
    %844 = vmatpush.bf16.msra.mxu0 %v620
    %845 = vmatmul.bf16.gmra.mxu0 %v233
    %v846 = vpop.f32.mrf.mxu0
    %v847 = vadd.f32 0.0, %v846
    %v848 = vpop.f32.mrf.mxu0
    %849 = vdwg.mxu0
    %850 = vmatpush.bf16.msra.mxu0 %v710
    %851 = vmatpush.bf16.msra.mxu0 %v704
    %852 = vmatpush.bf16.msra.mxu0 %v698
    %853 = vmatpush.bf16.msra.mxu0 %v692
    %854 = vmatpush.bf16.msra.mxu0 %v686
    %855 = vmatpush.bf16.msra.mxu0 %v680
    %856 = vmatpush.bf16.msra.mxu0 %v674
    %857 = vmatpush.bf16.msra.mxu0 %v668
    %858 = vmatmul.bf16.gmra.mxu0 %v234
    %v859 = vpop.f32.mrf.mxu0
    %v860 = vadd.f32 %v847, %v859
    %v861 = vpop.f32.mrf.mxu0
    %862 = vdwg.mxu0
    %863 = vmatpush.bf16.msra.mxu0 %v663
    %864 = vmatpush.bf16.msra.mxu0 %v657
    %865 = vmatpush.bf16.msra.mxu0 %v651
    %866 = vmatpush.bf16.msra.mxu0 %v645
    %867 = vmatpush.bf16.msra.mxu0 %v639
    %868 = vmatpush.bf16.msra.mxu0 %v633
    %869 = vmatpush.bf16.msra.mxu0 %v627
    %870 = vmatpush.bf16.msra.mxu0 %v621
    %871 = vmatmul.bf16.gmra.mxu0 %v233
    %v872 = vpop.f32.mrf.mxu0
    %v873 = vadd.f32 0.0, %v872
    %v874 = vpop.f32.mrf.mxu0
    %875 = vdwg.mxu0
    %876 = vmatpush.bf16.msra.mxu0 %v711
    %877 = vmatpush.bf16.msra.mxu0 %v705
    %878 = vmatpush.bf16.msra.mxu0 %v699
    %879 = vmatpush.bf16.msra.mxu0 %v693
    %880 = vmatpush.bf16.msra.mxu0 %v687
    %881 = vmatpush.bf16.msra.mxu0 %v681
    %882 = vmatpush.bf16.msra.mxu0 %v675
    %883 = vmatpush.bf16.msra.mxu0 %v669
    %884 = vmatmul.bf16.gmra.mxu0 %v234
    %v885 = vpop.f32.mrf.mxu0
    %v886 = vadd.f32 %v873, %v885
    %v887 = vpop.f32.mrf.mxu0
    %888 = vdwg.mxu0
    %889 = vmatpush.bf16.msra.mxu0 %v664
    %890 = vmatpush.bf16.msra.mxu0 %v658
    %891 = vmatpush.bf16.msra.mxu0 %v652
    %892 = vmatpush.bf16.msra.mxu0 %v646
    %893 = vmatpush.bf16.msra.mxu0 %v640
    %894 = vmatpush.bf16.msra.mxu0 %v634
    %895 = vmatpush.bf16.msra.mxu0 %v628
    %896 = vmatpush.bf16.msra.mxu0 %v622
    %897 = vmatmul.bf16.gmra.mxu0 %v233
    %v898 = vpop.f32.mrf.mxu0
    %v899 = vadd.f32 0.0, %v898
    %v900 = vpop.f32.mrf.mxu0
    %901 = vdwg.mxu0
    %902 = vmatpush.bf16.msra.mxu0 %v712
    %903 = vmatpush.bf16.msra.mxu0 %v706
    %904 = vmatpush.bf16.msra.mxu0 %v700
    %905 = vmatpush.bf16.msra.mxu0 %v694
    %906 = vmatpush.bf16.msra.mxu0 %v688
    %907 = vmatpush.bf16.msra.mxu0 %v682
    %908 = vmatpush.bf16.msra.mxu0 %v676
    %909 = vmatpush.bf16.msra.mxu0 %v670
    %910 = vmatmul.bf16.gmra.mxu0 %v234
    %v911 = vpop.f32.mrf.mxu0
    %v912 = vadd.f32 %v899, %v911
    %v913 = vpop.f32.mrf.mxu0
    %914 = vdwg.mxu0
    %915 = vmatpush.bf16.msra.mxu0 %v665
    %916 = vmatpush.bf16.msra.mxu0 %v659
    %917 = vmatpush.bf16.msra.mxu0 %v653
    %918 = vmatpush.bf16.msra.mxu0 %v647
    %919 = vmatpush.bf16.msra.mxu0 %v641
    %920 = vmatpush.bf16.msra.mxu0 %v635
    %921 = vmatpush.bf16.msra.mxu0 %v629
    %922 = vmatpush.bf16.msra.mxu0 %v623
    %923 = vmatmul.bf16.gmra.mxu0 %v233
    %v924 = vpop.f32.mrf.mxu0
    %v925 = vadd.f32 0.0, %v924
    %v926 = vpop.f32.mrf.mxu0
    %927 = vdwg.mxu0
    %928 = vmatpush.bf16.msra.mxu0 %v713
    %929 = vmatpush.bf16.msra.mxu0 %v707
    %930 = vmatpush.bf16.msra.mxu0 %v701
    %931 = vmatpush.bf16.msra.mxu0 %v695
    %932 = vmatpush.bf16.msra.mxu0 %v689
    %933 = vmatpush.bf16.msra.mxu0 %v683
    %934 = vmatpush.bf16.msra.mxu0 %v677
    %935 = vmatpush.bf16.msra.mxu0 %v671
    %936 = vmatmul.bf16.gmra.mxu0 %v234
    %v937 = vpop.f32.mrf.mxu0
    %v938 = vadd.f32 %v925, %v937
    %v939 = vpop.f32.mrf.mxu0
    %940 = vdwg.mxu0
    %941 = vmatpush.bf16.msra.mxu0 %v666
    %942 = vmatpush.bf16.msra.mxu0 %v660
    %943 = vmatpush.bf16.msra.mxu0 %v654
    %944 = vmatpush.bf16.msra.mxu0 %v648
    %945 = vmatpush.bf16.msra.mxu0 %v642
    %946 = vmatpush.bf16.msra.mxu0 %v636
    %947 = vmatpush.bf16.msra.mxu0 %v630
    %948 = vmatpush.bf16.msra.mxu0 %v624
    %949 = vmatmul.bf16.gmra.mxu0 %v233
    %v950 = vpop.f32.mrf.mxu0
    %v951 = vadd.f32 0.0, %v950
    %v952 = vpop.f32.mrf.mxu0
    %953 = vdwg.mxu0
    %954 = vmatpush.bf16.msra.mxu0 %v714
    %955 = vmatpush.bf16.msra.mxu0 %v708
    %956 = vmatpush.bf16.msra.mxu0 %v702
    %957 = vmatpush.bf16.msra.mxu0 %v696
    %958 = vmatpush.bf16.msra.mxu0 %v690
    %959 = vmatpush.bf16.msra.mxu0 %v684
    %960 = vmatpush.bf16.msra.mxu0 %v678
    %961 = vmatpush.bf16.msra.mxu0 %v672
    %962 = vmatmul.bf16.gmra.mxu0 %v234
    %v963 = vpop.f32.mrf.mxu0
    %v964 = vadd.f32 %v951, %v963
    %v965 = vpop.f32.mrf.mxu0
    %966 = vdwg.mxu0
    %v967 = vmul.f32 %v886, %v192
    %968 = vrot.lane.b32.xlu0 %v886, 64
    %v969 = vpop.permute.xlu0 %968
    %v970 = vmul.f32 %v969, %v198
    %v971 = vmul.f32 %v970, %v193
    %v972 = vadd.f32 %v967, %v971
    %v973 = vld [vmem:[#allocation13] sm:$0xff]
    %974 = vst [vmem:[#allocation20] sm:$0xff] %v973
    %v975 = vld [vmem:[#allocation14] sm:$0xff]
    %976 = vst [vmem:[#allocation22] sm:$0xff] %v975
    %977 = vst [vmem:[#allocation20 + $0x8] sm:$0xff] %v972
    %978 = vst [vmem:[#allocation22 + $0x8] sm:$0xff] %v938
    %v979 = vmul.f32 %v834, %v192
    %v981 = vrot.slane %v834, 7
    %983 = vrot.lane.b32.xlu0 %v981, 64
    %v984 = vpop.permute.xlu0 %983
    %v985 = vmul.f32 %v984, %v198
    %v987 = vrot.slane %v193, 7
    %v989 = vmul.f32 %v985, %v987
    %v991 = vrot.slane %v989, 1
    %v993 = vadd.f32 %v979, %v991
    %v994 = vld [vmem:[#allocation20] sm:$0xff]
    %v995 = vld [vmem:[#allocation20 + $0x8] sm:$0xff]
    %v996 = vld [vmem:[#allocation22] sm:$0xff]
    %v997 = vld [vmem:[#allocation22 + $0x8] sm:$0xff]
    %v998 = vpack.c.bf16 %v993, %v993
    %v999 = vpack.c.bf16 %v995, %v994
    %v1001 = vshrl.u32 %v998, 16
    %v1003 = vrot.slane %v1001, 3
    %1005 = vmatpush.bf16.xpose.msra.mxu0 0
    %1006 = vmatpush.bf16.xpose.msra.mxu0 0
    %1007 = vmatpush.bf16.xpose.msra.mxu0 0
    %1008 = vmatpush.bf16.xpose.msra.mxu0 0
    %1009 = vmatpush.bf16.xpose.msra.mxu0 0
    %1010 = vmatpush.bf16.xpose.msra.mxu0 0
    %1011 = vmatpush.bf16.xpose.msra.mxu0 0
    %1012 = vmatpush.bf16.xpose.msra.mxu0 %v999
    %1013 = vmatmul.bf16.gmra.mxu0 %v1003
    %v1014 = vpop.f32.mrf.mxu0
    %v1015 = vadd.f32 0.0, %v1014
    %v1016 = vpop.f32.mrf.mxu0
    %1017 = vdwg.mxu0
    %v1018 = vmul.f32 %v1015, 0.088388346
    %v1019 = vadd.f32 %v1018, %v194
    %vm1020 = vcmask 122880
    %v1021 = vsel %vm1020, %v1019, -inf
    %1022 = vmax.xlane.f32.xlu0 %v1021
    %v1023 = vpop.xlane.xlu0 %1022
    %v1024 = vsub.f32 %v1019, %v1023
    %v1025 = vmul.f32 %v1024, 1.442695
    %v1026 = vpow.pop %v1025
    %v1027 = vsel %vm1020, %v1026, 0.0
    %1028 = vadd.xlane.f32.xlu0 %v1027
    %v1029 = vpop.xlane.xlu0 %1028
    %v1030 = vrcp.pop %v1029
    %v1031 = vmul.f32 %v1026, %v1030
    %v1032 = vpack.c.bf16 %v1031, %v1031
    %v1033 = vpack.c.bf16 %v997, %v996
    %vm1034 = vcmask 130048
    %v1036 = vsel %vm1034, %v1032, 0
    %1038 = vmatpush.bf16.msra.mxu0 0
    %1039 = vmatpush.bf16.msra.mxu0 0
    %1040 = vmatpush.bf16.msra.mxu0 0
    %1041 = vmatpush.bf16.msra.mxu0 0
    %1042 = vmatpush.bf16.msra.mxu0 0
    %1043 = vmatpush.bf16.msra.mxu0 0
    %1044 = vmatpush.bf16.msra.mxu0 0
    %1045 = vmatpush.bf16.msra.mxu0 %v1033
    %1046 = vmatmul.bf16.gmra.mxu0 %v1036
    %v1047 = vpop.f32.mrf.mxu0
    %v1048 = vadd.f32 0.0, %v1047
    %v1049 = vpop.f32.mrf.mxu0
    %1050 = vdwg.mxu0
    %v1051 = vmul.f32 %v912, %v192
    %1052 = vrot.lane.b32.xlu0 %v912, 64
    %v1053 = vpop.permute.xlu0 %1052
    %v1054 = vmul.f32 %v1053, %v198
    %v1055 = vmul.f32 %v1054, %v193
    %v1056 = vadd.f32 %v1051, %v1055
    %s1057 = scalar_lea.vmem [#allocation13], 8
    %v1058 = vld [vmem:[%s1057] sm:$0xff]
    %s1059 = scalar_lea.vmem [#allocation20], 16
    %1060 = vst [vmem:[%s1059] sm:$0xff] %v1058
    %s1061 = scalar_lea.vmem [#allocation14], 8
    %v1062 = vld [vmem:[%s1061] sm:$0xff]
    %s1063 = scalar_lea.vmem [#allocation22], 16
    %1064 = vst [vmem:[%s1063] sm:$0xff] %v1062
    %1065 = vst [vmem:[%s1059 + $0x8] sm:$0xff] %v1056
    %1066 = vst [vmem:[%s1063 + $0x8] sm:$0xff] %v964
    %v1067 = vmul.f32 %v860, %v192
    %v1069 = vrot.slane %v860, 7
    %1071 = vrot.lane.b32.xlu0 %v1069, 64
    %v1072 = vpop.permute.xlu0 %1071
    %v1073 = vmul.f32 %v1072, %v198
    %v1074 = vmul.f32 %v1073, %v987
    %v1076 = vrot.slane %v1074, 1
    %v1078 = vadd.f32 %v1067, %v1076
    %v1079 = vld [vmem:[%s1059] sm:$0xff]
    %v1080 = vld [vmem:[%s1059 + $0x8] sm:$0xff]
    %v1081 = vld [vmem:[%s1063] sm:$0xff]
    %v1082 = vld [vmem:[%s1063 + $0x8] sm:$0xff]
    %v1083 = vpack.c.bf16 %v1078, %v1078
    %v1084 = vpack.c.bf16 %v1080, %v1079
    %v1086 = vshrl.u32 %v1083, 16
    %v1088 = vrot.slane %v1086, 3
    %1090 = vmatpush.bf16.xpose.msra.mxu0 0
    %1091 = vmatpush.bf16.xpose.msra.mxu0 0
    %1092 = vmatpush.bf16.xpose.msra.mxu0 0
    %1093 = vmatpush.bf16.xpose.msra.mxu0 0
    %1094 = vmatpush.bf16.xpose.msra.mxu0 0
    %1095 = vmatpush.bf16.xpose.msra.mxu0 0
    %1096 = vmatpush.bf16.xpose.msra.mxu0 0
    %1097 = vmatpush.bf16.xpose.msra.mxu0 %v1084
    %1098 = vmatmul.bf16.gmra.mxu0 %v1088
    %v1099 = vpop.f32.mrf.mxu0
    %v1100 = vadd.f32 0.0, %v1099
    %v1101 = vpop.f32.mrf.mxu0
    %1102 = vdwg.mxu0
    %v1103 = vmul.f32 %v1100, 0.088388346
    %v1104 = vadd.f32 %v1103, %v194
    %v1105 = vsel %vm1020, %v1104, -inf
    %1106 = vmax.xlane.f32.xlu0 %v1105
    %v1107 = vpop.xlane.xlu0 %1106
    %v1108 = vsub.f32 %v1104, %v1107
    %v1109 = vmul.f32 %v1108, 1.442695
    %v1110 = vpow.pop %v1109
    %v1111 = vsel %vm1020, %v1110, 0.0
    %1112 = vadd.xlane.f32.xlu0 %v1111
    %v1113 = vpop.xlane.xlu0 %1112
    %v1114 = vrcp.pop %v1113
    %v1115 = vmul.f32 %v1110, %v1114
    %v1116 = vpack.c.bf16 %v1115, %v1115
    %v1117 = vpack.c.bf16 %v1082, %v1081
    %v1119 = vsel %vm1034, %v1116, 0
    %1121 = vmatpush.bf16.msra.mxu0 0
    %1122 = vmatpush.bf16.msra.mxu0 0
    %1123 = vmatpush.bf16.msra.mxu0 0
    %1124 = vmatpush.bf16.msra.mxu0 0
    %1125 = vmatpush.bf16.msra.mxu0 0
    %1126 = vmatpush.bf16.msra.mxu0 0
    %1127 = vmatpush.bf16.msra.mxu0 0
    %1128 = vmatpush.bf16.msra.mxu0 %v1117
    %1129 = vmatmul.bf16.gmra.mxu0 %v1119
    %v1130 = vpop.f32.mrf.mxu0
    %v1131 = vadd.f32 0.0, %v1130
    %v1132 = vpop.f32.mrf.mxu0
    %1133 = vdwg.mxu0
    %v1134 = vpack.c.bf16 %v1048, %v1048
    %v1135 = vpack.c.bf16 %v1131, %v1131
    %v1136 = vld [vmem:[#allocation17] sm:$0xff]
    %v1137 = vld [vmem:[#allocation17 + $0x8] sm:$0xff]
    %v1138 = vld [vmem:[#allocation17 + $0x10] sm:$0xff]
    %v1139 = vld [vmem:[#allocation17 + $0x18] sm:$0xff]
    %v1140 = vld [vmem:[#allocation17 + $0x20] sm:$0xff]
    %v1141 = vld [vmem:[#allocation17 + $0x28] sm:$0xff]
    %v1142 = vld [vmem:[#allocation17 + $0x30] sm:$0xff]
    %v1143 = vld [vmem:[#allocation17 + $0x38] sm:$0xff]
    %v1144 = vld [vmem:[#allocation17 + $0x40] sm:$0xff]
    %v1145 = vld [vmem:[#allocation17 + $0x48] sm:$0xff]
    %v1146 = vld [vmem:[#allocation17 + $0x50] sm:$0xff]
    %v1147 = vld [vmem:[#allocation17 + $0x58] sm:$0xff]
    %v1148 = vld [vmem:[#allocation17 + $0x60] sm:$0xff]
    %v1149 = vld [vmem:[#allocation17 + $0x68] sm:$0xff]
    %v1150 = vld [vmem:[#allocation17 + $0x70] sm:$0xff]
    %v1151 = vld [vmem:[#allocation17 + $0x78] sm:$0xff]
    %v1152 = vld [vmem:[#allocation17 + $0x80] sm:$0xff]
    %v1153 = vld [vmem:[#allocation17 + $0x88] sm:$0xff]
    %v1154 = vld [vmem:[#allocation17 + $0x90] sm:$0xff]
    %v1155 = vld [vmem:[#allocation17 + $0x98] sm:$0xff]
    %v1156 = vld [vmem:[#allocation17 + $0xa0] sm:$0xff]
    %v1157 = vld [vmem:[#allocation17 + $0xa8] sm:$0xff]
    %v1158 = vld [vmem:[#allocation17 + $0xb0] sm:$0xff]
    %v1159 = vld [vmem:[#allocation17 + $0xb8] sm:$0xff]
    %v1160 = vld [vmem:[#allocation17 + $0xc0] sm:$0xff]
    %v1161 = vld [vmem:[#allocation17 + $0xc8] sm:$0xff]
    %v1162 = vld [vmem:[#allocation17 + $0xd0] sm:$0xff]
    %v1163 = vld [vmem:[#allocation17 + $0xd8] sm:$0xff]
    %v1164 = vld [vmem:[#allocation17 + $0xe0] sm:$0xff]
    %v1165 = vld [vmem:[#allocation17 + $0xe8] sm:$0xff]
    %v1166 = vld [vmem:[#allocation17 + $0xf0] sm:$0xff]
    %v1167 = vld [vmem:[#allocation17 + $0xf8] sm:$0xff]
    %v1200 = vunpack.c.l.b16 %v1136
    %v1201 = vunpack.c.h.b16 %v1136
    %v1202 = vunpack.c.l.b16 %v1137
    %v1203 = vunpack.c.h.b16 %v1137
    %v1204 = vunpack.c.l.b16 %v1138
    %v1205 = vunpack.c.h.b16 %v1138
    %v1206 = vunpack.c.l.b16 %v1139
    %v1207 = vunpack.c.h.b16 %v1139
    %v1208 = vunpack.c.l.b16 %v1140
    %v1209 = vunpack.c.h.b16 %v1140
    %v1210 = vunpack.c.l.b16 %v1141
    %v1211 = vunpack.c.h.b16 %v1141
    %v1212 = vunpack.c.l.b16 %v1142
    %v1213 = vunpack.c.h.b16 %v1142
    %v1214 = vunpack.c.l.b16 %v1143
    %v1215 = vunpack.c.h.b16 %v1143
    %v1216 = vunpack.c.l.b16 %v1144
    %v1217 = vunpack.c.h.b16 %v1144
    %v1218 = vunpack.c.l.b16 %v1145
    %v1219 = vunpack.c.h.b16 %v1145
    %v1220 = vunpack.c.l.b16 %v1146
    %v1221 = vunpack.c.h.b16 %v1146
    %v1222 = vunpack.c.l.b16 %v1147
    %v1223 = vunpack.c.h.b16 %v1147
    %v1224 = vunpack.c.l.b16 %v1148
    %v1225 = vunpack.c.h.b16 %v1148
    %v1226 = vunpack.c.l.b16 %v1149
    %v1227 = vunpack.c.h.b16 %v1149
    %v1228 = vunpack.c.l.b16 %v1150
    %v1229 = vunpack.c.h.b16 %v1150
    %v1230 = vunpack.c.l.b16 %v1151
    %v1231 = vunpack.c.h.b16 %v1151
    %v1232 = vunpack.c.l.b16 %v1152
    %v1233 = vunpack.c.h.b16 %v1152
    %v1234 = vunpack.c.l.b16 %v1153
    %v1235 = vunpack.c.h.b16 %v1153
    %v1236 = vunpack.c.l.b16 %v1154
    %v1237 = vunpack.c.h.b16 %v1154
    %v1238 = vunpack.c.l.b16 %v1155
    %v1239 = vunpack.c.h.b16 %v1155
    %v1240 = vunpack.c.l.b16 %v1156
    %v1241 = vunpack.c.h.b16 %v1156
    %v1242 = vunpack.c.l.b16 %v1157
    %v1243 = vunpack.c.h.b16 %v1157
    %v1244 = vunpack.c.l.b16 %v1158
    %v1245 = vunpack.c.h.b16 %v1158
    %v1246 = vunpack.c.l.b16 %v1159
    %v1247 = vunpack.c.h.b16 %v1159
    %v1248 = vunpack.c.l.b16 %v1160
    %v1249 = vunpack.c.h.b16 %v1160
    %v1250 = vunpack.c.l.b16 %v1161
    %v1251 = vunpack.c.h.b16 %v1161
    %v1252 = vunpack.c.l.b16 %v1162
    %v1253 = vunpack.c.h.b16 %v1162
    %v1254 = vunpack.c.l.b16 %v1163
    %v1255 = vunpack.c.h.b16 %v1163
    %v1256 = vunpack.c.l.b16 %v1164
    %v1257 = vunpack.c.h.b16 %v1164
    %v1258 = vunpack.c.l.b16 %v1165
    %v1259 = vunpack.c.h.b16 %v1165
    %v1260 = vunpack.c.l.b16 %v1166
    %v1261 = vunpack.c.h.b16 %v1166
    %v1262 = vunpack.c.l.b16 %v1167
    %v1263 = vunpack.c.h.b16 %v1167
    %v1264 = vpack.c.b16 %v1202, %v1200
    %v1265 = vpack.c.b16 %v1203, %v1201
    %v1266 = vpack.c.b16 %v1206, %v1204
    %v1267 = vpack.c.b16 %v1207, %v1205
    %v1268 = vpack.c.b16 %v1210, %v1208
    %v1269 = vpack.c.b16 %v1211, %v1209
    %v1270 = vpack.c.b16 %v1214, %v1212
    %v1271 = vpack.c.b16 %v1215, %v1213
    %v1272 = vpack.c.b16 %v1218, %v1216
    %v1273 = vpack.c.b16 %v1219, %v1217
    %v1274 = vpack.c.b16 %v1222, %v1220
    %v1275 = vpack.c.b16 %v1223, %v1221
    %v1276 = vpack.c.b16 %v1226, %v1224
    %v1277 = vpack.c.b16 %v1227, %v1225
    %v1278 = vpack.c.b16 %v1230, %v1228
    %v1279 = vpack.c.b16 %v1231, %v1229
    %v1280 = vpack.c.b16 %v1234, %v1232
    %v1281 = vpack.c.b16 %v1235, %v1233
    %v1282 = vpack.c.b16 %v1238, %v1236
    %v1283 = vpack.c.b16 %v1239, %v1237
    %v1284 = vpack.c.b16 %v1242, %v1240
    %v1285 = vpack.c.b16 %v1243, %v1241
    %v1286 = vpack.c.b16 %v1246, %v1244
    %v1287 = vpack.c.b16 %v1247, %v1245
    %v1288 = vpack.c.b16 %v1250, %v1248
    %v1289 = vpack.c.b16 %v1251, %v1249
    %v1290 = vpack.c.b16 %v1254, %v1252
    %v1291 = vpack.c.b16 %v1255, %v1253
    %v1292 = vpack.c.b16 %v1258, %v1256
    %v1293 = vpack.c.b16 %v1259, %v1257
    %v1294 = vpack.c.b16 %v1262, %v1260
    %v1295 = vpack.c.b16 %v1263, %v1261
    %1328 = vmatpush.bf16.msra.mxu0 %v1278
    %1329 = vmatpush.bf16.msra.mxu0 %v1276
    %1330 = vmatpush.bf16.msra.mxu0 %v1274
    %1331 = vmatpush.bf16.msra.mxu0 %v1272
    %1332 = vmatpush.bf16.msra.mxu0 %v1270
    %1333 = vmatpush.bf16.msra.mxu0 %v1268
    %1334 = vmatpush.bf16.msra.mxu0 %v1266
    %1335 = vmatpush.bf16.msra.mxu0 %v1264
    %1336 = vmatmul.bf16.gmra.mxu0 %v1134
    %v1337 = vpop.f32.mrf.mxu0
    %v1338 = vadd.f32 0.0, %v1337
    %v1339 = vpop.f32.mrf.mxu0
    %1340 = vdwg.mxu0
    %1341 = vmatpush.bf16.msra.mxu0 %v1294
    %1342 = vmatpush.bf16.msra.mxu0 %v1292
    %1343 = vmatpush.bf16.msra.mxu0 %v1290
    %1344 = vmatpush.bf16.msra.mxu0 %v1288
    %1345 = vmatpush.bf16.msra.mxu0 %v1286
    %1346 = vmatpush.bf16.msra.mxu0 %v1284
    %1347 = vmatpush.bf16.msra.mxu0 %v1282
    %1348 = vmatpush.bf16.msra.mxu0 %v1280
    %1349 = vmatmul.bf16.gmra.mxu0 %v1135
    %v1350 = vpop.f32.mrf.mxu0
    %v1351 = vadd.f32 %v1338, %v1350
    %v1352 = vpop.f32.mrf.mxu0
    %1353 = vdwg.mxu0
    %1354 = vmatpush.bf16.msra.mxu0 %v1279
    %1355 = vmatpush.bf16.msra.mxu0 %v1277
    %1356 = vmatpush.bf16.msra.mxu0 %v1275
    %1357 = vmatpush.bf16.msra.mxu0 %v1273
    %1358 = vmatpush.bf16.msra.mxu0 %v1271
    %1359 = vmatpush.bf16.msra.mxu0 %v1269
    %1360 = vmatpush.bf16.msra.mxu0 %v1267
    %1361 = vmatpush.bf16.msra.mxu0 %v1265
    %1362 = vmatmul.bf16.gmra.mxu0 %v1134
    %v1363 = vpop.f32.mrf.mxu0
    %v1364 = vadd.f32 0.0, %v1363
    %v1365 = vpop.f32.mrf.mxu0
    %1366 = vdwg.mxu0
    %1367 = vmatpush.bf16.msra.mxu0 %v1295
    %1368 = vmatpush.bf16.msra.mxu0 %v1293
    %1369 = vmatpush.bf16.msra.mxu0 %v1291
    %1370 = vmatpush.bf16.msra.mxu0 %v1289
    %1371 = vmatpush.bf16.msra.mxu0 %v1287
    %1372 = vmatpush.bf16.msra.mxu0 %v1285
    %1373 = vmatpush.bf16.msra.mxu0 %v1283
    %1374 = vmatpush.bf16.msra.mxu0 %v1281
    %1375 = vmatmul.bf16.gmra.mxu0 %v1135
    %v1376 = vpop.f32.mrf.mxu0
    %v1377 = vadd.f32 %v1364, %v1376
    %v1378 = vpop.f32.mrf.mxu0
    %1379 = vdwg.mxu0
    %v1382 = vrot.slane %v1351, 1
    %v1383 = vrot.slane %v1377, 1
    %v1386 = vadd.f32 %v190, %v1382
    %v1387 = vadd.f32 %v191, %v1383
    %s1388 = smul.u32 4, 32
    %s1389 = smul.u32 %s1388, 8
    %s1390 = sshll.u32 %s1389, 4
    %1391 = dma.done [#allocation4], %s1390
    %s1392 = smul.u32 4, 64
    %s1393 = smul.u32 %s1392, 2
    %s1394 = sshll.u32 %s1393, 4
    %1395 = dma.done %s176, %s1394
    %v1396 = vld [vmem:[%s7] sm:$0x3]
    %v1397 = vmul.f32 %v1386, %v1386
    %v1398 = vmul.f32 %v1387, %v1387
    %vm1399 = vcmask 1047559
    %v1400 = vsel %vm1399, %v1397, 0.0
    %v1401 = vsel %vm1399, %v1398, 0.0
    %v1402 = vadd.f32 %v1400, %v1401
    %1403 = vadd.xlane.f32.xlu0 %v1402
    %v1404 = vpop.xlane.xlu0 %1403
    %v1405 = vmul.f32 %v1404, %v211
    %v1406 = vadd.f32 %v1405, 1e-06
    %v1407 = vrsqrt.pop %v1406
    %v1408 = vmul.f32 %v1407, %v1406
    %v1409 = vmul.f32 %v1408, %v1407
    %v1410 = vmul.f32 0.5, %v1409
    %v1411 = vsub.f32 1.5, %v1410
    %v1412 = vmul.f32 %v1407, %v1411
    %vm1413 = vweird.f32 %v1406
    %vm1414 = vweird.f32 %v1407
    %vm1415 = vmor %vm1413, %vm1414
    %v1416 = vsel %vm1415, %v1407, %v1412
    %v1417 = vmul.f32 %v1386, %v1416
    %v1418 = vmul.f32 %v1387, %v1416
    %v1420 = vperm.slane %v1396, 0
    %v1421 = vperm.slane %v1396, 1
    %v1424 = vmul.f32 %v1417, %v1420
    %v1425 = vmul.f32 %v1418, %v1421
    %v1426 = vpack.c.bf16 %v1424, %v1424
    %v1427 = vpack.c.bf16 %v1425, %v1425
    %v1428 = vld [vmem:[#allocation2] sm:$0xff]
    %v1429 = vld [vmem:[#allocation2 + $0x8] sm:$0xff]
    %v1430 = vld [vmem:[#allocation2 + $0x10] sm:$0xff]
    %v1431 = vld [vmem:[#allocation2 + $0x18] sm:$0xff]
    %v1432 = vld [vmem:[#allocation2 + $0x20] sm:$0xff]
    %v1433 = vld [vmem:[#allocation2 + $0x28] sm:$0xff]
    %v1434 = vld [vmem:[#allocation2 + $0x30] sm:$0xff]
    %v1435 = vld [vmem:[#allocation2 + $0x38] sm:$0xff]
    %v1436 = vld [vmem:[#allocation2 + $0x40] sm:$0xff]
    %v1437 = vld [vmem:[#allocation2 + $0x48] sm:$0xff]
    %v1438 = vld [vmem:[#allocation2 + $0x50] sm:$0xff]
    %v1439 = vld [vmem:[#allocation2 + $0x58] sm:$0xff]
    %v1440 = vld [vmem:[#allocation2 + $0x60] sm:$0xff]
    %v1441 = vld [vmem:[#allocation2 + $0x68] sm:$0xff]
    %v1442 = vld [vmem:[#allocation2 + $0x70] sm:$0xff]
    %v1443 = vld [vmem:[#allocation2 + $0x78] sm:$0xff]
    %v1444 = vld [vmem:[#allocation2 + $0x80] sm:$0xff]
    %v1445 = vld [vmem:[#allocation2 + $0x88] sm:$0xff]
    %v1446 = vld [vmem:[#allocation2 + $0x90] sm:$0xff]
    %v1447 = vld [vmem:[#allocation2 + $0x98] sm:$0xff]
    %v1448 = vld [vmem:[#allocation2 + $0xa0] sm:$0xff]
    %v1449 = vld [vmem:[#allocation2 + $0xa8] sm:$0xff]
    %v1450 = vld [vmem:[#allocation2 + $0xb0] sm:$0xff]
    %v1451 = vld [vmem:[#allocation2 + $0xb8] sm:$0xff]
    %v1452 = vld [vmem:[#allocation2 + $0xc0] sm:$0xff]
    %v1453 = vld [vmem:[#allocation2 + $0xc8] sm:$0xff]
    %v1454 = vld [vmem:[#allocation2 + $0xd0] sm:$0xff]
    %v1455 = vld [vmem:[#allocation2 + $0xd8] sm:$0xff]
    %v1456 = vld [vmem:[#allocation2 + $0xe0] sm:$0xff]
    %v1457 = vld [vmem:[#allocation2 + $0xe8] sm:$0xff]
    %v1458 = vld [vmem:[#allocation2 + $0xf0] sm:$0xff]
    %v1459 = vld [vmem:[#allocation2 + $0xf8] sm:$0xff]
    %v1460 = vld [vmem:[#allocation2 + $0x100] sm:$0xff]
    %v1461 = vld [vmem:[#allocation2 + $0x108] sm:$0xff]
    %v1462 = vld [vmem:[#allocation2 + $0x110] sm:$0xff]
    %v1463 = vld [vmem:[#allocation2 + $0x118] sm:$0xff]
    %v1464 = vld [vmem:[#allocation2 + $0x120] sm:$0xff]
    %v1465 = vld [vmem:[#allocation2 + $0x128] sm:$0xff]
    %v1466 = vld [vmem:[#allocation2 + $0x130] sm:$0xff]
    %v1467 = vld [vmem:[#allocation2 + $0x138] sm:$0xff]
    %v1468 = vld [vmem:[#allocation2 + $0x140] sm:$0xff]
    %v1469 = vld [vmem:[#allocation2 + $0x148] sm:$0xff]
    %v1470 = vld [vmem:[#allocation2 + $0x150] sm:$0xff]
    %v1471 = vld [vmem:[#allocation2 + $0x158] sm:$0xff]
    %v1472 = vld [vmem:[#allocation2 + $0x160] sm:$0xff]
    %v1473 = vld [vmem:[#allocation2 + $0x168] sm:$0xff]
    %v1474 = vld [vmem:[#allocation2 + $0x170] sm:$0xff]
    %v1475 = vld [vmem:[#allocation2 + $0x178] sm:$0xff]
    %v1476 = vld [vmem:[#allocation2 + $0x180] sm:$0xff]
    %v1477 = vld [vmem:[#allocation2 + $0x188] sm:$0xff]
    %v1478 = vld [vmem:[#allocation2 + $0x190] sm:$0xff]
    %v1479 = vld [vmem:[#allocation2 + $0x198] sm:$0xff]
    %v1480 = vld [vmem:[#allocation2 + $0x1a0] sm:$0xff]
    %v1481 = vld [vmem:[#allocation2 + $0x1a8] sm:$0xff]
    %v1482 = vld [vmem:[#allocation2 + $0x1b0] sm:$0xff]
    %v1483 = vld [vmem:[#allocation2 + $0x1b8] sm:$0xff]
    %v1484 = vld [vmem:[#allocation2 + $0x1c0] sm:$0xff]
    %v1485 = vld [vmem:[#allocation2 + $0x1c8] sm:$0xff]
    %v1486 = vld [vmem:[#allocation2 + $0x1d0] sm:$0xff]
    %v1487 = vld [vmem:[#allocation2 + $0x1d8] sm:$0xff]
    %v1488 = vld [vmem:[#allocation2 + $0x1e0] sm:$0xff]
    %v1489 = vld [vmem:[#allocation2 + $0x1e8] sm:$0xff]
    %v1490 = vld [vmem:[#allocation2 + $0x1f0] sm:$0xff]
    %v1491 = vld [vmem:[#allocation2 + $0x1f8] sm:$0xff]
    %v1492 = vld [vmem:[#allocation2 + $0x200] sm:$0xff]
    %v1493 = vld [vmem:[#allocation2 + $0x208] sm:$0xff]
    %v1494 = vld [vmem:[#allocation2 + $0x210] sm:$0xff]
    %v1495 = vld [vmem:[#allocation2 + $0x218] sm:$0xff]
    %v1496 = vld [vmem:[#allocation2 + $0x220] sm:$0xff]
    %v1497 = vld [vmem:[#allocation2 + $0x228] sm:$0xff]
    %v1498 = vld [vmem:[#allocation2 + $0x230] sm:$0xff]
    %v1499 = vld [vmem:[#allocation2 + $0x238] sm:$0xff]
    %v1500 = vld [vmem:[#allocation2 + $0x240] sm:$0xff]
    %v1501 = vld [vmem:[#allocation2 + $0x248] sm:$0xff]
    %v1502 = vld [vmem:[#allocation2 + $0x250] sm:$0xff]
    %v1503 = vld [vmem:[#allocation2 + $0x258] sm:$0xff]
    %v1504 = vld [vmem:[#allocation2 + $0x260] sm:$0xff]
    %v1505 = vld [vmem:[#allocation2 + $0x268] sm:$0xff]
    %v1506 = vld [vmem:[#allocation2 + $0x270] sm:$0xff]
    %v1507 = vld [vmem:[#allocation2 + $0x278] sm:$0xff]
    %v1508 = vld [vmem:[#allocation2 + $0x280] sm:$0xff]
    %v1509 = vld [vmem:[#allocation2 + $0x288] sm:$0xff]
    %v1510 = vld [vmem:[#allocation2 + $0x290] sm:$0xff]
    %v1511 = vld [vmem:[#allocation2 + $0x298] sm:$0xff]
    %v1512 = vld [vmem:[#allocation2 + $0x2a0] sm:$0xff]
    %v1513 = vld [vmem:[#allocation2 + $0x2a8] sm:$0xff]
    %v1514 = vld [vmem:[#allocation2 + $0x2b0] sm:$0xff]
    %v1515 = vld [vmem:[#allocation2 + $0x2b8] sm:$0xff]
    %v1516 = vld [vmem:[#allocation2 + $0x2c0] sm:$0xff]
    %v1517 = vld [vmem:[#allocation2 + $0x2c8] sm:$0xff]
    %v1518 = vld [vmem:[#allocation2 + $0x2d0] sm:$0xff]
    %v1519 = vld [vmem:[#allocation2 + $0x2d8] sm:$0xff]
    %v1520 = vld [vmem:[#allocation2 + $0x2e0] sm:$0xff]
    %v1521 = vld [vmem:[#allocation2 + $0x2e8] sm:$0xff]
    %v1522 = vld [vmem:[#allocation2 + $0x2f0] sm:$0xff]
    %v1523 = vld [vmem:[#allocation2 + $0x2f8] sm:$0xff]
    %v1524 = vld [vmem:[#allocation2 + $0x300] sm:$0xff]
    %v1525 = vld [vmem:[#allocation2 + $0x308] sm:$0xff]
    %v1526 = vld [vmem:[#allocation2 + $0x310] sm:$0xff]
    %v1527 = vld [vmem:[#allocation2 + $0x318] sm:$0xff]
    %v1528 = vld [vmem:[#allocation2 + $0x320] sm:$0xff]
    %v1529 = vld [vmem:[#allocation2 + $0x328] sm:$0xff]
    %v1530 = vld [vmem:[#allocation2 + $0x330] sm:$0xff]
    %v1531 = vld [vmem:[#allocation2 + $0x338] sm:$0xff]
    %v1532 = vld [vmem:[#allocation2 + $0x340] sm:$0xff]
    %v1533 = vld [vmem:[#allocation2 + $0x348] sm:$0xff]
    %v1534 = vld [vmem:[#allocation2 + $0x350] sm:$0xff]
    %v1535 = vld [vmem:[#allocation2 + $0x358] sm:$0xff]
    %v1536 = vld [vmem:[#allocation2 + $0x360] sm:$0xff]
    %v1537 = vld [vmem:[#allocation2 + $0x368] sm:$0xff]
    %v1538 = vld [vmem:[#allocation2 + $0x370] sm:$0xff]
    %v1539 = vld [vmem:[#allocation2 + $0x378] sm:$0xff]
    %v1540 = vld [vmem:[#allocation2 + $0x380] sm:$0xff]
    %v1541 = vld [vmem:[#allocation2 + $0x388] sm:$0xff]
    %v1542 = vld [vmem:[#allocation2 + $0x390] sm:$0xff]
    %v1543 = vld [vmem:[#allocation2 + $0x398] sm:$0xff]
    %v1544 = vld [vmem:[#allocation2 + $0x3a0] sm:$0xff]
    %v1545 = vld [vmem:[#allocation2 + $0x3a8] sm:$0xff]
    %v1546 = vld [vmem:[#allocation2 + $0x3b0] sm:$0xff]
    %v1547 = vld [vmem:[#allocation2 + $0x3b8] sm:$0xff]
    %v1548 = vld [vmem:[#allocation2 + $0x3c0] sm:$0xff]
    %v1549 = vld [vmem:[#allocation2 + $0x3c8] sm:$0xff]
    %v1550 = vld [vmem:[#allocation2 + $0x3d0] sm:$0xff]
    %v1551 = vld [vmem:[#allocation2 + $0x3d8] sm:$0xff]
    %v1552 = vld [vmem:[#allocation2 + $0x3e0] sm:$0xff]
    %v1553 = vld [vmem:[#allocation2 + $0x3e8] sm:$0xff]
    %v1554 = vld [vmem:[#allocation2 + $0x3f0] sm:$0xff]
    %v1555 = vld [vmem:[#allocation2 + $0x3f8] sm:$0xff]
    %v1557 = vshrl.u32 %v1426, 16
    %v1559 = vrot.slane %v1557, 3
    %v1561 = vshrl.u32 %v1427, 16
    %v1563 = vrot.slane %v1561, 3
    %v1694 = vunpack.c.l.b16 %v1428
    %v1695 = vunpack.c.h.b16 %v1428
    %v1696 = vunpack.c.l.b16 %v1429
    %v1697 = vunpack.c.h.b16 %v1429
    %v1698 = vunpack.c.l.b16 %v1430
    %v1699 = vunpack.c.h.b16 %v1430
    %v1700 = vunpack.c.l.b16 %v1431
    %v1701 = vunpack.c.h.b16 %v1431
    %v1702 = vunpack.c.l.b16 %v1432
    %v1703 = vunpack.c.h.b16 %v1432
    %v1704 = vunpack.c.l.b16 %v1433
    %v1705 = vunpack.c.h.b16 %v1433
    %v1706 = vunpack.c.l.b16 %v1434
    %v1707 = vunpack.c.h.b16 %v1434
    %v1708 = vunpack.c.l.b16 %v1435
    %v1709 = vunpack.c.h.b16 %v1435
    %v1710 = vunpack.c.l.b16 %v1436
    %v1711 = vunpack.c.h.b16 %v1436
    %v1712 = vunpack.c.l.b16 %v1437
    %v1713 = vunpack.c.h.b16 %v1437
    %v1714 = vunpack.c.l.b16 %v1438
    %v1715 = vunpack.c.h.b16 %v1438
    %v1716 = vunpack.c.l.b16 %v1439
    %v1717 = vunpack.c.h.b16 %v1439
    %v1718 = vunpack.c.l.b16 %v1440
    %v1719 = vunpack.c.h.b16 %v1440
    %v1720 = vunpack.c.l.b16 %v1441
    %v1721 = vunpack.c.h.b16 %v1441
    %v1722 = vunpack.c.l.b16 %v1442
    %v1723 = vunpack.c.h.b16 %v1442
    %v1724 = vunpack.c.l.b16 %v1443
    %v1725 = vunpack.c.h.b16 %v1443
    %v1726 = vunpack.c.l.b16 %v1444
    %v1727 = vunpack.c.h.b16 %v1444
    %v1728 = vunpack.c.l.b16 %v1445
    %v1729 = vunpack.c.h.b16 %v1445
    %v1730 = vunpack.c.l.b16 %v1446
    %v1731 = vunpack.c.h.b16 %v1446
    %v1732 = vunpack.c.l.b16 %v1447
    %v1733 = vunpack.c.h.b16 %v1447
    %v1734 = vunpack.c.l.b16 %v1448
    %v1735 = vunpack.c.h.b16 %v1448
    %v1736 = vunpack.c.l.b16 %v1449
    %v1737 = vunpack.c.h.b16 %v1449
    %v1738 = vunpack.c.l.b16 %v1450
    %v1739 = vunpack.c.h.b16 %v1450
    %v1740 = vunpack.c.l.b16 %v1451
    %v1741 = vunpack.c.h.b16 %v1451
    %v1742 = vunpack.c.l.b16 %v1452
    %v1743 = vunpack.c.h.b16 %v1452
    %v1744 = vunpack.c.l.b16 %v1453
    %v1745 = vunpack.c.h.b16 %v1453
    %v1746 = vunpack.c.l.b16 %v1454
    %v1747 = vunpack.c.h.b16 %v1454
    %v1748 = vunpack.c.l.b16 %v1455
    %v1749 = vunpack.c.h.b16 %v1455
    %v1750 = vunpack.c.l.b16 %v1456
    %v1751 = vunpack.c.h.b16 %v1456
    %v1752 = vunpack.c.l.b16 %v1457
    %v1753 = vunpack.c.h.b16 %v1457
    %v1754 = vunpack.c.l.b16 %v1458
    %v1755 = vunpack.c.h.b16 %v1458
    %v1756 = vunpack.c.l.b16 %v1459
    %v1757 = vunpack.c.h.b16 %v1459
    %v1758 = vunpack.c.l.b16 %v1460
    %v1759 = vunpack.c.h.b16 %v1460
    %v1760 = vunpack.c.l.b16 %v1461
    %v1761 = vunpack.c.h.b16 %v1461
    %v1762 = vunpack.c.l.b16 %v1462
    %v1763 = vunpack.c.h.b16 %v1462
    %v1764 = vunpack.c.l.b16 %v1463
    %v1765 = vunpack.c.h.b16 %v1463
    %v1766 = vunpack.c.l.b16 %v1464
    %v1767 = vunpack.c.h.b16 %v1464
    %v1768 = vunpack.c.l.b16 %v1465
    %v1769 = vunpack.c.h.b16 %v1465
    %v1770 = vunpack.c.l.b16 %v1466
    %v1771 = vunpack.c.h.b16 %v1466
    %v1772 = vunpack.c.l.b16 %v1467
    %v1773 = vunpack.c.h.b16 %v1467
    %v1774 = vunpack.c.l.b16 %v1468
    %v1775 = vunpack.c.h.b16 %v1468
    %v1776 = vunpack.c.l.b16 %v1469
    %v1777 = vunpack.c.h.b16 %v1469
    %v1778 = vunpack.c.l.b16 %v1470
    %v1779 = vunpack.c.h.b16 %v1470
    %v1780 = vunpack.c.l.b16 %v1471
    %v1781 = vunpack.c.h.b16 %v1471
    %v1782 = vunpack.c.l.b16 %v1472
    %v1783 = vunpack.c.h.b16 %v1472
    %v1784 = vunpack.c.l.b16 %v1473
    %v1785 = vunpack.c.h.b16 %v1473
    %v1786 = vunpack.c.l.b16 %v1474
    %v1787 = vunpack.c.h.b16 %v1474
    %v1788 = vunpack.c.l.b16 %v1475
    %v1789 = vunpack.c.h.b16 %v1475
    %v1790 = vunpack.c.l.b16 %v1476
    %v1791 = vunpack.c.h.b16 %v1476
    %v1792 = vunpack.c.l.b16 %v1477
    %v1793 = vunpack.c.h.b16 %v1477
    %v1794 = vunpack.c.l.b16 %v1478
    %v1795 = vunpack.c.h.b16 %v1478
    %v1796 = vunpack.c.l.b16 %v1479
    %v1797 = vunpack.c.h.b16 %v1479
    %v1798 = vunpack.c.l.b16 %v1480
    %v1799 = vunpack.c.h.b16 %v1480
    %v1800 = vunpack.c.l.b16 %v1481
    %v1801 = vunpack.c.h.b16 %v1481
    %v1802 = vunpack.c.l.b16 %v1482
    %v1803 = vunpack.c.h.b16 %v1482
    %v1804 = vunpack.c.l.b16 %v1483
    %v1805 = vunpack.c.h.b16 %v1483
    %v1806 = vunpack.c.l.b16 %v1484
    %v1807 = vunpack.c.h.b16 %v1484
    %v1808 = vunpack.c.l.b16 %v1485
    %v1809 = vunpack.c.h.b16 %v1485
    %v1810 = vunpack.c.l.b16 %v1486
    %v1811 = vunpack.c.h.b16 %v1486
    %v1812 = vunpack.c.l.b16 %v1487
    %v1813 = vunpack.c.h.b16 %v1487
    %v1814 = vunpack.c.l.b16 %v1488
    %v1815 = vunpack.c.h.b16 %v1488
    %v1816 = vunpack.c.l.b16 %v1489
    %v1817 = vunpack.c.h.b16 %v1489
    %v1818 = vunpack.c.l.b16 %v1490
    %v1819 = vunpack.c.h.b16 %v1490
    %v1820 = vunpack.c.l.b16 %v1491
    %v1821 = vunpack.c.h.b16 %v1491
    %v1822 = vunpack.c.l.b16 %v1492
    %v1823 = vunpack.c.h.b16 %v1492
    %v1824 = vunpack.c.l.b16 %v1493
    %v1825 = vunpack.c.h.b16 %v1493
    %v1826 = vunpack.c.l.b16 %v1494
    %v1827 = vunpack.c.h.b16 %v1494
    %v1828 = vunpack.c.l.b16 %v1495
    %v1829 = vunpack.c.h.b16 %v1495
    %v1830 = vunpack.c.l.b16 %v1496
    %v1831 = vunpack.c.h.b16 %v1496
    %v1832 = vunpack.c.l.b16 %v1497
    %v1833 = vunpack.c.h.b16 %v1497
    %v1834 = vunpack.c.l.b16 %v1498
    %v1835 = vunpack.c.h.b16 %v1498
    %v1836 = vunpack.c.l.b16 %v1499
    %v1837 = vunpack.c.h.b16 %v1499
    %v1838 = vunpack.c.l.b16 %v1500
    %v1839 = vunpack.c.h.b16 %v1500
    %v1840 = vunpack.c.l.b16 %v1501
    %v1841 = vunpack.c.h.b16 %v1501
    %v1842 = vunpack.c.l.b16 %v1502
    %v1843 = vunpack.c.h.b16 %v1502
    %v1844 = vunpack.c.l.b16 %v1503
    %v1845 = vunpack.c.h.b16 %v1503
    %v1846 = vunpack.c.l.b16 %v1504
    %v1847 = vunpack.c.h.b16 %v1504
    %v1848 = vunpack.c.l.b16 %v1505
    %v1849 = vunpack.c.h.b16 %v1505
    %v1850 = vunpack.c.l.b16 %v1506
    %v1851 = vunpack.c.h.b16 %v1506
    %v1852 = vunpack.c.l.b16 %v1507
    %v1853 = vunpack.c.h.b16 %v1507
    %v1854 = vunpack.c.l.b16 %v1508
    %v1855 = vunpack.c.h.b16 %v1508
    %v1856 = vunpack.c.l.b16 %v1509
    %v1857 = vunpack.c.h.b16 %v1509
    %v1858 = vunpack.c.l.b16 %v1510
    %v1859 = vunpack.c.h.b16 %v1510
    %v1860 = vunpack.c.l.b16 %v1511
    %v1861 = vunpack.c.h.b16 %v1511
    %v1862 = vunpack.c.l.b16 %v1512
    %v1863 = vunpack.c.h.b16 %v1512
    %v1864 = vunpack.c.l.b16 %v1513
    %v1865 = vunpack.c.h.b16 %v1513
    %v1866 = vunpack.c.l.b16 %v1514
    %v1867 = vunpack.c.h.b16 %v1514
    %v1868 = vunpack.c.l.b16 %v1515
    %v1869 = vunpack.c.h.b16 %v1515
    %v1870 = vunpack.c.l.b16 %v1516
    %v1871 = vunpack.c.h.b16 %v1516
    %v1872 = vunpack.c.l.b16 %v1517
    %v1873 = vunpack.c.h.b16 %v1517
    %v1874 = vunpack.c.l.b16 %v1518
    %v1875 = vunpack.c.h.b16 %v1518
    %v1876 = vunpack.c.l.b16 %v1519
    %v1877 = vunpack.c.h.b16 %v1519
    %v1878 = vunpack.c.l.b16 %v1520
    %v1879 = vunpack.c.h.b16 %v1520
    %v1880 = vunpack.c.l.b16 %v1521
    %v1881 = vunpack.c.h.b16 %v1521
    %v1882 = vunpack.c.l.b16 %v1522
    %v1883 = vunpack.c.h.b16 %v1522
    %v1884 = vunpack.c.l.b16 %v1523
    %v1885 = vunpack.c.h.b16 %v1523
    %v1886 = vunpack.c.l.b16 %v1524
    %v1887 = vunpack.c.h.b16 %v1524
    %v1888 = vunpack.c.l.b16 %v1525
    %v1889 = vunpack.c.h.b16 %v1525
    %v1890 = vunpack.c.l.b16 %v1526
    %v1891 = vunpack.c.h.b16 %v1526
    %v1892 = vunpack.c.l.b16 %v1527
    %v1893 = vunpack.c.h.b16 %v1527
    %v1894 = vunpack.c.l.b16 %v1528
    %v1895 = vunpack.c.h.b16 %v1528
    %v1896 = vunpack.c.l.b16 %v1529
    %v1897 = vunpack.c.h.b16 %v1529
    %v1898 = vunpack.c.l.b16 %v1530
    %v1899 = vunpack.c.h.b16 %v1530
    %v1900 = vunpack.c.l.b16 %v1531
    %v1901 = vunpack.c.h.b16 %v1531
    %v1902 = vunpack.c.l.b16 %v1532
    %v1903 = vunpack.c.h.b16 %v1532
    %v1904 = vunpack.c.l.b16 %v1533
    %v1905 = vunpack.c.h.b16 %v1533
    %v1906 = vunpack.c.l.b16 %v1534
    %v1907 = vunpack.c.h.b16 %v1534
    %v1908 = vunpack.c.l.b16 %v1535
    %v1909 = vunpack.c.h.b16 %v1535
    %v1910 = vunpack.c.l.b16 %v1536
    %v1911 = vunpack.c.h.b16 %v1536
    %v1912 = vunpack.c.l.b16 %v1537
    %v1913 = vunpack.c.h.b16 %v1537
    %v1914 = vunpack.c.l.b16 %v1538
    %v1915 = vunpack.c.h.b16 %v1538
    %v1916 = vunpack.c.l.b16 %v1539
    %v1917 = vunpack.c.h.b16 %v1539
    %v1918 = vunpack.c.l.b16 %v1540
    %v1919 = vunpack.c.h.b16 %v1540
    %v1920 = vunpack.c.l.b16 %v1541
    %v1921 = vunpack.c.h.b16 %v1541
    %v1922 = vunpack.c.l.b16 %v1542
    %v1923 = vunpack.c.h.b16 %v1542
    %v1924 = vunpack.c.l.b16 %v1543
    %v1925 = vunpack.c.h.b16 %v1543
    %v1926 = vunpack.c.l.b16 %v1544
    %v1927 = vunpack.c.h.b16 %v1544
    %v1928 = vunpack.c.l.b16 %v1545
    %v1929 = vunpack.c.h.b16 %v1545
    %v1930 = vunpack.c.l.b16 %v1546
    %v1931 = vunpack.c.h.b16 %v1546
    %v1932 = vunpack.c.l.b16 %v1547
    %v1933 = vunpack.c.h.b16 %v1547
    %v1934 = vunpack.c.l.b16 %v1548
    %v1935 = vunpack.c.h.b16 %v1548
    %v1936 = vunpack.c.l.b16 %v1549
    %v1937 = vunpack.c.h.b16 %v1549
    %v1938 = vunpack.c.l.b16 %v1550
    %v1939 = vunpack.c.h.b16 %v1550
    %v1940 = vunpack.c.l.b16 %v1551
    %v1941 = vunpack.c.h.b16 %v1551
    %v1942 = vunpack.c.l.b16 %v1552
    %v1943 = vunpack.c.h.b16 %v1552
    %v1944 = vunpack.c.l.b16 %v1553
    %v1945 = vunpack.c.h.b16 %v1553
    %v1946 = vunpack.c.l.b16 %v1554
    %v1947 = vunpack.c.h.b16 %v1554
    %v1948 = vunpack.c.l.b16 %v1555
    %v1949 = vunpack.c.h.b16 %v1555
    %v1950 = vpack.c.b16 %v1702, %v1694
    %v1951 = vpack.c.b16 %v1703, %v1695
    %v1952 = vpack.c.b16 %v1704, %v1696
    %v1953 = vpack.c.b16 %v1705, %v1697
    %v1954 = vpack.c.b16 %v1706, %v1698
    %v1955 = vpack.c.b16 %v1707, %v1699
    %v1956 = vpack.c.b16 %v1708, %v1700
    %v1957 = vpack.c.b16 %v1709, %v1701
    %v1958 = vpack.c.b16 %v1718, %v1710
    %v1959 = vpack.c.b16 %v1719, %v1711
    %v1960 = vpack.c.b16 %v1720, %v1712
    %v1961 = vpack.c.b16 %v1721, %v1713
    %v1962 = vpack.c.b16 %v1722, %v1714
    %v1963 = vpack.c.b16 %v1723, %v1715
    %v1964 = vpack.c.b16 %v1724, %v1716
    %v1965 = vpack.c.b16 %v1725, %v1717
    %v1966 = vpack.c.b16 %v1734, %v1726
    %v1967 = vpack.c.b16 %v1735, %v1727
    %v1968 = vpack.c.b16 %v1736, %v1728
    %v1969 = vpack.c.b16 %v1737, %v1729
    %v1970 = vpack.c.b16 %v1738, %v1730
    %v1971 = vpack.c.b16 %v1739, %v1731
    %v1972 = vpack.c.b16 %v1740, %v1732
    %v1973 = vpack.c.b16 %v1741, %v1733
    %v1974 = vpack.c.b16 %v1750, %v1742
    %v1975 = vpack.c.b16 %v1751, %v1743
    %v1976 = vpack.c.b16 %v1752, %v1744
    %v1977 = vpack.c.b16 %v1753, %v1745
    %v1978 = vpack.c.b16 %v1754, %v1746
    %v1979 = vpack.c.b16 %v1755, %v1747
    %v1980 = vpack.c.b16 %v1756, %v1748
    %v1981 = vpack.c.b16 %v1757, %v1749
    %v1982 = vpack.c.b16 %v1766, %v1758
    %v1983 = vpack.c.b16 %v1767, %v1759
    %v1984 = vpack.c.b16 %v1768, %v1760
    %v1985 = vpack.c.b16 %v1769, %v1761
    %v1986 = vpack.c.b16 %v1770, %v1762
    %v1987 = vpack.c.b16 %v1771, %v1763
    %v1988 = vpack.c.b16 %v1772, %v1764
    %v1989 = vpack.c.b16 %v1773, %v1765
    %v1990 = vpack.c.b16 %v1782, %v1774
    %v1991 = vpack.c.b16 %v1783, %v1775
    %v1992 = vpack.c.b16 %v1784, %v1776
    %v1993 = vpack.c.b16 %v1785, %v1777
    %v1994 = vpack.c.b16 %v1786, %v1778
    %v1995 = vpack.c.b16 %v1787, %v1779
    %v1996 = vpack.c.b16 %v1788, %v1780
    %v1997 = vpack.c.b16 %v1789, %v1781
    %v1998 = vpack.c.b16 %v1798, %v1790
    %v1999 = vpack.c.b16 %v1799, %v1791
    %v2000 = vpack.c.b16 %v1800, %v1792
    %v2001 = vpack.c.b16 %v1801, %v1793
    %v2002 = vpack.c.b16 %v1802, %v1794
    %v2003 = vpack.c.b16 %v1803, %v1795
    %v2004 = vpack.c.b16 %v1804, %v1796
    %v2005 = vpack.c.b16 %v1805, %v1797
    %v2006 = vpack.c.b16 %v1814, %v1806
    %v2007 = vpack.c.b16 %v1815, %v1807
    %v2008 = vpack.c.b16 %v1816, %v1808
    %v2009 = vpack.c.b16 %v1817, %v1809
    %v2010 = vpack.c.b16 %v1818, %v1810
    %v2011 = vpack.c.b16 %v1819, %v1811
    %v2012 = vpack.c.b16 %v1820, %v1812
    %v2013 = vpack.c.b16 %v1821, %v1813
    %v2014 = vpack.c.b16 %v1830, %v1822
    %v2015 = vpack.c.b16 %v1831, %v1823
    %v2016 = vpack.c.b16 %v1832, %v1824
    %v2017 = vpack.c.b16 %v1833, %v1825
    %v2018 = vpack.c.b16 %v1834, %v1826
    %v2019 = vpack.c.b16 %v1835, %v1827
    %v2020 = vpack.c.b16 %v1836, %v1828
    %v2021 = vpack.c.b16 %v1837, %v1829
    %v2022 = vpack.c.b16 %v1846, %v1838
    %v2023 = vpack.c.b16 %v1847, %v1839
    %v2024 = vpack.c.b16 %v1848, %v1840
    %v2025 = vpack.c.b16 %v1849, %v1841
    %v2026 = vpack.c.b16 %v1850, %v1842
    %v2027 = vpack.c.b16 %v1851, %v1843
    %v2028 = vpack.c.b16 %v1852, %v1844
    %v2029 = vpack.c.b16 %v1853, %v1845
    %v2030 = vpack.c.b16 %v1862, %v1854
    %v2031 = vpack.c.b16 %v1863, %v1855
    %v2032 = vpack.c.b16 %v1864, %v1856
    %v2033 = vpack.c.b16 %v1865, %v1857
    %v2034 = vpack.c.b16 %v1866, %v1858
    %v2035 = vpack.c.b16 %v1867, %v1859
    %v2036 = vpack.c.b16 %v1868, %v1860
    %v2037 = vpack.c.b16 %v1869, %v1861
    %v2038 = vpack.c.b16 %v1878, %v1870
    %v2039 = vpack.c.b16 %v1879, %v1871
    %v2040 = vpack.c.b16 %v1880, %v1872
    %v2041 = vpack.c.b16 %v1881, %v1873
    %v2042 = vpack.c.b16 %v1882, %v1874
    %v2043 = vpack.c.b16 %v1883, %v1875
    %v2044 = vpack.c.b16 %v1884, %v1876
    %v2045 = vpack.c.b16 %v1885, %v1877
    %v2046 = vpack.c.b16 %v1894, %v1886
    %v2047 = vpack.c.b16 %v1895, %v1887
    %v2048 = vpack.c.b16 %v1896, %v1888
    %v2049 = vpack.c.b16 %v1897, %v1889
    %v2050 = vpack.c.b16 %v1898, %v1890
    %v2051 = vpack.c.b16 %v1899, %v1891
    %v2052 = vpack.c.b16 %v1900, %v1892
    %v2053 = vpack.c.b16 %v1901, %v1893
    %v2054 = vpack.c.b16 %v1910, %v1902
    %v2055 = vpack.c.b16 %v1911, %v1903
    %v2056 = vpack.c.b16 %v1912, %v1904
    %v2057 = vpack.c.b16 %v1913, %v1905
    %v2058 = vpack.c.b16 %v1914, %v1906
    %v2059 = vpack.c.b16 %v1915, %v1907
    %v2060 = vpack.c.b16 %v1916, %v1908
    %v2061 = vpack.c.b16 %v1917, %v1909
    %v2062 = vpack.c.b16 %v1926, %v1918
    %v2063 = vpack.c.b16 %v1927, %v1919
    %v2064 = vpack.c.b16 %v1928, %v1920
    %v2065 = vpack.c.b16 %v1929, %v1921
    %v2066 = vpack.c.b16 %v1930, %v1922
    %v2067 = vpack.c.b16 %v1931, %v1923
    %v2068 = vpack.c.b16 %v1932, %v1924
    %v2069 = vpack.c.b16 %v1933, %v1925
    %v2070 = vpack.c.b16 %v1942, %v1934
    %v2071 = vpack.c.b16 %v1943, %v1935
    %v2072 = vpack.c.b16 %v1944, %v1936
    %v2073 = vpack.c.b16 %v1945, %v1937
    %v2074 = vpack.c.b16 %v1946, %v1938
    %v2075 = vpack.c.b16 %v1947, %v1939
    %v2076 = vpack.c.b16 %v1948, %v1940
    %v2077 = vpack.c.b16 %v1949, %v1941
    %2206 = vmatpush.bf16.msra.mxu0 %v2006
    %2207 = vmatpush.bf16.msra.mxu0 %v1998
    %2208 = vmatpush.bf16.msra.mxu0 %v1990
    %2209 = vmatpush.bf16.msra.mxu0 %v1982
    %2210 = vmatpush.bf16.msra.mxu0 %v1974
    %2211 = vmatpush.bf16.msra.mxu0 %v1966
    %2212 = vmatpush.bf16.msra.mxu0 %v1958
    %2213 = vmatpush.bf16.msra.mxu0 %v1950
    %2214 = vmatmul.bf16.gmra.mxu0 %v1559
    %v2215 = vpop.f32.mrf.mxu0
    %v2216 = vadd.f32 0.0, %v2215
    %v2217 = vpop.f32.mrf.mxu0
    %2218 = vdwg.mxu0
    %2219 = vmatpush.bf16.msra.mxu0 %v2070
    %2220 = vmatpush.bf16.msra.mxu0 %v2062
    %2221 = vmatpush.bf16.msra.mxu0 %v2054
    %2222 = vmatpush.bf16.msra.mxu0 %v2046
    %2223 = vmatpush.bf16.msra.mxu0 %v2038
    %2224 = vmatpush.bf16.msra.mxu0 %v2030
    %2225 = vmatpush.bf16.msra.mxu0 %v2022
    %2226 = vmatpush.bf16.msra.mxu0 %v2014
    %2227 = vmatmul.bf16.gmra.mxu0 %v1563
    %v2228 = vpop.f32.mrf.mxu0
    %v2229 = vadd.f32 %v2216, %v2228
    %v2230 = vpop.f32.mrf.mxu0
    %2231 = vdwg.mxu0
    %2232 = vmatpush.bf16.msra.mxu0 %v2007
    %2233 = vmatpush.bf16.msra.mxu0 %v1999
    %2234 = vmatpush.bf16.msra.mxu0 %v1991
    %2235 = vmatpush.bf16.msra.mxu0 %v1983
    %2236 = vmatpush.bf16.msra.mxu0 %v1975
    %2237 = vmatpush.bf16.msra.mxu0 %v1967
    %2238 = vmatpush.bf16.msra.mxu0 %v1959
    %2239 = vmatpush.bf16.msra.mxu0 %v1951
    %2240 = vmatmul.bf16.gmra.mxu0 %v1559
    %v2241 = vpop.f32.mrf.mxu0
    %v2242 = vadd.f32 0.0, %v2241
    %v2243 = vpop.f32.mrf.mxu0
    %2244 = vdwg.mxu0
    %2245 = vmatpush.bf16.msra.mxu0 %v2071
    %2246 = vmatpush.bf16.msra.mxu0 %v2063
    %2247 = vmatpush.bf16.msra.mxu0 %v2055
    %2248 = vmatpush.bf16.msra.mxu0 %v2047
    %2249 = vmatpush.bf16.msra.mxu0 %v2039
    %2250 = vmatpush.bf16.msra.mxu0 %v2031
    %2251 = vmatpush.bf16.msra.mxu0 %v2023
    %2252 = vmatpush.bf16.msra.mxu0 %v2015
    %2253 = vmatmul.bf16.gmra.mxu0 %v1563
    %v2254 = vpop.f32.mrf.mxu0
    %v2255 = vadd.f32 %v2242, %v2254
    %v2256 = vpop.f32.mrf.mxu0
    %2257 = vdwg.mxu0
    %2258 = vmatpush.bf16.msra.mxu0 %v2008
    %2259 = vmatpush.bf16.msra.mxu0 %v2000
    %2260 = vmatpush.bf16.msra.mxu0 %v1992
    %2261 = vmatpush.bf16.msra.mxu0 %v1984
    %2262 = vmatpush.bf16.msra.mxu0 %v1976
    %2263 = vmatpush.bf16.msra.mxu0 %v1968
    %2264 = vmatpush.bf16.msra.mxu0 %v1960
    %2265 = vmatpush.bf16.msra.mxu0 %v1952
    %2266 = vmatmul.bf16.gmra.mxu0 %v1559
    %v2267 = vpop.f32.mrf.mxu0
    %v2268 = vadd.f32 0.0, %v2267
    %v2269 = vpop.f32.mrf.mxu0
    %2270 = vdwg.mxu0
    %2271 = vmatpush.bf16.msra.mxu0 %v2072
    %2272 = vmatpush.bf16.msra.mxu0 %v2064
    %2273 = vmatpush.bf16.msra.mxu0 %v2056
    %2274 = vmatpush.bf16.msra.mxu0 %v2048
    %2275 = vmatpush.bf16.msra.mxu0 %v2040
    %2276 = vmatpush.bf16.msra.mxu0 %v2032
    %2277 = vmatpush.bf16.msra.mxu0 %v2024
    %2278 = vmatpush.bf16.msra.mxu0 %v2016
    %2279 = vmatmul.bf16.gmra.mxu0 %v1563
    %v2280 = vpop.f32.mrf.mxu0
    %v2281 = vadd.f32 %v2268, %v2280
    %v2282 = vpop.f32.mrf.mxu0
    %2283 = vdwg.mxu0
    %2284 = vmatpush.bf16.msra.mxu0 %v2009
    %2285 = vmatpush.bf16.msra.mxu0 %v2001
    %2286 = vmatpush.bf16.msra.mxu0 %v1993
    %2287 = vmatpush.bf16.msra.mxu0 %v1985
    %2288 = vmatpush.bf16.msra.mxu0 %v1977
    %2289 = vmatpush.bf16.msra.mxu0 %v1969
    %2290 = vmatpush.bf16.msra.mxu0 %v1961
    %2291 = vmatpush.bf16.msra.mxu0 %v1953
    %2292 = vmatmul.bf16.gmra.mxu0 %v1559
    %v2293 = vpop.f32.mrf.mxu0
    %v2294 = vadd.f32 0.0, %v2293
    %v2295 = vpop.f32.mrf.mxu0
    %2296 = vdwg.mxu0
    %2297 = vmatpush.bf16.msra.mxu0 %v2073
    %2298 = vmatpush.bf16.msra.mxu0 %v2065
    %2299 = vmatpush.bf16.msra.mxu0 %v2057
    %2300 = vmatpush.bf16.msra.mxu0 %v2049
    %2301 = vmatpush.bf16.msra.mxu0 %v2041
    %2302 = vmatpush.bf16.msra.mxu0 %v2033
    %2303 = vmatpush.bf16.msra.mxu0 %v2025
    %2304 = vmatpush.bf16.msra.mxu0 %v2017
    %2305 = vmatmul.bf16.gmra.mxu0 %v1563
    %v2306 = vpop.f32.mrf.mxu0
    %v2307 = vadd.f32 %v2294, %v2306
    %v2308 = vpop.f32.mrf.mxu0
    %2309 = vdwg.mxu0
    %2310 = vmatpush.bf16.msra.mxu0 %v2010
    %2311 = vmatpush.bf16.msra.mxu0 %v2002
    %2312 = vmatpush.bf16.msra.mxu0 %v1994
    %2313 = vmatpush.bf16.msra.mxu0 %v1986
    %2314 = vmatpush.bf16.msra.mxu0 %v1978
    %2315 = vmatpush.bf16.msra.mxu0 %v1970
    %2316 = vmatpush.bf16.msra.mxu0 %v1962
    %2317 = vmatpush.bf16.msra.mxu0 %v1954
    %2318 = vmatmul.bf16.gmra.mxu0 %v1559
    %v2319 = vpop.f32.mrf.mxu0
    %v2320 = vadd.f32 0.0, %v2319
    %v2321 = vpop.f32.mrf.mxu0
    %2322 = vdwg.mxu0
    %2323 = vmatpush.bf16.msra.mxu0 %v2074
    %2324 = vmatpush.bf16.msra.mxu0 %v2066
    %2325 = vmatpush.bf16.msra.mxu0 %v2058
    %2326 = vmatpush.bf16.msra.mxu0 %v2050
    %2327 = vmatpush.bf16.msra.mxu0 %v2042
    %2328 = vmatpush.bf16.msra.mxu0 %v2034
    %2329 = vmatpush.bf16.msra.mxu0 %v2026
    %2330 = vmatpush.bf16.msra.mxu0 %v2018
    %2331 = vmatmul.bf16.gmra.mxu0 %v1563
    %v2332 = vpop.f32.mrf.mxu0
    %v2333 = vadd.f32 %v2320, %v2332
    %v2334 = vpop.f32.mrf.mxu0
    %2335 = vdwg.mxu0
    %2336 = vmatpush.bf16.msra.mxu0 %v2011
    %2337 = vmatpush.bf16.msra.mxu0 %v2003
    %2338 = vmatpush.bf16.msra.mxu0 %v1995
    %2339 = vmatpush.bf16.msra.mxu0 %v1987
    %2340 = vmatpush.bf16.msra.mxu0 %v1979
    %2341 = vmatpush.bf16.msra.mxu0 %v1971
    %2342 = vmatpush.bf16.msra.mxu0 %v1963
    %2343 = vmatpush.bf16.msra.mxu0 %v1955
    %2344 = vmatmul.bf16.gmra.mxu0 %v1559
    %v2345 = vpop.f32.mrf.mxu0
    %v2346 = vadd.f32 0.0, %v2345
    %v2347 = vpop.f32.mrf.mxu0
    %2348 = vdwg.mxu0
    %2349 = vmatpush.bf16.msra.mxu0 %v2075
    %2350 = vmatpush.bf16.msra.mxu0 %v2067
    %2351 = vmatpush.bf16.msra.mxu0 %v2059
    %2352 = vmatpush.bf16.msra.mxu0 %v2051
    %2353 = vmatpush.bf16.msra.mxu0 %v2043
    %2354 = vmatpush.bf16.msra.mxu0 %v2035
    %2355 = vmatpush.bf16.msra.mxu0 %v2027
    %2356 = vmatpush.bf16.msra.mxu0 %v2019
    %2357 = vmatmul.bf16.gmra.mxu0 %v1563
    %v2358 = vpop.f32.mrf.mxu0
    %v2359 = vadd.f32 %v2346, %v2358
    %v2360 = vpop.f32.mrf.mxu0
    %2361 = vdwg.mxu0
    %2362 = vmatpush.bf16.msra.mxu0 %v2012
    %2363 = vmatpush.bf16.msra.mxu0 %v2004
    %2364 = vmatpush.bf16.msra.mxu0 %v1996
    %2365 = vmatpush.bf16.msra.mxu0 %v1988
    %2366 = vmatpush.bf16.msra.mxu0 %v1980
    %2367 = vmatpush.bf16.msra.mxu0 %v1972
    %2368 = vmatpush.bf16.msra.mxu0 %v1964
    %2369 = vmatpush.bf16.msra.mxu0 %v1956
    %2370 = vmatmul.bf16.gmra.mxu0 %v1559
    %v2371 = vpop.f32.mrf.mxu0
    %v2372 = vadd.f32 0.0, %v2371
    %v2373 = vpop.f32.mrf.mxu0
    %2374 = vdwg.mxu0
    %2375 = vmatpush.bf16.msra.mxu0 %v2076
    %2376 = vmatpush.bf16.msra.mxu0 %v2068
    %2377 = vmatpush.bf16.msra.mxu0 %v2060
    %2378 = vmatpush.bf16.msra.mxu0 %v2052
    %2379 = vmatpush.bf16.msra.mxu0 %v2044
    %2380 = vmatpush.bf16.msra.mxu0 %v2036
    %2381 = vmatpush.bf16.msra.mxu0 %v2028
    %2382 = vmatpush.bf16.msra.mxu0 %v2020
    %2383 = vmatmul.bf16.gmra.mxu0 %v1563
    %v2384 = vpop.f32.mrf.mxu0
    %v2385 = vadd.f32 %v2372, %v2384
    %v2386 = vpop.f32.mrf.mxu0
    %2387 = vdwg.mxu0
    %2388 = vmatpush.bf16.msra.mxu0 %v2013
    %2389 = vmatpush.bf16.msra.mxu0 %v2005
    %2390 = vmatpush.bf16.msra.mxu0 %v1997
    %2391 = vmatpush.bf16.msra.mxu0 %v1989
    %2392 = vmatpush.bf16.msra.mxu0 %v1981
    %2393 = vmatpush.bf16.msra.mxu0 %v1973
    %2394 = vmatpush.bf16.msra.mxu0 %v1965
    %2395 = vmatpush.bf16.msra.mxu0 %v1957
    %2396 = vmatmul.bf16.gmra.mxu0 %v1559
    %v2397 = vpop.f32.mrf.mxu0
    %v2398 = vadd.f32 0.0, %v2397
    %v2399 = vpop.f32.mrf.mxu0
    %2400 = vdwg.mxu0
    %2401 = vmatpush.bf16.msra.mxu0 %v2077
    %2402 = vmatpush.bf16.msra.mxu0 %v2069
    %2403 = vmatpush.bf16.msra.mxu0 %v2061
    %2404 = vmatpush.bf16.msra.mxu0 %v2053
    %2405 = vmatpush.bf16.msra.mxu0 %v2045
    %2406 = vmatpush.bf16.msra.mxu0 %v2037
    %2407 = vmatpush.bf16.msra.mxu0 %v2029
    %2408 = vmatpush.bf16.msra.mxu0 %v2021
    %2409 = vmatmul.bf16.gmra.mxu0 %v1563
    %v2410 = vpop.f32.mrf.mxu0
    %v2411 = vadd.f32 %v2398, %v2410
    %v2412 = vpop.f32.mrf.mxu0
    %2413 = vdwg.mxu0
    %v2414 = vxor.u32 %v2229, 2147483648
    %v2415 = vxor.u32 %v2255, 2147483648
    %v2416 = vxor.u32 %v2281, 2147483648
    %v2417 = vxor.u32 %v2307, 2147483648
    %v2418 = vmul.f32 %v2414, 1.442695
    %v2419 = vpow.pop %v2418
    %v2420 = vmul.f32 %v2415, 1.442695
    %v2421 = vpow.pop %v2420
    %v2422 = vmul.f32 %v2416, 1.442695
    %v2423 = vpow.pop %v2422
    %v2424 = vmul.f32 %v2417, 1.442695
    %v2425 = vpow.pop %v2424
    %v2426 = vadd.f32 %v2419, 1.0
    %v2427 = vadd.f32 %v2421, 1.0
    %v2428 = vadd.f32 %v2423, 1.0
    %v2429 = vadd.f32 %v2425, 1.0
    %v2430 = vrcp.pop %v2426
    %v2431 = vmul.f32 %v2426, %v2430
    %v2432 = vsub.f32 1.0, %v2431
    %v2433 = vmul.f32 %v2430, %v2432
    %v2434 = vadd.f32 %v2430, %v2433
    %vm2435 = vweird.f32 %v2426
    %vm2436 = vweird.f32 %v2430
    %vm2437 = vmor %vm2435, %vm2436
    %v2438 = vsel %vm2437, %v2430, %v2434
    %v2439 = vand.u32 2147483647, %v2426
    %vm2440 = vcmp.eq.f32.partialorder %v2439, 8.507059e+37
    %v2441 = vand.u32 %v2426, 2147483648
    %v2442 = vor.u32 1.1754944e-38, %v2441
    %v2443 = vsel %vm2440, %v2442, %v2438
    %v2444 = vmul.f32 1.0, %v2443
    %v2445 = vrcp.pop %v2427
    %v2446 = vmul.f32 %v2427, %v2445
    %v2447 = vsub.f32 1.0, %v2446
    %v2448 = vmul.f32 %v2445, %v2447
    %v2449 = vadd.f32 %v2445, %v2448
    %vm2450 = vweird.f32 %v2427
    %vm2451 = vweird.f32 %v2445
    %vm2452 = vmor %vm2450, %vm2451
    %v2453 = vsel %vm2452, %v2445, %v2449
    %v2454 = vand.u32 2147483647, %v2427
    %vm2455 = vcmp.eq.f32.partialorder %v2454, 8.507059e+37
    %v2456 = vand.u32 %v2427, 2147483648
    %v2457 = vor.u32 1.1754944e-38, %v2456
    %v2458 = vsel %vm2455, %v2457, %v2453
    %v2459 = vmul.f32 1.0, %v2458
    %v2460 = vrcp.pop %v2428
    %v2461 = vmul.f32 %v2428, %v2460
    %v2462 = vsub.f32 1.0, %v2461
    %v2463 = vmul.f32 %v2460, %v2462
    %v2464 = vadd.f32 %v2460, %v2463
    %vm2465 = vweird.f32 %v2428
    %vm2466 = vweird.f32 %v2460
    %vm2467 = vmor %vm2465, %vm2466
    %v2468 = vsel %vm2467, %v2460, %v2464
    %v2469 = vand.u32 2147483647, %v2428
    %vm2470 = vcmp.eq.f32.partialorder %v2469, 8.507059e+37
    %v2471 = vand.u32 %v2428, 2147483648
    %v2472 = vor.u32 1.1754944e-38, %v2471
    %v2473 = vsel %vm2470, %v2472, %v2468
    %v2474 = vmul.f32 1.0, %v2473
    %v2475 = vrcp.pop %v2429
    %v2476 = vmul.f32 %v2429, %v2475
    %v2477 = vsub.f32 1.0, %v2476
    %v2478 = vmul.f32 %v2475, %v2477
    %v2479 = vadd.f32 %v2475, %v2478
    %vm2480 = vweird.f32 %v2429
    %vm2481 = vweird.f32 %v2475
    %vm2482 = vmor %vm2480, %vm2481
    %v2483 = vsel %vm2482, %v2475, %v2479
    %v2484 = vand.u32 2147483647, %v2429
    %vm2485 = vcmp.eq.f32.partialorder %v2484, 8.507059e+37
    %v2486 = vand.u32 %v2429, 2147483648
    %v2487 = vor.u32 1.1754944e-38, %v2486
    %v2488 = vsel %vm2485, %v2487, %v2483
    %v2489 = vmul.f32 1.0, %v2488
    %v2490 = vmul.f32 %v2229, %v2444
    %v2491 = vmul.f32 %v2255, %v2459
    %v2492 = vmul.f32 %v2281, %v2474
    %v2493 = vmul.f32 %v2307, %v2489
    %v2494 = vmul.f32 %v2490, %v2333
    %v2495 = vmul.f32 %v2491, %v2359
    %v2496 = vmul.f32 %v2492, %v2385
    %v2497 = vmul.f32 %v2493, %v2411
    %v2498 = vpack.c.bf16 %v2494, %v2494
    %v2499 = vpack.c.bf16 %v2495, %v2495
    %v2500 = vpack.c.bf16 %v2496, %v2496
    %v2501 = vpack.c.bf16 %v2497, %v2497
    %v2502 = vld [vmem:[#allocation3] sm:$0xff]
    %v2503 = vld [vmem:[#allocation3 + $0x8] sm:$0xff]
    %v2504 = vld [vmem:[#allocation3 + $0x10] sm:$0xff]
    %v2505 = vld [vmem:[#allocation3 + $0x18] sm:$0xff]
    %v2506 = vld [vmem:[#allocation3 + $0x20] sm:$0xff]
    %v2507 = vld [vmem:[#allocation3 + $0x28] sm:$0xff]
    %v2508 = vld [vmem:[#allocation3 + $0x30] sm:$0xff]
    %v2509 = vld [vmem:[#allocation3 + $0x38] sm:$0xff]
    %v2510 = vld [vmem:[#allocation3 + $0x40] sm:$0xff]
    %v2511 = vld [vmem:[#allocation3 + $0x48] sm:$0xff]
    %v2512 = vld [vmem:[#allocation3 + $0x50] sm:$0xff]
    %v2513 = vld [vmem:[#allocation3 + $0x58] sm:$0xff]
    %v2514 = vld [vmem:[#allocation3 + $0x60] sm:$0xff]
    %v2515 = vld [vmem:[#allocation3 + $0x68] sm:$0xff]
    %v2516 = vld [vmem:[#allocation3 + $0x70] sm:$0xff]
    %v2517 = vld [vmem:[#allocation3 + $0x78] sm:$0xff]
    %v2518 = vld [vmem:[#allocation3 + $0x80] sm:$0xff]
    %v2519 = vld [vmem:[#allocation3 + $0x88] sm:$0xff]
    %v2520 = vld [vmem:[#allocation3 + $0x90] sm:$0xff]
    %v2521 = vld [vmem:[#allocation3 + $0x98] sm:$0xff]
    %v2522 = vld [vmem:[#allocation3 + $0xa0] sm:$0xff]
    %v2523 = vld [vmem:[#allocation3 + $0xa8] sm:$0xff]
    %v2524 = vld [vmem:[#allocation3 + $0xb0] sm:$0xff]
    %v2525 = vld [vmem:[#allocation3 + $0xb8] sm:$0xff]
    %v2526 = vld [vmem:[#allocation3 + $0xc0] sm:$0xff]
    %v2527 = vld [vmem:[#allocation3 + $0xc8] sm:$0xff]
    %v2528 = vld [vmem:[#allocation3 + $0xd0] sm:$0xff]
    %v2529 = vld [vmem:[#allocation3 + $0xd8] sm:$0xff]
    %v2530 = vld [vmem:[#allocation3 + $0xe0] sm:$0xff]
    %v2531 = vld [vmem:[#allocation3 + $0xe8] sm:$0xff]
    %v2532 = vld [vmem:[#allocation3 + $0xf0] sm:$0xff]
    %v2533 = vld [vmem:[#allocation3 + $0xf8] sm:$0xff]
    %v2534 = vld [vmem:[#allocation3 + $0x100] sm:$0xff]
    %v2535 = vld [vmem:[#allocation3 + $0x108] sm:$0xff]
    %v2536 = vld [vmem:[#allocation3 + $0x110] sm:$0xff]
    %v2537 = vld [vmem:[#allocation3 + $0x118] sm:$0xff]
    %v2538 = vld [vmem:[#allocation3 + $0x120] sm:$0xff]
    %v2539 = vld [vmem:[#allocation3 + $0x128] sm:$0xff]
    %v2540 = vld [vmem:[#allocation3 + $0x130] sm:$0xff]
    %v2541 = vld [vmem:[#allocation3 + $0x138] sm:$0xff]
    %v2542 = vld [vmem:[#allocation3 + $0x140] sm:$0xff]
    %v2543 = vld [vmem:[#allocation3 + $0x148] sm:$0xff]
    %v2544 = vld [vmem:[#allocation3 + $0x150] sm:$0xff]
    %v2545 = vld [vmem:[#allocation3 + $0x158] sm:$0xff]
    %v2546 = vld [vmem:[#allocation3 + $0x160] sm:$0xff]
    %v2547 = vld [vmem:[#allocation3 + $0x168] sm:$0xff]
    %v2548 = vld [vmem:[#allocation3 + $0x170] sm:$0xff]
    %v2549 = vld [vmem:[#allocation3 + $0x178] sm:$0xff]
    %v2550 = vld [vmem:[#allocation3 + $0x180] sm:$0xff]
    %v2551 = vld [vmem:[#allocation3 + $0x188] sm:$0xff]
    %v2552 = vld [vmem:[#allocation3 + $0x190] sm:$0xff]
    %v2553 = vld [vmem:[#allocation3 + $0x198] sm:$0xff]
    %v2554 = vld [vmem:[#allocation3 + $0x1a0] sm:$0xff]
    %v2555 = vld [vmem:[#allocation3 + $0x1a8] sm:$0xff]
    %v2556 = vld [vmem:[#allocation3 + $0x1b0] sm:$0xff]
    %v2557 = vld [vmem:[#allocation3 + $0x1b8] sm:$0xff]
    %v2558 = vld [vmem:[#allocation3 + $0x1c0] sm:$0xff]
    %v2559 = vld [vmem:[#allocation3 + $0x1c8] sm:$0xff]
    %v2560 = vld [vmem:[#allocation3 + $0x1d0] sm:$0xff]
    %v2561 = vld [vmem:[#allocation3 + $0x1d8] sm:$0xff]
    %v2562 = vld [vmem:[#allocation3 + $0x1e0] sm:$0xff]
    %v2563 = vld [vmem:[#allocation3 + $0x1e8] sm:$0xff]
    %v2564 = vld [vmem:[#allocation3 + $0x1f0] sm:$0xff]
    %v2565 = vld [vmem:[#allocation3 + $0x1f8] sm:$0xff]
    %v2630 = vunpack.c.l.b16 %v2502
    %v2631 = vunpack.c.h.b16 %v2502
    %v2632 = vunpack.c.l.b16 %v2503
    %v2633 = vunpack.c.h.b16 %v2503
    %v2634 = vunpack.c.l.b16 %v2504
    %v2635 = vunpack.c.h.b16 %v2504
    %v2636 = vunpack.c.l.b16 %v2505
    %v2637 = vunpack.c.h.b16 %v2505
    %v2638 = vunpack.c.l.b16 %v2506
    %v2639 = vunpack.c.h.b16 %v2506
    %v2640 = vunpack.c.l.b16 %v2507
    %v2641 = vunpack.c.h.b16 %v2507
    %v2642 = vunpack.c.l.b16 %v2508
    %v2643 = vunpack.c.h.b16 %v2508
    %v2644 = vunpack.c.l.b16 %v2509
    %v2645 = vunpack.c.h.b16 %v2509
    %v2646 = vunpack.c.l.b16 %v2510
    %v2647 = vunpack.c.h.b16 %v2510
    %v2648 = vunpack.c.l.b16 %v2511
    %v2649 = vunpack.c.h.b16 %v2511
    %v2650 = vunpack.c.l.b16 %v2512
    %v2651 = vunpack.c.h.b16 %v2512
    %v2652 = vunpack.c.l.b16 %v2513
    %v2653 = vunpack.c.h.b16 %v2513
    %v2654 = vunpack.c.l.b16 %v2514
    %v2655 = vunpack.c.h.b16 %v2514
    %v2656 = vunpack.c.l.b16 %v2515
    %v2657 = vunpack.c.h.b16 %v2515
    %v2658 = vunpack.c.l.b16 %v2516
    %v2659 = vunpack.c.h.b16 %v2516
    %v2660 = vunpack.c.l.b16 %v2517
    %v2661 = vunpack.c.h.b16 %v2517
    %v2662 = vunpack.c.l.b16 %v2518
    %v2663 = vunpack.c.h.b16 %v2518
    %v2664 = vunpack.c.l.b16 %v2519
    %v2665 = vunpack.c.h.b16 %v2519
    %v2666 = vunpack.c.l.b16 %v2520
    %v2667 = vunpack.c.h.b16 %v2520
    %v2668 = vunpack.c.l.b16 %v2521
    %v2669 = vunpack.c.h.b16 %v2521
    %v2670 = vunpack.c.l.b16 %v2522
    %v2671 = vunpack.c.h.b16 %v2522
    %v2672 = vunpack.c.l.b16 %v2523
    %v2673 = vunpack.c.h.b16 %v2523
    %v2674 = vunpack.c.l.b16 %v2524
    %v2675 = vunpack.c.h.b16 %v2524
    %v2676 = vunpack.c.l.b16 %v2525
    %v2677 = vunpack.c.h.b16 %v2525
    %v2678 = vunpack.c.l.b16 %v2526
    %v2679 = vunpack.c.h.b16 %v2526
    %v2680 = vunpack.c.l.b16 %v2527
    %v2681 = vunpack.c.h.b16 %v2527
    %v2682 = vunpack.c.l.b16 %v2528
    %v2683 = vunpack.c.h.b16 %v2528
    %v2684 = vunpack.c.l.b16 %v2529
    %v2685 = vunpack.c.h.b16 %v2529
    %v2686 = vunpack.c.l.b16 %v2530
    %v2687 = vunpack.c.h.b16 %v2530
    %v2688 = vunpack.c.l.b16 %v2531
    %v2689 = vunpack.c.h.b16 %v2531
    %v2690 = vunpack.c.l.b16 %v2532
    %v2691 = vunpack.c.h.b16 %v2532
    %v2692 = vunpack.c.l.b16 %v2533
    %v2693 = vunpack.c.h.b16 %v2533
    %v2694 = vunpack.c.l.b16 %v2534
    %v2695 = vunpack.c.h.b16 %v2534
    %v2696 = vunpack.c.l.b16 %v2535
    %v2697 = vunpack.c.h.b16 %v2535
    %v2698 = vunpack.c.l.b16 %v2536
    %v2699 = vunpack.c.h.b16 %v2536
    %v2700 = vunpack.c.l.b16 %v2537
    %v2701 = vunpack.c.h.b16 %v2537
    %v2702 = vunpack.c.l.b16 %v2538
    %v2703 = vunpack.c.h.b16 %v2538
    %v2704 = vunpack.c.l.b16 %v2539
    %v2705 = vunpack.c.h.b16 %v2539
    %v2706 = vunpack.c.l.b16 %v2540
    %v2707 = vunpack.c.h.b16 %v2540
    %v2708 = vunpack.c.l.b16 %v2541
    %v2709 = vunpack.c.h.b16 %v2541
    %v2710 = vunpack.c.l.b16 %v2542
    %v2711 = vunpack.c.h.b16 %v2542
    %v2712 = vunpack.c.l.b16 %v2543
    %v2713 = vunpack.c.h.b16 %v2543
    %v2714 = vunpack.c.l.b16 %v2544
    %v2715 = vunpack.c.h.b16 %v2544
    %v2716 = vunpack.c.l.b16 %v2545
    %v2717 = vunpack.c.h.b16 %v2545
    %v2718 = vunpack.c.l.b16 %v2546
    %v2719 = vunpack.c.h.b16 %v2546
    %v2720 = vunpack.c.l.b16 %v2547
    %v2721 = vunpack.c.h.b16 %v2547
    %v2722 = vunpack.c.l.b16 %v2548
    %v2723 = vunpack.c.h.b16 %v2548
    %v2724 = vunpack.c.l.b16 %v2549
    %v2725 = vunpack.c.h.b16 %v2549
    %v2726 = vunpack.c.l.b16 %v2550
    %v2727 = vunpack.c.h.b16 %v2550
    %v2728 = vunpack.c.l.b16 %v2551
    %v2729 = vunpack.c.h.b16 %v2551
    %v2730 = vunpack.c.l.b16 %v2552
    %v2731 = vunpack.c.h.b16 %v2552
    %v2732 = vunpack.c.l.b16 %v2553
    %v2733 = vunpack.c.h.b16 %v2553
    %v2734 = vunpack.c.l.b16 %v2554
    %v2735 = vunpack.c.h.b16 %v2554
    %v2736 = vunpack.c.l.b16 %v2555
    %v2737 = vunpack.c.h.b16 %v2555
    %v2738 = vunpack.c.l.b16 %v2556
    %v2739 = vunpack.c.h.b16 %v2556
    %v2740 = vunpack.c.l.b16 %v2557
    %v2741 = vunpack.c.h.b16 %v2557
    %v2742 = vunpack.c.l.b16 %v2558
    %v2743 = vunpack.c.h.b16 %v2558
    %v2744 = vunpack.c.l.b16 %v2559
    %v2745 = vunpack.c.h.b16 %v2559
    %v2746 = vunpack.c.l.b16 %v2560
    %v2747 = vunpack.c.h.b16 %v2560
    %v2748 = vunpack.c.l.b16 %v2561
    %v2749 = vunpack.c.h.b16 %v2561
    %v2750 = vunpack.c.l.b16 %v2562
    %v2751 = vunpack.c.h.b16 %v2562
    %v2752 = vunpack.c.l.b16 %v2563
    %v2753 = vunpack.c.h.b16 %v2563
    %v2754 = vunpack.c.l.b16 %v2564
    %v2755 = vunpack.c.h.b16 %v2564
    %v2756 = vunpack.c.l.b16 %v2565
    %v2757 = vunpack.c.h.b16 %v2565
    %v2758 = vpack.c.b16 %v2632, %v2630
    %v2759 = vpack.c.b16 %v2633, %v2631
    %v2760 = vpack.c.b16 %v2636, %v2634
    %v2761 = vpack.c.b16 %v2637, %v2635
    %v2762 = vpack.c.b16 %v2640, %v2638
    %v2763 = vpack.c.b16 %v2641, %v2639
    %v2764 = vpack.c.b16 %v2644, %v2642
    %v2765 = vpack.c.b16 %v2645, %v2643
    %v2766 = vpack.c.b16 %v2648, %v2646
    %v2767 = vpack.c.b16 %v2649, %v2647
    %v2768 = vpack.c.b16 %v2652, %v2650
    %v2769 = vpack.c.b16 %v2653, %v2651
    %v2770 = vpack.c.b16 %v2656, %v2654
    %v2771 = vpack.c.b16 %v2657, %v2655
    %v2772 = vpack.c.b16 %v2660, %v2658
    %v2773 = vpack.c.b16 %v2661, %v2659
    %v2774 = vpack.c.b16 %v2664, %v2662
    %v2775 = vpack.c.b16 %v2665, %v2663
    %v2776 = vpack.c.b16 %v2668, %v2666
    %v2777 = vpack.c.b16 %v2669, %v2667
    %v2778 = vpack.c.b16 %v2672, %v2670
    %v2779 = vpack.c.b16 %v2673, %v2671
    %v2780 = vpack.c.b16 %v2676, %v2674
    %v2781 = vpack.c.b16 %v2677, %v2675
    %v2782 = vpack.c.b16 %v2680, %v2678
    %v2783 = vpack.c.b16 %v2681, %v2679
    %v2784 = vpack.c.b16 %v2684, %v2682
    %v2785 = vpack.c.b16 %v2685, %v2683
    %v2786 = vpack.c.b16 %v2688, %v2686
    %v2787 = vpack.c.b16 %v2689, %v2687
    %v2788 = vpack.c.b16 %v2692, %v2690
    %v2789 = vpack.c.b16 %v2693, %v2691
    %v2790 = vpack.c.b16 %v2696, %v2694
    %v2791 = vpack.c.b16 %v2697, %v2695
    %v2792 = vpack.c.b16 %v2700, %v2698
    %v2793 = vpack.c.b16 %v2701, %v2699
    %v2794 = vpack.c.b16 %v2704, %v2702
    %v2795 = vpack.c.b16 %v2705, %v2703
    %v2796 = vpack.c.b16 %v2708, %v2706
    %v2797 = vpack.c.b16 %v2709, %v2707
    %v2798 = vpack.c.b16 %v2712, %v2710
    %v2799 = vpack.c.b16 %v2713, %v2711
    %v2800 = vpack.c.b16 %v2716, %v2714
    %v2801 = vpack.c.b16 %v2717, %v2715
    %v2802 = vpack.c.b16 %v2720, %v2718
    %v2803 = vpack.c.b16 %v2721, %v2719
    %v2804 = vpack.c.b16 %v2724, %v2722
    %v2805 = vpack.c.b16 %v2725, %v2723
    %v2806 = vpack.c.b16 %v2728, %v2726
    %v2807 = vpack.c.b16 %v2729, %v2727
    %v2808 = vpack.c.b16 %v2732, %v2730
    %v2809 = vpack.c.b16 %v2733, %v2731
    %v2810 = vpack.c.b16 %v2736, %v2734
    %v2811 = vpack.c.b16 %v2737, %v2735
    %v2812 = vpack.c.b16 %v2740, %v2738
    %v2813 = vpack.c.b16 %v2741, %v2739
    %v2814 = vpack.c.b16 %v2744, %v2742
    %v2815 = vpack.c.b16 %v2745, %v2743
    %v2816 = vpack.c.b16 %v2748, %v2746
    %v2817 = vpack.c.b16 %v2749, %v2747
    %v2818 = vpack.c.b16 %v2752, %v2750
    %v2819 = vpack.c.b16 %v2753, %v2751
    %v2820 = vpack.c.b16 %v2756, %v2754
    %v2821 = vpack.c.b16 %v2757, %v2755
    %2886 = vmatpush.bf16.msra.mxu0 %v2772
    %2887 = vmatpush.bf16.msra.mxu0 %v2770
    %2888 = vmatpush.bf16.msra.mxu0 %v2768
    %2889 = vmatpush.bf16.msra.mxu0 %v2766
    %2890 = vmatpush.bf16.msra.mxu0 %v2764
    %2891 = vmatpush.bf16.msra.mxu0 %v2762
    %2892 = vmatpush.bf16.msra.mxu0 %v2760
    %2893 = vmatpush.bf16.msra.mxu0 %v2758
    %2894 = vmatmul.bf16.gmra.mxu0 %v2498
    %v2895 = vpop.f32.mrf.mxu0
    %v2896 = vadd.f32 0.0, %v2895
    %v2897 = vpop.f32.mrf.mxu0
    %2898 = vdwg.mxu0
    %2899 = vmatpush.bf16.msra.mxu0 %v2788
    %2900 = vmatpush.bf16.msra.mxu0 %v2786
    %2901 = vmatpush.bf16.msra.mxu0 %v2784
    %2902 = vmatpush.bf16.msra.mxu0 %v2782
    %2903 = vmatpush.bf16.msra.mxu0 %v2780
    %2904 = vmatpush.bf16.msra.mxu0 %v2778
    %2905 = vmatpush.bf16.msra.mxu0 %v2776
    %2906 = vmatpush.bf16.msra.mxu0 %v2774
    %2907 = vmatmul.bf16.gmra.mxu0 %v2499
    %v2908 = vpop.f32.mrf.mxu0
    %v2909 = vadd.f32 %v2896, %v2908
    %v2910 = vpop.f32.mrf.mxu0
    %2911 = vdwg.mxu0
    %2912 = vmatpush.bf16.msra.mxu0 %v2804
    %2913 = vmatpush.bf16.msra.mxu0 %v2802
    %2914 = vmatpush.bf16.msra.mxu0 %v2800
    %2915 = vmatpush.bf16.msra.mxu0 %v2798
    %2916 = vmatpush.bf16.msra.mxu0 %v2796
    %2917 = vmatpush.bf16.msra.mxu0 %v2794
    %2918 = vmatpush.bf16.msra.mxu0 %v2792
    %2919 = vmatpush.bf16.msra.mxu0 %v2790
    %2920 = vmatmul.bf16.gmra.mxu0 %v2500
    %v2921 = vpop.f32.mrf.mxu0
    %v2922 = vadd.f32 %v2909, %v2921
    %v2923 = vpop.f32.mrf.mxu0
    %2924 = vdwg.mxu0
    %2925 = vmatpush.bf16.msra.mxu0 %v2820
    %2926 = vmatpush.bf16.msra.mxu0 %v2818
    %2927 = vmatpush.bf16.msra.mxu0 %v2816
    %2928 = vmatpush.bf16.msra.mxu0 %v2814
    %2929 = vmatpush.bf16.msra.mxu0 %v2812
    %2930 = vmatpush.bf16.msra.mxu0 %v2810
    %2931 = vmatpush.bf16.msra.mxu0 %v2808
    %2932 = vmatpush.bf16.msra.mxu0 %v2806
    %2933 = vmatmul.bf16.gmra.mxu0 %v2501
    %v2934 = vpop.f32.mrf.mxu0
    %v2935 = vadd.f32 %v2922, %v2934
    %v2936 = vpop.f32.mrf.mxu0
    %2937 = vdwg.mxu0
    %2938 = vmatpush.bf16.msra.mxu0 %v2773
    %2939 = vmatpush.bf16.msra.mxu0 %v2771
    %2940 = vmatpush.bf16.msra.mxu0 %v2769
    %2941 = vmatpush.bf16.msra.mxu0 %v2767
    %2942 = vmatpush.bf16.msra.mxu0 %v2765
    %2943 = vmatpush.bf16.msra.mxu0 %v2763
    %2944 = vmatpush.bf16.msra.mxu0 %v2761
    %2945 = vmatpush.bf16.msra.mxu0 %v2759
    %2946 = vmatmul.bf16.gmra.mxu0 %v2498
    %v2947 = vpop.f32.mrf.mxu0
    %v2948 = vadd.f32 0.0, %v2947
    %v2949 = vpop.f32.mrf.mxu0
    %2950 = vdwg.mxu0
    %2951 = vmatpush.bf16.msra.mxu0 %v2789
    %2952 = vmatpush.bf16.msra.mxu0 %v2787
    %2953 = vmatpush.bf16.msra.mxu0 %v2785
    %2954 = vmatpush.bf16.msra.mxu0 %v2783
    %2955 = vmatpush.bf16.msra.mxu0 %v2781
    %2956 = vmatpush.bf16.msra.mxu0 %v2779
    %2957 = vmatpush.bf16.msra.mxu0 %v2777
    %2958 = vmatpush.bf16.msra.mxu0 %v2775
    %2959 = vmatmul.bf16.gmra.mxu0 %v2499
    %v2960 = vpop.f32.mrf.mxu0
    %v2961 = vadd.f32 %v2948, %v2960
    %v2962 = vpop.f32.mrf.mxu0
    %2963 = vdwg.mxu0
    %2964 = vmatpush.bf16.msra.mxu0 %v2805
    %2965 = vmatpush.bf16.msra.mxu0 %v2803
    %2966 = vmatpush.bf16.msra.mxu0 %v2801
    %2967 = vmatpush.bf16.msra.mxu0 %v2799
    %2968 = vmatpush.bf16.msra.mxu0 %v2797
    %2969 = vmatpush.bf16.msra.mxu0 %v2795
    %2970 = vmatpush.bf16.msra.mxu0 %v2793
    %2971 = vmatpush.bf16.msra.mxu0 %v2791
    %2972 = vmatmul.bf16.gmra.mxu0 %v2500
    %v2973 = vpop.f32.mrf.mxu0
    %v2974 = vadd.f32 %v2961, %v2973
    %v2975 = vpop.f32.mrf.mxu0
    %2976 = vdwg.mxu0
    %2977 = vmatpush.bf16.msra.mxu0 %v2821
    %2978 = vmatpush.bf16.msra.mxu0 %v2819
    %2979 = vmatpush.bf16.msra.mxu0 %v2817
    %2980 = vmatpush.bf16.msra.mxu0 %v2815
    %2981 = vmatpush.bf16.msra.mxu0 %v2813
    %2982 = vmatpush.bf16.msra.mxu0 %v2811
    %2983 = vmatpush.bf16.msra.mxu0 %v2809
    %2984 = vmatpush.bf16.msra.mxu0 %v2807
    %2985 = vmatmul.bf16.gmra.mxu0 %v2501
    %v2986 = vpop.f32.mrf.mxu0
    %v2987 = vadd.f32 %v2974, %v2986
    %v2988 = vpop.f32.mrf.mxu0
    %2989 = vdwg.mxu0
    %v2992 = vrot.slane %v2935, 1
    %v2993 = vrot.slane %v2987, 1
    %v2996 = vadd.f32 %v1386, %v2992
    %v2997 = vadd.f32 %v1387, %v2993
    %v2998 = vld [vmem:[%s8] sm:$0x3]
    %v2999 = vmul.f32 %v2996, %v2996
    %v3000 = vmul.f32 %v2997, %v2997
    %v3001 = vsel %vm1399, %v2999, 0.0
    %v3002 = vsel %vm1399, %v3000, 0.0
    %v3003 = vadd.f32 %v3001, %v3002
    %3004 = vadd.xlane.f32.xlu0 %v3003
    %v3005 = vpop.xlane.xlu0 %3004
    %v3006 = vmul.f32 %v3005, %v211
    %v3007 = vadd.f32 %v3006, 1e-06
    %v3008 = vrsqrt.pop %v3007
    %v3009 = vmul.f32 %v3008, %v3007
    %v3010 = vmul.f32 %v3009, %v3008
    %v3011 = vmul.f32 0.5, %v3010
    %v3012 = vsub.f32 1.5, %v3011
    %v3013 = vmul.f32 %v3008, %v3012
    %vm3014 = vweird.f32 %v3007
    %vm3015 = vweird.f32 %v3008
    %vm3016 = vmor %vm3014, %vm3015
    %v3017 = vsel %vm3016, %v3008, %v3013
    %v3018 = vmul.f32 %v2996, %v3017
    %v3019 = vmul.f32 %v2997, %v3017
    %v3021 = vperm.slane %v2998, 0
    %v3022 = vperm.slane %v2998, 1
    %v3025 = vmul.f32 %v3018, %v3021
    %v3026 = vmul.f32 %v3019, %v3022
    %3029 = vst [vmem:[#allocation1] sm:$0xff] %v3025
    %3030 = vst [vmem:[#allocation1 + $0x9] sm:$0xff] %v3026
    %s3031 = scalar_lea.vmem [#allocation1], 7
    %v3032 = vld [vmem:[%s3031] ss:$9 sm:$0xff]
    %v3034 = vlaneseq
    %vm3035 = vcmp.ge.s32.totalorder %v3034, 0
    %vm3036 = vcmp.lt.s32.totalorder %v3034, 256
    %vm3037 = vmand %vm3035, %vm3036
    %3038 = vst.msk [vmem:[#allocation19] sm:$0x3] %vm3037, %v3032
    // Predicated region
    $region86: #{tpu_custom_call.1} parent=1 // pred_check
      _
    $region87: #{tpu_custom_call.1} parent=1 // pred_check_branch
      %3040 = sbr.rel (0) target = $region89
    $region88: #{tpu_custom_call.1} parent=1 // pred_region
      %3042 = vsyncadd [#allocation7], 0
      %s3044 = sshll.u32 [#allocation19], 4
      %s3045 = int_to_ptr.vmem [resolvable:$true] %s3044
      %s3046 = sshll.u32 %s13, 4
      %s3047 = int_to_ptr.hbm [resolvable:$true] %s3046
      %3049 = dma.vmem_to_hbm [thread:$0]  %s3045, 32, %s3047, [#allocation7]
    $region89: #{tpu_custom_call.1} parent=1 // pred_fallthru
      _
    // Predicated region
    $region90: #{tpu_custom_call.1} parent=1 // pred_check
      _
    $region91: #{tpu_custom_call.1} parent=1 // pred_check_branch
      %3051 = sbr.rel (0) target = $region93
    $region92: #{tpu_custom_call.1} parent=1 // pred_region
      %3053 = vsyncadd [#allocation21], 0
      %s3054 = sshll.u32 [#allocation20], 4
      %s3055 = int_to_ptr.vmem [resolvable:$true] %s3054
      %s3056 = sshll.u32 %s14, 4
      %s3057 = int_to_ptr.hbm [resolvable:$true] %s3056
      %3062 = dma.vmem_to_hbm [thread:$0]  %s3055, 512, %s3057, [#allocation21], 128, 128, 8
    $region93: #{tpu_custom_call.1} parent=1 // pred_fallthru
      _
    // Predicated region
    $region94: #{tpu_custom_call.1} parent=1 // pred_check
      _
    $region95: #{tpu_custom_call.1} parent=1 // pred_check_branch
      %3064 = sbr.rel (0) target = $region97
    $region96: #{tpu_custom_call.1} parent=1 // pred_region
      %3066 = vsyncadd [#allocation21], 0
      %s3067 = sshll.u32 [#allocation22], 4
      %s3068 = int_to_ptr.vmem [resolvable:$true] %s3067
      %s3069 = sshll.u32 %s15, 4
      %s3070 = int_to_ptr.hbm [resolvable:$true] %s3069
      %3075 = dma.vmem_to_hbm [thread:$0]  %s3068, 512, %s3070, [#allocation21], 128, 128, 8
    $region97: #{tpu_custom_call.1} parent=1 // pred_fallthru
      _
    // Predicated region
    $region98: #{tpu_custom_call.1} parent=1 // pred_check
      _
    $region99: #{tpu_custom_call.1} parent=1 // pred_check_branch
      %3077 = sbr.rel (0) target = $region101
    $region100: #{tpu_custom_call.1} parent=1 // pred_region
      %3079 = dma.done [#allocation7], 32
    $region101: #{tpu_custom_call.1} parent=1 // pred_fallthru
      _
    // Predicated region
    $region102: #{tpu_custom_call.1} parent=1 // pred_check
      _
    $region103: #{tpu_custom_call.1} parent=1 // pred_check_branch
      %3081 = sbr.rel (0) target = $region105
    $region104: #{tpu_custom_call.1} parent=1 // pred_region
      %3083 = dma.done [#allocation21], 512
    $region105: #{tpu_custom_call.1} parent=1 // pred_fallthru
      _
    // Predicated region
    $region106: #{tpu_custom_call.1} parent=1 // pred_check
      _
    $region107: #{tpu_custom_call.1} parent=1 // pred_check_branch
      %3085 = sbr.rel (0) target = $region109
    $region108: #{tpu_custom_call.1} parent=1 // pred_region
      %3087 = dma.done [#allocation21], 512
    $region109: #{tpu_custom_call.1} parent=1 // pred_fallthru
      _
    %3088 = vsyncpa [#allocation6], 1
    %3089 = vsyncpa [#allocation9], 1
    %3090 = vsyncpa [#allocation12], 1
    %3091 = vsyncpa [#allocation15], 1
    %3092 = vsyncpa [#allocation18], 1
    %3093 = vsyncpa [#allocation7], 1
    %3094 = vsyncpa [#allocation21], 1
  %3095 = vsyncmov [#allocation4]
  %s3096 = vpop.sfrf %3095
  %p3097 = scmp.eq.s32.totalorder %s3096, 0
  %p3098 = pneg %p3097
  %3100 = shalt.err (%p3098)
  %s3101 = scalar_lea.sflag [#allocation4], 1
  %3102 = vsyncmov %s3101
  %s3103 = vpop.sfrf %3102
  %p3104 = scmp.eq.s32.totalorder %s3103, 0
  %p3105 = pneg %p3104
  %3107 = shalt.err (%p3105)

</llo_original>
